<compile_context>
chip_gen: v6e
topology: v6e:2x2x1
jax: 0.10.0
libtpu: 0.0.40
codegen_flags: <defaults>
</compile_context>

<pallas_src>
import jax
import jax.numpy as jnp
from jax.experimental import pallas as pl
from jax.experimental.pallas import tpu as pltpu

# ----------------------------- config (small, deterministic) -----------------
INPUT_DIM = 8      # config.input_dim
N_EMBD    = 32     # config.n_embd
N_HEAD    = 4      # config.n_head
N_LAYER   = 2      # config.n_layer
HEAD_DIM  = N_EMBD // N_HEAD
BASE_SCALE = 0.02  # config.base_scale
RMS_EPS   = 1e-6
B, T = 2, 8        # batch, particles (sequence)
NEG_INF = -1e30    # additive mask value (avoids NaN for fully-masked rows)


def _auto_proj_dims(n_embd):
    dims, c = [], n_embd
    while c > 2:
        dims.append(c)
        c = c // 4
    dims.append(2)
    return dims


PROJ_DIMS = _auto_proj_dims(N_EMBD)          # [32, 8, 2]
assert len(PROJ_DIMS) == 3, "kernel below is written for the 2-layer auto projector"


# ----------------------------- in-kernel helpers ------------------------------
def _rmsnorm(x, g):
    # RMSNorm.forward: f32 math, multiply by weight; keep f32 (bf16 only at matmuls)
    xf = x.astype(jnp.float32)
    ms = jnp.mean(xf * xf, axis=-1, keepdims=True)
    return xf * jax.lax.rsqrt(ms + RMS_EPS) * g


def _mm(x, w):
    # bf16 x bf16 MXU matmul with f32 accumulation; w is pre-transposed (in, out)
    return jnp.dot(x.astype(jnp.bfloat16), w, preferred_element_type=jnp.float32)


def _silu_gate(uv, half):
    # u * silu(v), f32 math (EUP sigmoid)
    u = uv[:, :half]
    v = uv[:, half:]
    return u * (v * jax.nn.sigmoid(v))


# ----------------------------- the kernel (one sequence per grid step) --------
def classifier_kernel(x_ref, bias_ref, w_in_ref, g_in_ref,
                      g_att_ref, wq_ref, wk_ref, wv_ref, wattp_ref,
                      g_mlp_ref, w_cfc_ref, w_mlpp_ref,
                      g_p0_ref, w_lin0_ref, w_proj0_ref,
                      g_p1_ref, w_lin1_ref, w_proj1_ref,
                      out_ref):
    scale = 1.0 / (HEAD_DIM ** 0.5)          # use_nGPT == 0 softmax scale
    bias = bias_ref[0]                       # (1, T) additive key-padding bias

    # ---- Encoder: input projection + input RMSNorm ----
    # TODO(synk): reference code would hit a dtype mismatch (fp32 input vs bf16
    # Linear) on the use_nGPT==0 branch; we cast to bf16 at the matmul input.
    h = _mm(x_ref[...], w_in_ref[...])       # (T, C) f32
    h = _rmsnorm(h, g_in_ref[...])

    # ---- Transformer blocks (use_nGPT == 0 path) ----
    for l in range(N_LAYER):
        # attention (pre-RMSNorm, key-padding mask only, non-causal)
        hin = _rmsnorm(h, g_att_ref[l]).astype(jnp.bfloat16)
        h_att = jnp.zeros_like(h)            # (T, C) f32 accumulator over heads
        for hh in range(N_HEAD):             # weights pre-split per head host-side
            qh = _mm(hin, wq_ref[l, hh]).astype(jnp.bfloat16)     # (T, D)
            kh = _mm(hin, wk_ref[l, hh]).astype(jnp.bfloat16)     # (T, D)
            vh = _mm(hin, wv_ref[l, hh]).astype(jnp.bfloat16)     # (T, D)
            s = jax.lax.dot_general(qh, kh, (((1,), (1,)), ((), ())),
                                    preferred_element_type=jnp.float32)  # (T, T)
            s = s * scale + bias
            s = s - jnp.max(s, axis=-1, keepdims=True)
            p = jnp.exp(s)
            p = p * pl.reciprocal(jnp.sum(p, axis=-1, keepdims=True), approx=True)
            yh = jnp.dot(p.astype(jnp.bfloat16), vh,
                         preferred_element_type=jnp.float32)       # (T, D)
            h_att = h_att + _mm(yh, wattp_ref[l, hh])              # (T, C)
        h = h + h_att                                              # residual (f32)

        # SwiGLU MLP
        hin = _rmsnorm(h, g_mlp_ref[l])
        uv = _mm(hin, w_cfc_ref[l])                                # (T, 8C)
        x_mlp = _silu_gate(uv, 4 * N_EMBD)                         # (T, 4C)
        h = h + _mm(x_mlp, w_mlpp_ref[l])                          # residual (f32)

    # ---- Classifier pooling: encoder_output.sum(dim=1) as one MXU matmul ----
    pool = jnp.ones((1, T), jnp.bfloat16)
    pooled = jnp.dot(pool, h.astype(jnp.bfloat16),
                     preferred_element_type=jnp.float32)           # (1, C)

    # ---- Projector (auto dims [32, 8, 2], use_nGPT == 0 path) ----
    hin = _rmsnorm(pooled, g_p0_ref[...])
    uv = _mm(hin, w_lin0_ref[...])                                 # (1, 16)
    hp = _mm(_silu_gate(uv, PROJ_DIMS[1]), w_proj0_ref[...])       # (1, 8)
    hin = _rmsnorm(hp, g_p1_ref[...])
    uv = _mm(hin, w_lin1_ref[...])                                 # (1, 4)
    hp = _mm(_silu_gate(uv, PROJ_DIMS[2]), w_proj1_ref[...])       # (1, 2)

    out_ref[0] = hp


# ----------------------------- params (pre-transposed / per-head split) -------
def init_params(key):
    # Weights generated in PyTorch Linear (out, in) layout ~ N(0, base_scale)
    # (Classifier.apply(init_weights) re-initializes every Linear last; bias=False;
    #  RMSNorm weights = ones), then pre-transposed to (in, out) and pre-split per
    # attention head so the kernel does no weight relayouts.
    keys = jax.random.split(key, 1 + 4 * N_LAYER + 4)
    ki = iter(keys)

    def lin(out_dim, in_dim):
        w = BASE_SCALE * jax.random.normal(next(ki), (out_dim, in_dim), jnp.float32)
        return w.astype(jnp.bfloat16)

    p = {}
    p['w_in'] = lin(N_EMBD, INPUT_DIM).T                           # (in, C)
    p['g_in'] = jnp.ones((1, N_EMBD), jnp.float32)

    wq, wk, wv, wattp, wcfc, wmlpp = [], [], [], [], [], []
    for _ in range(N_LAYER):
        w_qkv = lin(3 * N_EMBD, N_EMBD)                            # (3C, C) torch layout

        def split_heads(w_part):                                   # (C_out, C_in) -> (H, C_in, D)
            wt = w_part.T.reshape(N_EMBD, N_HEAD, HEAD_DIM)        # (C_in, H, D)
            return jnp.transpose(wt, (1, 0, 2))

        wq.append(split_heads(w_qkv[:N_EMBD]))
        wk.append(split_heads(w_qkv[N_EMBD:2 * N_EMBD]))
        wv.append(split_heads(w_qkv[2 * N_EMBD:]))
        wattp.append(lin(N_EMBD, N_EMBD).T.reshape(N_HEAD, HEAD_DIM, N_EMBD))  # (H, D, C)
        wcfc.append(lin(8 * N_EMBD, N_EMBD).T)                     # (C, 8C)
        wmlpp.append(lin(N_EMBD, 4 * N_EMBD).T)                    # (4C, C)

    p['g_att'] = jnp.ones((N_LAYER, 1, N_EMBD), jnp.float32)
    p['g_mlp'] = jnp.ones((N_LAYER, 1, N_EMBD), jnp.float32)
    p['w_q'] = jnp.stack(wq)          # (L, H, C, D)
    p['w_k'] = jnp.stack(wk)          # (L, H, C, D)
    p['w_v'] = jnp.stack(wv)          # (L, H, C, D)
    p['w_attp'] = jnp.stack(wattp)    # (L, H, D, C)
    p['w_cfc'] = jnp.stack(wcfc)      # (L, C, 8C)
    p['w_mlpp'] = jnp.stack(wmlpp)    # (L, 4C, C)

    d0, d1, d2 = PROJ_DIMS
    p['g_p0'] = jnp.ones((1, d0), jnp.float32)
    p['w_lin0'] = lin(2 * d1, d0).T                                # (32, 16)
    p['w_proj0'] = lin(d1, d1).T                                   # (8, 8)
    p['g_p1'] = jnp.ones((1, d1), jnp.float32)
    p['w_lin1'] = lin(2 * d2, d1).T                                # (8, 4)
    p['w_proj1'] = lin(d2, d2).T                                   # (2, 2)
    return p


# ----------------------------- wrapper -----------------------------------------
@jax.jit
def classifier_forward(x, params):
    # x: (B, T, INPUT_DIM) float32  (batch, particles, features)
    b, t, f = x.shape
    # key-padding mask -> additive bias, computed once in the wrapper
    bias = jnp.where(x[:, :, 0] != 0.0, 0.0, NEG_INF).astype(jnp.float32)[:, None, :]
    x2 = x.reshape(b * t, f).astype(jnp.float32)

    weights = (params['w_in'], params['g_in'],
               params['g_att'], params['w_q'], params['w_k'], params['w_v'],
               params['w_attp'], params['g_mlp'], params['w_cfc'], params['w_mlpp'],
               params['g_p0'], params['w_lin0'], params['w_proj0'],
               params['g_p1'], params['w_lin1'], params['w_proj1'])

    def _rep(shape):                      # full-array block, same for every grid step
        nd = len(shape)
        return pl.BlockSpec(shape, lambda i: (0,) * nd)

    in_specs = [pl.BlockSpec((t, f), lambda i: (i, 0)),            # this sequence's tokens
                pl.BlockSpec((1, 1, t), lambda i: (i, 0, 0))]      # this sequence's mask
    in_specs += [_rep(w.shape) for w in weights]

    out = pl.pallas_call(
        classifier_kernel,
        grid=(b,),
        out_shape=jax.ShapeDtypeStruct((b, 1, PROJ_DIMS[-1]), jnp.float32),
        in_specs=in_specs,
        out_specs=pl.BlockSpec((1, 1, PROJ_DIMS[-1]), lambda i: (i, 0, 0)),
        compiler_params=pltpu.CompilerParams(dimension_semantics=("parallel",)),
    )(x2, bias, *weights)

    return out.reshape(b, PROJ_DIMS[-1]).astype(jnp.bfloat16)


if __name__ == "__main__":
    key = jax.random.PRNGKey(0)
    k_param, k_x = jax.random.split(key)
    params = init_params(k_param)
    x = jax.random.normal(k_x, (B, T, INPUT_DIM), dtype=jnp.float32)

    out = jax.block_until_ready(classifier_forward(x, params))
    assert out.shape == (B, PROJ_DIMS[-1]) and out.dtype == jnp.bfloat16
    print("KERNEL_OK")
</pallas_src>

<mosaic_0001>
module attributes {stable_mosaic.version = 11 : i64} {
  func.func @classifier_kernel(%arg0: i32, %arg1: memref<8x8xf32, #tpu.memory_space<vmem>>, %arg2: memref<1x1x8xf32, #tpu.memory_space<vmem>>, %arg3: memref<8x32xbf16, #tpu.memory_space<vmem>>, %arg4: memref<1x32xf32, #tpu.memory_space<vmem>>, %arg5: memref<2x1x32xf32, #tpu.memory_space<vmem>>, %arg6: memref<2x4x32x8xbf16, #tpu.memory_space<vmem>>, %arg7: memref<2x4x32x8xbf16, #tpu.memory_space<vmem>>, %arg8: memref<2x4x32x8xbf16, #tpu.memory_space<vmem>>, %arg9: memref<2x4x8x32xbf16, #tpu.memory_space<vmem>>, %arg10: memref<2x1x32xf32, #tpu.memory_space<vmem>>, %arg11: memref<2x32x256xbf16, #tpu.memory_space<vmem>>, %arg12: memref<2x128x32xbf16, #tpu.memory_space<vmem>>, %arg13: memref<1x32xf32, #tpu.memory_space<vmem>>, %arg14: memref<32x16xbf16, #tpu.memory_space<vmem>>, %arg15: memref<8x8xbf16, #tpu.memory_space<vmem>>, %arg16: memref<1x8xf32, #tpu.memory_space<vmem>>, %arg17: memref<8x4xbf16, #tpu.memory_space<vmem>>, %arg18: memref<2x2xbf16, #tpu.memory_space<vmem>>, %arg19: memref<1x1x2xf32, #tpu.memory_space<vmem>>) attributes {dimension_semantics = [#tpu.dimension_semantics<parallel>], iteration_bounds = array<i64: 2>, scalar_prefetch = 0 : i64, scratch_operands = 0 : i64, tpu.core_type = #tpu.core_type<tc>, window_params = [{transform_indices = @transform_0, window_bounds = array<i64: 8, 8>}, {transform_indices = @transform_1, window_bounds = array<i64: 1, 1, 8>}, {pipeline_mode = #tpu.pipeline_mode<synchronous>, transform_indices = @transform_2, window_bounds = array<i64: 8, 32>}, {pipeline_mode = #tpu.pipeline_mode<synchronous>, transform_indices = @transform_3, window_bounds = array<i64: 1, 32>}, {pipeline_mode = #tpu.pipeline_mode<synchronous>, transform_indices = @transform_4, window_bounds = array<i64: 2, 1, 32>}, {pipeline_mode = #tpu.pipeline_mode<synchronous>, transform_indices = @transform_5, window_bounds = array<i64: 2, 4, 32, 8>}, {pipeline_mode = #tpu.pipeline_mode<synchronous>, transform_indices = @transform_6, window_bounds = array<i64: 2, 4, 32, 8>}, {pipeline_mode = #tpu.pipeline_mode<synchronous>, transform_indices = @transform_7, window_bounds = array<i64: 2, 4, 32, 8>}, {pipeline_mode = #tpu.pipeline_mode<synchronous>, transform_indices = @transform_8, window_bounds = array<i64: 2, 4, 8, 32>}, {pipeline_mode = #tpu.pipeline_mode<synchronous>, transform_indices = @transform_9, window_bounds = array<i64: 2, 1, 32>}, {pipeline_mode = #tpu.pipeline_mode<synchronous>, transform_indices = @transform_10, window_bounds = array<i64: 2, 32, 256>}, {pipeline_mode = #tpu.pipeline_mode<synchronous>, transform_indices = @transform_11, window_bounds = array<i64: 2, 128, 32>}, {pipeline_mode = #tpu.pipeline_mode<synchronous>, transform_indices = @transform_12, window_bounds = array<i64: 1, 32>}, {pipeline_mode = #tpu.pipeline_mode<synchronous>, transform_indices = @transform_13, window_bounds = array<i64: 32, 16>}, {pipeline_mode = #tpu.pipeline_mode<synchronous>, transform_indices = @transform_14, window_bounds = array<i64: 8, 8>}, {pipeline_mode = #tpu.pipeline_mode<synchronous>, transform_indices = @transform_15, window_bounds = array<i64: 1, 8>}, {pipeline_mode = #tpu.pipeline_mode<synchronous>, transform_indices = @transform_16, window_bounds = array<i64: 8, 4>}, {pipeline_mode = #tpu.pipeline_mode<synchronous>, transform_indices = @transform_17, window_bounds = array<i64: 2, 2>}, {transform_indices = @transform_18, window_bounds = array<i64: 1, 1, 2>}]} {
    %c0 = arith.constant 0 : index
    %c0_0 = arith.constant 0 : index
    %c0_1 = arith.constant 0 : index
    %0 = vector.load %arg2[%c0, %c0_0, %c0_1] : memref<1x1x8xf32, #tpu.memory_space<vmem>>, vector<1x1x8xf32>
    %1 = vector.shape_cast %0 : vector<1x1x8xf32> to vector<1x8xf32>
    %c0_2 = arith.constant 0 : index
    %c0_3 = arith.constant 0 : index
    %2 = vector.load %arg1[%c0_2, %c0_3] : memref<8x8xf32, #tpu.memory_space<vmem>>, vector<8x8xf32>
    %c0_4 = arith.constant 0 : index
    %c0_5 = arith.constant 0 : index
    %3 = vector.load %arg3[%c0_4, %c0_5] : memref<8x32xbf16, #tpu.memory_space<vmem>>, vector<8x32xbf16>
    %4 = arith.truncf %2 : vector<8x8xf32> to vector<8x8xbf16>
    %cst = arith.constant dense<0.000000e+00> : vector<8x32xf32>
    %5 = tpu.matmul %4, %3, %cst {dimension_numbers = #tpu.dot_dimension_numbers<[1], [0], [0], [1], [0, 0, 1, 1], [], []>} : vector<8x8xbf16>, vector<8x32xbf16>, vector<8x32xf32> -> vector<8x32xf32>
    %c0_6 = arith.constant 0 : index
    %c0_7 = arith.constant 0 : index
    %6 = vector.load %arg4[%c0_6, %c0_7] : memref<1x32xf32, #tpu.memory_space<vmem>>, vector<1x32xf32>
    %7 = arith.mulf %5, %5 : vector<8x32xf32>
    %cst_8 = arith.constant dense<0.000000e+00> : vector<8xf32>
    %8 = vector.multi_reduction <add>, %7, %cst_8 [1] : vector<8x32xf32> to vector<8xf32>
    %9 = vector.shape_cast %8 : vector<8xf32> to vector<8x1xf32>
    %cst_9 = arith.constant 3.200000e+01 : f32
    %10 = vector.broadcast %cst_9 : f32 to vector<8x1xf32>
    %11 = arith.divf %9, %10 : vector<8x1xf32>
    %cst_10 = arith.constant 9.99999997E-7 : f32
    %12 = vector.broadcast %cst_10 : f32 to vector<8x1xf32>
    %13 = arith.addf %11, %12 : vector<8x1xf32>
    %14 = math.rsqrt %13 : vector<8x1xf32>
    %15 = vector.broadcast %14 : vector<8x1xf32> to vector<8x32xf32>
    %16 = arith.mulf %5, %15 : vector<8x32xf32>
    %17 = vector.broadcast %6 : vector<1x32xf32> to vector<8x32xf32>
    %18 = arith.mulf %16, %17 : vector<8x32xf32>
    %c0_11 = arith.constant 0 : index
    %c0_12 = arith.constant 0 : index
    %c0_13 = arith.constant 0 : index
    %19 = vector.load %arg5[%c0_11, %c0_12, %c0_13] : memref<2x1x32xf32, #tpu.memory_space<vmem>>, vector<1x1x32xf32>
    %20 = vector.shape_cast %19 : vector<1x1x32xf32> to vector<1x32xf32>
    %21 = arith.mulf %18, %18 : vector<8x32xf32>
    %cst_14 = arith.constant dense<0.000000e+00> : vector<8xf32>
    %22 = vector.multi_reduction <add>, %21, %cst_14 [1] : vector<8x32xf32> to vector<8xf32>
    %23 = vector.shape_cast %22 : vector<8xf32> to vector<8x1xf32>
    %cst_15 = arith.constant 3.200000e+01 : f32
    %24 = vector.broadcast %cst_15 : f32 to vector<8x1xf32>
    %25 = arith.divf %23, %24 : vector<8x1xf32>
    %cst_16 = arith.constant 9.99999997E-7 : f32
    %26 = vector.broadcast %cst_16 : f32 to vector<8x1xf32>
    %27 = arith.addf %25, %26 : vector<8x1xf32>
    %28 = math.rsqrt %27 : vector<8x1xf32>
    %29 = vector.broadcast %28 : vector<8x1xf32> to vector<8x32xf32>
    %30 = arith.mulf %18, %29 : vector<8x32xf32>
    %31 = vector.broadcast %20 : vector<1x32xf32> to vector<8x32xf32>
    %32 = arith.mulf %30, %31 : vector<8x32xf32>
    %33 = arith.truncf %32 : vector<8x32xf32> to vector<8x32xbf16>
    %cst_17 = arith.constant 0.000000e+00 : f32
    %34 = vector.broadcast %cst_17 : f32 to vector<8x32xf32>
    %c0_18 = arith.constant 0 : index
    %c0_19 = arith.constant 0 : index
    %c0_20 = arith.constant 0 : index
    %c0_21 = arith.constant 0 : index
    %35 = vector.load %arg6[%c0_18, %c0_19, %c0_20, %c0_21] : memref<2x4x32x8xbf16, #tpu.memory_space<vmem>>, vector<1x1x32x8xbf16>
    %36 = vector.shape_cast %35 : vector<1x1x32x8xbf16> to vector<32x8xbf16>
    %cst_22 = arith.constant dense<0.000000e+00> : vector<8x8xf32>
    %37 = tpu.matmul %33, %36, %cst_22 {dimension_numbers = #tpu.dot_dimension_numbers<[1], [0], [0], [1], [0, 0, 1, 1], [], []>} : vector<8x32xbf16>, vector<32x8xbf16>, vector<8x8xf32> -> vector<8x8xf32>
    %38 = arith.truncf %37 : vector<8x8xf32> to vector<8x8xbf16>
    %c0_23 = arith.constant 0 : index
    %c0_24 = arith.constant 0 : index
    %c0_25 = arith.constant 0 : index
    %c0_26 = arith.constant 0 : index
    %39 = vector.load %arg7[%c0_23, %c0_24, %c0_25, %c0_26] : memref<2x4x32x8xbf16, #tpu.memory_space<vmem>>, vector<1x1x32x8xbf16>
    %40 = vector.shape_cast %39 : vector<1x1x32x8xbf16> to vector<32x8xbf16>
    %cst_27 = arith.constant dense<0.000000e+00> : vector<8x8xf32>
    %41 = tpu.matmul %33, %40, %cst_27 {dimension_numbers = #tpu.dot_dimension_numbers<[1], [0], [0], [1], [0, 0, 1, 1], [], []>} : vector<8x32xbf16>, vector<32x8xbf16>, vector<8x8xf32> -> vector<8x8xf32>
    %42 = arith.truncf %41 : vector<8x8xf32> to vector<8x8xbf16>
    %c0_28 = arith.constant 0 : index
    %c0_29 = arith.constant 0 : index
    %c0_30 = arith.constant 0 : index
    %c0_31 = arith.constant 0 : index
    %43 = vector.load %arg8[%c0_28, %c0_29, %c0_30, %c0_31] : memref<2x4x32x8xbf16, #tpu.memory_space<vmem>>, vector<1x1x32x8xbf16>
    %44 = vector.shape_cast %43 : vector<1x1x32x8xbf16> to vector<32x8xbf16>
    %cst_32 = arith.constant dense<0.000000e+00> : vector<8x8xf32>
    %45 = tpu.matmul %33, %44, %cst_32 {dimension_numbers = #tpu.dot_dimension_numbers<[1], [0], [0], [1], [0, 0, 1, 1], [], []>} : vector<8x32xbf16>, vector<32x8xbf16>, vector<8x8xf32> -> vector<8x8xf32>
    %46 = arith.truncf %45 : vector<8x8xf32> to vector<8x8xbf16>
    %cst_33 = arith.constant dense<0.000000e+00> : vector<8x8xf32>
    %47 = tpu.matmul %38, %42, %cst_33 {dimension_numbers = #tpu.dot_dimension_numbers<[1], [1], [0], [0], [0, 0, 1, 0], [], []>} : vector<8x8xbf16>, vector<8x8xbf16>, vector<8x8xf32> -> vector<8x8xf32>
    %cst_34 = arith.constant 0.353553385 : f32
    %48 = vector.broadcast %cst_34 : f32 to vector<8x8xf32>
    %49 = arith.mulf %47, %48 : vector<8x8xf32>
    %50 = vector.broadcast %1 : vector<1x8xf32> to vector<8x8xf32>
    %51 = arith.addf %49, %50 : vector<8x8xf32>
    %cst_35 = arith.constant dense<0xFF800000> : vector<8xf32>
    %52 = vector.multi_reduction <maximumf>, %51, %cst_35 [1] : vector<8x8xf32> to vector<8xf32>
    %53 = vector.shape_cast %52 : vector<8xf32> to vector<8x1xf32>
    %54 = vector.broadcast %53 : vector<8x1xf32> to vector<8x8xf32>
    %55 = arith.subf %51, %54 : vector<8x8xf32>
    %56 = math.exp %55 : vector<8x8xf32>
    %cst_36 = arith.constant dense<0.000000e+00> : vector<8xf32>
    %57 = vector.multi_reduction <add>, %56, %cst_36 [1] : vector<8x8xf32> to vector<8xf32>
    %58 = vector.shape_cast %57 : vector<8xf32> to vector<8x1xf32>
    %59 = tpu.reciprocal %58 {approx = true} : vector<8x1xf32> -> vector<8x1xf32>
    %60 = vector.broadcast %59 : vector<8x1xf32> to vector<8x8xf32>
    %61 = arith.mulf %56, %60 : vector<8x8xf32>
    %62 = arith.truncf %61 : vector<8x8xf32> to vector<8x8xbf16>
    %cst_37 = arith.constant dense<0.000000e+00> : vector<8x8xf32>
    %63 = tpu.matmul %62, %46, %cst_37 {dimension_numbers = #tpu.dot_dimension_numbers<[1], [0], [0], [1], [0, 0, 1, 1], [], []>} : vector<8x8xbf16>, vector<8x8xbf16>, vector<8x8xf32> -> vector<8x8xf32>
    %c0_38 = arith.constant 0 : index
    %c0_39 = arith.constant 0 : index
    %c0_40 = arith.constant 0 : index
    %c0_41 = arith.constant 0 : index
    %64 = vector.load %arg9[%c0_38, %c0_39, %c0_40, %c0_41] : memref<2x4x8x32xbf16, #tpu.memory_space<vmem>>, vector<1x1x8x32xbf16>
    %65 = vector.shape_cast %64 : vector<1x1x8x32xbf16> to vector<8x32xbf16>
    %66 = arith.truncf %63 : vector<8x8xf32> to vector<8x8xbf16>
    %cst_42 = arith.constant dense<0.000000e+00> : vector<8x32xf32>
    %67 = tpu.matmul %66, %65, %cst_42 {dimension_numbers = #tpu.dot_dimension_numbers<[1], [0], [0], [1], [0, 0, 1, 1], [], []>} : vector<8x8xbf16>, vector<8x32xbf16>, vector<8x32xf32> -> vector<8x32xf32>
    %68 = arith.addf %34, %67 : vector<8x32xf32>
    %c0_43 = arith.constant 0 : index
    %c1 = arith.constant 1 : index
    %c0_44 = arith.constant 0 : index
    %c0_45 = arith.constant 0 : index
    %69 = vector.load %arg6[%c0_43, %c1, %c0_44, %c0_45] : memref<2x4x32x8xbf16, #tpu.memory_space<vmem>>, vector<1x1x32x8xbf16>
    %70 = vector.shape_cast %69 : vector<1x1x32x8xbf16> to vector<32x8xbf16>
    %cst_46 = arith.constant dense<0.000000e+00> : vector<8x8xf32>
    %71 = tpu.matmul %33, %70, %cst_46 {dimension_numbers = #tpu.dot_dimension_numbers<[1], [0], [0], [1], [0, 0, 1, 1], [], []>} : vector<8x32xbf16>, vector<32x8xbf16>, vector<8x8xf32> -> vector<8x8xf32>
    %72 = arith.truncf %71 : vector<8x8xf32> to vector<8x8xbf16>
    %c0_47 = arith.constant 0 : index
    %c1_48 = arith.constant 1 : index
    %c0_49 = arith.constant 0 : index
    %c0_50 = arith.constant 0 : index
    %73 = vector.load %arg7[%c0_47, %c1_48, %c0_49, %c0_50] : memref<2x4x32x8xbf16, #tpu.memory_space<vmem>>, vector<1x1x32x8xbf16>
    %74 = vector.shape_cast %73 : vector<1x1x32x8xbf16> to vector<32x8xbf16>
    %cst_51 = arith.constant dense<0.000000e+00> : vector<8x8xf32>
    %75 = tpu.matmul %33, %74, %cst_51 {dimension_numbers = #tpu.dot_dimension_numbers<[1], [0], [0], [1], [0, 0, 1, 1], [], []>} : vector<8x32xbf16>, vector<32x8xbf16>, vector<8x8xf32> -> vector<8x8xf32>
    %76 = arith.truncf %75 : vector<8x8xf32> to vector<8x8xbf16>
    %c0_52 = arith.constant 0 : index
    %c1_53 = arith.constant 1 : index
    %c0_54 = arith.constant 0 : index
    %c0_55 = arith.constant 0 : index
    %77 = vector.load %arg8[%c0_52, %c1_53, %c0_54, %c0_55] : memref<2x4x32x8xbf16, #tpu.memory_space<vmem>>, vector<1x1x32x8xbf16>
    %78 = vector.shape_cast %77 : vector<1x1x32x8xbf16> to vector<32x8xbf16>
    %cst_56 = arith.constant dense<0.000000e+00> : vector<8x8xf32>
    %79 = tpu.matmul %33, %78, %cst_56 {dimension_numbers = #tpu.dot_dimension_numbers<[1], [0], [0], [1], [0, 0, 1, 1], [], []>} : vector<8x32xbf16>, vector<32x8xbf16>, vector<8x8xf32> -> vector<8x8xf32>
    %80 = arith.truncf %79 : vector<8x8xf32> to vector<8x8xbf16>
    %cst_57 = arith.constant dense<0.000000e+00> : vector<8x8xf32>
    %81 = tpu.matmul %72, %76, %cst_57 {dimension_numbers = #tpu.dot_dimension_numbers<[1], [1], [0], [0], [0, 0, 1, 0], [], []>} : vector<8x8xbf16>, vector<8x8xbf16>, vector<8x8xf32> -> vector<8x8xf32>
    %cst_58 = arith.constant 0.353553385 : f32
    %82 = vector.broadcast %cst_58 : f32 to vector<8x8xf32>
    %83 = arith.mulf %81, %82 : vector<8x8xf32>
    %84 = vector.broadcast %1 : vector<1x8xf32> to vector<8x8xf32>
    %85 = arith.addf %83, %84 : vector<8x8xf32>
    %cst_59 = arith.constant dense<0xFF800000> : vector<8xf32>
    %86 = vector.multi_reduction <maximumf>, %85, %cst_59 [1] : vector<8x8xf32> to vector<8xf32>
    %87 = vector.shape_cast %86 : vector<8xf32> to vector<8x1xf32>
    %88 = vector.broadcast %87 : vector<8x1xf32> to vector<8x8xf32>
    %89 = arith.subf %85, %88 : vector<8x8xf32>
    %90 = math.exp %89 : vector<8x8xf32>
    %cst_60 = arith.constant dense<0.000000e+00> : vector<8xf32>
    %91 = vector.multi_reduction <add>, %90, %cst_60 [1] : vector<8x8xf32> to vector<8xf32>
    %92 = vector.shape_cast %91 : vector<8xf32> to vector<8x1xf32>
    %93 = tpu.reciprocal %92 {approx = true} : vector<8x1xf32> -> vector<8x1xf32>
    %94 = vector.broadcast %93 : vector<8x1xf32> to vector<8x8xf32>
    %95 = arith.mulf %90, %94 : vector<8x8xf32>
    %96 = arith.truncf %95 : vector<8x8xf32> to vector<8x8xbf16>
    %cst_61 = arith.constant dense<0.000000e+00> : vector<8x8xf32>
    %97 = tpu.matmul %96, %80, %cst_61 {dimension_numbers = #tpu.dot_dimension_numbers<[1], [0], [0], [1], [0, 0, 1, 1], [], []>} : vector<8x8xbf16>, vector<8x8xbf16>, vector<8x8xf32> -> vector<8x8xf32>
    %c0_62 = arith.constant 0 : index
    %c1_63 = arith.constant 1 : index
    %c0_64 = arith.constant 0 : index
    %c0_65 = arith.constant 0 : index
    %98 = vector.load %arg9[%c0_62, %c1_63, %c0_64, %c0_65] : memref<2x4x8x32xbf16, #tpu.memory_space<vmem>>, vector<1x1x8x32xbf16>
    %99 = vector.shape_cast %98 : vector<1x1x8x32xbf16> to vector<8x32xbf16>
    %100 = arith.truncf %97 : vector<8x8xf32> to vector<8x8xbf16>
    %cst_66 = arith.constant dense<0.000000e+00> : vector<8x32xf32>
    %101 = tpu.matmul %100, %99, %cst_66 {dimension_numbers = #tpu.dot_dimension_numbers<[1], [0], [0], [1], [0, 0, 1, 1], [], []>} : vector<8x8xbf16>, vector<8x32xbf16>, vector<8x32xf32> -> vector<8x32xf32>
    %102 = arith.addf %68, %101 : vector<8x32xf32>
    %c0_67 = arith.constant 0 : index
    %c2 = arith.constant 2 : index
    %c0_68 = arith.constant 0 : index
    %c0_69 = arith.constant 0 : index
    %103 = vector.load %arg6[%c0_67, %c2, %c0_68, %c0_69] : memref<2x4x32x8xbf16, #tpu.memory_space<vmem>>, vector<1x1x32x8xbf16>
    %104 = vector.shape_cast %103 : vector<1x1x32x8xbf16> to vector<32x8xbf16>
    %cst_70 = arith.constant dense<0.000000e+00> : vector<8x8xf32>
    %105 = tpu.matmul %33, %104, %cst_70 {dimension_numbers = #tpu.dot_dimension_numbers<[1], [0], [0], [1], [0, 0, 1, 1], [], []>} : vector<8x32xbf16>, vector<32x8xbf16>, vector<8x8xf32> -> vector<8x8xf32>
    %106 = arith.truncf %105 : vector<8x8xf32> to vector<8x8xbf16>
    %c0_71 = arith.constant 0 : index
    %c2_72 = arith.constant 2 : index
    %c0_73 = arith.constant 0 : index
    %c0_74 = arith.constant 0 : index
    %107 = vector.load %arg7[%c0_71, %c2_72, %c0_73, %c0_74] : memref<2x4x32x8xbf16, #tpu.memory_space<vmem>>, vector<1x1x32x8xbf16>
    %108 = vector.shape_cast %107 : vector<1x1x32x8xbf16> to vector<32x8xbf16>
    %cst_75 = arith.constant dense<0.000000e+00> : vector<8x8xf32>
    %109 = tpu.matmul %33, %108, %cst_75 {dimension_numbers = #tpu.dot_dimension_numbers<[1], [0], [0], [1], [0, 0, 1, 1], [], []>} : vector<8x32xbf16>, vector<32x8xbf16>, vector<8x8xf32> -> vector<8x8xf32>
    %110 = arith.truncf %109 : vector<8x8xf32> to vector<8x8xbf16>
    %c0_76 = arith.constant 0 : index
    %c2_77 = arith.constant 2 : index
    %c0_78 = arith.constant 0 : index
    %c0_79 = arith.constant 0 : index
    %111 = vector.load %arg8[%c0_76, %c2_77, %c0_78, %c0_79] : memref<2x4x32x8xbf16, #tpu.memory_space<vmem>>, vector<1x1x32x8xbf16>
    %112 = vector.shape_cast %111 : vector<1x1x32x8xbf16> to vector<32x8xbf16>
    %cst_80 = arith.constant dense<0.000000e+00> : vector<8x8xf32>
    %113 = tpu.matmul %33, %112, %cst_80 {dimension_numbers = #tpu.dot_dimension_numbers<[1], [0], [0], [1], [0, 0, 1, 1], [], []>} : vector<8x32xbf16>, vector<32x8xbf16>, vector<8x8xf32> -> vector<8x8xf32>
    %114 = arith.truncf %113 : vector<8x8xf32> to vector<8x8xbf16>
    %cst_81 = arith.constant dense<0.000000e+00> : vector<8x8xf32>
    %115 = tpu.matmul %106, %110, %cst_81 {dimension_numbers = #tpu.dot_dimension_numbers<[1], [1], [0], [0], [0, 0, 1, 0], [], []>} : vector<8x8xbf16>, vector<8x8xbf16>, vector<8x8xf32> -> vector<8x8xf32>
    %cst_82 = arith.constant 0.353553385 : f32
    %116 = vector.broadcast %cst_82 : f32 to vector<8x8xf32>
    %117 = arith.mulf %115, %116 : vector<8x8xf32>
    %118 = vector.broadcast %1 : vector<1x8xf32> to vector<8x8xf32>
    %119 = arith.addf %117, %118 : vector<8x8xf32>
    %cst_83 = arith.constant dense<0xFF800000> : vector<8xf32>
    %120 = vector.multi_reduction <maximumf>, %119, %cst_83 [1] : vector<8x8xf32> to vector<8xf32>
    %121 = vector.shape_cast %120 : vector<8xf32> to vector<8x1xf32>
    %122 = vector.broadcast %121 : vector<8x1xf32> to vector<8x8xf32>
    %123 = arith.subf %119, %122 : vector<8x8xf32>
    %124 = math.exp %123 : vector<8x8xf32>
    %cst_84 = arith.constant dense<0.000000e+00> : vector<8xf32>
    %125 = vector.multi_reduction <add>, %124, %cst_84 [1] : vector<8x8xf32> to vector<8xf32>
    %126 = vector.shape_cast %125 : vector<8xf32> to vector<8x1xf32>
    %127 = tpu.reciprocal %126 {approx = true} : vector<8x1xf32> -> vector<8x1xf32>
    %128 = vector.broadcast %127 : vector<8x1xf32> to vector<8x8xf32>
    %129 = arith.mulf %124, %128 : vector<8x8xf32>
    %130 = arith.truncf %129 : vector<8x8xf32> to vector<8x8xbf16>
    %cst_85 = arith.constant dense<0.000000e+00> : vector<8x8xf32>
    %131 = tpu.matmul %130, %114, %cst_85 {dimension_numbers = #tpu.dot_dimension_numbers<[1], [0], [0], [1], [0, 0, 1, 1], [], []>} : vector<8x8xbf16>, vector<8x8xbf16>, vector<8x8xf32> -> vector<8x8xf32>
    %c0_86 = arith.constant 0 : index
    %c2_87 = arith.constant 2 : index
    %c0_88 = arith.constant 0 : index
    %c0_89 = arith.constant 0 : index
    %132 = vector.load %arg9[%c0_86, %c2_87, %c0_88, %c0_89] : memref<2x4x8x32xbf16, #tpu.memory_space<vmem>>, vector<1x1x8x32xbf16>
    %133 = vector.shape_cast %132 : vector<1x1x8x32xbf16> to vector<8x32xbf16>
    %134 = arith.truncf %131 : vector<8x8xf32> to vector<8x8xbf16>
    %cst_90 = arith.constant dense<0.000000e+00> : vector<8x32xf32>
    %135 = tpu.matmul %134, %133, %cst_90 {dimension_numbers = #tpu.dot_dimension_numbers<[1], [0], [0], [1], [0, 0, 1, 1], [], []>} : vector<8x8xbf16>, vector<8x32xbf16>, vector<8x32xf32> -> vector<8x32xf32>
    %136 = arith.addf %102, %135 : vector<8x32xf32>
    %c0_91 = arith.constant 0 : index
    %c3 = arith.constant 3 : index
    %c0_92 = arith.constant 0 : index
    %c0_93 = arith.constant 0 : index
    %137 = vector.load %arg6[%c0_91, %c3, %c0_92, %c0_93] : memref<2x4x32x8xbf16, #tpu.memory_space<vmem>>, vector<1x1x32x8xbf16>
    %138 = vector.shape_cast %137 : vector<1x1x32x8xbf16> to vector<32x8xbf16>
    %cst_94 = arith.constant dense<0.000000e+00> : vector<8x8xf32>
    %139 = tpu.matmul %33, %138, %cst_94 {dimension_numbers = #tpu.dot_dimension_numbers<[1], [0], [0], [1], [0, 0, 1, 1], [], []>} : vector<8x32xbf16>, vector<32x8xbf16>, vector<8x8xf32> -> vector<8x8xf32>
    %140 = arith.truncf %139 : vector<8x8xf32> to vector<8x8xbf16>
    %c0_95 = arith.constant 0 : index
    %c3_96 = arith.constant 3 : index
    %c0_97 = arith.constant 0 : index
    %c0_98 = arith.constant 0 : index
    %141 = vector.load %arg7[%c0_95, %c3_96, %c0_97, %c0_98] : memref<2x4x32x8xbf16, #tpu.memory_space<vmem>>, vector<1x1x32x8xbf16>
    %142 = vector.shape_cast %141 : vector<1x1x32x8xbf16> to vector<32x8xbf16>
    %cst_99 = arith.constant dense<0.000000e+00> : vector<8x8xf32>
    %143 = tpu.matmul %33, %142, %cst_99 {dimension_numbers = #tpu.dot_dimension_numbers<[1], [0], [0], [1], [0, 0, 1, 1], [], []>} : vector<8x32xbf16>, vector<32x8xbf16>, vector<8x8xf32> -> vector<8x8xf32>
    %144 = arith.truncf %143 : vector<8x8xf32> to vector<8x8xbf16>
    %c0_100 = arith.constant 0 : index
    %c3_101 = arith.constant 3 : index
    %c0_102 = arith.constant 0 : index
    %c0_103 = arith.constant 0 : index
    %145 = vector.load %arg8[%c0_100, %c3_101, %c0_102, %c0_103] : memref<2x4x32x8xbf16, #tpu.memory_space<vmem>>, vector<1x1x32x8xbf16>
    %146 = vector.shape_cast %145 : vector<1x1x32x8xbf16> to vector<32x8xbf16>
    %cst_104 = arith.constant dense<0.000000e+00> : vector<8x8xf32>
    %147 = tpu.matmul %33, %146, %cst_104 {dimension_numbers = #tpu.dot_dimension_numbers<[1], [0], [0], [1], [0, 0, 1, 1], [], []>} : vector<8x32xbf16>, vector<32x8xbf16>, vector<8x8xf32> -> vector<8x8xf32>
    %148 = arith.truncf %147 : vector<8x8xf32> to vector<8x8xbf16>
    %cst_105 = arith.constant dense<0.000000e+00> : vector<8x8xf32>
    %149 = tpu.matmul %140, %144, %cst_105 {dimension_numbers = #tpu.dot_dimension_numbers<[1], [1], [0], [0], [0, 0, 1, 0], [], []>} : vector<8x8xbf16>, vector<8x8xbf16>, vector<8x8xf32> -> vector<8x8xf32>
    %cst_106 = arith.constant 0.353553385 : f32
    %150 = vector.broadcast %cst_106 : f32 to vector<8x8xf32>
    %151 = arith.mulf %149, %150 : vector<8x8xf32>
    %152 = vector.broadcast %1 : vector<1x8xf32> to vector<8x8xf32>
    %153 = arith.addf %151, %152 : vector<8x8xf32>
    %cst_107 = arith.constant dense<0xFF800000> : vector<8xf32>
    %154 = vector.multi_reduction <maximumf>, %153, %cst_107 [1] : vector<8x8xf32> to vector<8xf32>
    %155 = vector.shape_cast %154 : vector<8xf32> to vector<8x1xf32>
    %156 = vector.broadcast %155 : vector<8x1xf32> to vector<8x8xf32>
    %157 = arith.subf %153, %156 : vector<8x8xf32>
    %158 = math.exp %157 : vector<8x8xf32>
    %cst_108 = arith.constant dense<0.000000e+00> : vector<8xf32>
    %159 = vector.multi_reduction <add>, %158, %cst_108 [1] : vector<8x8xf32> to vector<8xf32>
    %160 = vector.shape_cast %159 : vector<8xf32> to vector<8x1xf32>
    %161 = tpu.reciprocal %160 {approx = true} : vector<8x1xf32> -> vector<8x1xf32>
    %162 = vector.broadcast %161 : vector<8x1xf32> to vector<8x8xf32>
    %163 = arith.mulf %158, %162 : vector<8x8xf32>
    %164 = arith.truncf %163 : vector<8x8xf32> to vector<8x8xbf16>
    %cst_109 = arith.constant dense<0.000000e+00> : vector<8x8xf32>
    %165 = tpu.matmul %164, %148, %cst_109 {dimension_numbers = #tpu.dot_dimension_numbers<[1], [0], [0], [1], [0, 0, 1, 1], [], []>} : vector<8x8xbf16>, vector<8x8xbf16>, vector<8x8xf32> -> vector<8x8xf32>
    %c0_110 = arith.constant 0 : index
    %c3_111 = arith.constant 3 : index
    %c0_112 = arith.constant 0 : index
    %c0_113 = arith.constant 0 : index
    %166 = vector.load %arg9[%c0_110, %c3_111, %c0_112, %c0_113] : memref<2x4x8x32xbf16, #tpu.memory_space<vmem>>, vector<1x1x8x32xbf16>
    %167 = vector.shape_cast %166 : vector<1x1x8x32xbf16> to vector<8x32xbf16>
    %168 = arith.truncf %165 : vector<8x8xf32> to vector<8x8xbf16>
    %cst_114 = arith.constant dense<0.000000e+00> : vector<8x32xf32>
    %169 = tpu.matmul %168, %167, %cst_114 {dimension_numbers = #tpu.dot_dimension_numbers<[1], [0], [0], [1], [0, 0, 1, 1], [], []>} : vector<8x8xbf16>, vector<8x32xbf16>, vector<8x32xf32> -> vector<8x32xf32>
    %170 = arith.addf %136, %169 : vector<8x32xf32>
    %171 = arith.addf %18, %170 : vector<8x32xf32>
    %c0_115 = arith.constant 0 : index
    %c0_116 = arith.constant 0 : index
    %c0_117 = arith.constant 0 : index
    %172 = vector.load %arg10[%c0_115, %c0_116, %c0_117] : memref<2x1x32xf32, #tpu.memory_space<vmem>>, vector<1x1x32xf32>
    %173 = vector.shape_cast %172 : vector<1x1x32xf32> to vector<1x32xf32>
    %174 = arith.mulf %171, %171 : vector<8x32xf32>
    %cst_118 = arith.constant dense<0.000000e+00> : vector<8xf32>
    %175 = vector.multi_reduction <add>, %174, %cst_118 [1] : vector<8x32xf32> to vector<8xf32>
    %176 = vector.shape_cast %175 : vector<8xf32> to vector<8x1xf32>
    %cst_119 = arith.constant 3.200000e+01 : f32
    %177 = vector.broadcast %cst_119 : f32 to vector<8x1xf32>
    %178 = arith.divf %176, %177 : vector<8x1xf32>
    %cst_120 = arith.constant 9.99999997E-7 : f32
    %179 = vector.broadcast %cst_120 : f32 to vector<8x1xf32>
    %180 = arith.addf %178, %179 : vector<8x1xf32>
    %181 = math.rsqrt %180 : vector<8x1xf32>
    %182 = vector.broadcast %181 : vector<8x1xf32> to vector<8x32xf32>
    %183 = arith.mulf %171, %182 : vector<8x32xf32>
    %184 = vector.broadcast %173 : vector<1x32xf32> to vector<8x32xf32>
    %185 = arith.mulf %183, %184 : vector<8x32xf32>
    %c0_121 = arith.constant 0 : index
    %c0_122 = arith.constant 0 : index
    %c0_123 = arith.constant 0 : index
    %186 = vector.load %arg11[%c0_121, %c0_122, %c0_123] : memref<2x32x256xbf16, #tpu.memory_space<vmem>>, vector<1x32x256xbf16>
    %187 = vector.shape_cast %186 : vector<1x32x256xbf16> to vector<32x256xbf16>
    %188 = arith.truncf %185 : vector<8x32xf32> to vector<8x32xbf16>
    %cst_124 = arith.constant dense<0.000000e+00> : vector<8x256xf32>
    %189 = tpu.matmul %188, %187, %cst_124 {dimension_numbers = #tpu.dot_dimension_numbers<[1], [0], [0], [1], [0, 0, 1, 1], [], []>} : vector<8x32xbf16>, vector<32x256xbf16>, vector<8x256xf32> -> vector<8x256xf32>
    %190 = vector.extract_strided_slice %189 {offsets = [0, 0], sizes = [8, 128], strides = [1, 1]} : vector<8x256xf32> to vector<8x128xf32>
    %191 = vector.extract_strided_slice %189 {offsets = [0, 128], sizes = [8, 128], strides = [1, 1]} : vector<8x256xf32> to vector<8x128xf32>
    %192 = arith.negf %191 : vector<8x128xf32>
    %193 = math.exp %192 : vector<8x128xf32>
    %cst_125 = arith.constant 1.000000e+00 : f32
    %194 = vector.broadcast %cst_125 : f32 to vector<8x128xf32>
    %195 = arith.addf %194, %193 : vector<8x128xf32>
    %196 = arith.divf %194, %195 : vector<8x128xf32>
    %197 = arith.mulf %191, %196 : vector<8x128xf32>
    %198 = arith.mulf %190, %197 : vector<8x128xf32>
    %c0_126 = arith.constant 0 : index
    %c0_127 = arith.constant 0 : index
    %c0_128 = arith.constant 0 : index
    %199 = vector.load %arg12[%c0_126, %c0_127, %c0_128] : memref<2x128x32xbf16, #tpu.memory_space<vmem>>, vector<1x128x32xbf16>
    %200 = vector.shape_cast %199 : vector<1x128x32xbf16> to vector<128x32xbf16>
    %201 = arith.truncf %198 : vector<8x128xf32> to vector<8x128xbf16>
    %cst_129 = arith.constant dense<0.000000e+00> : vector<8x32xf32>
    %202 = tpu.matmul %201, %200, %cst_129 {dimension_numbers = #tpu.dot_dimension_numbers<[1], [0], [0], [1], [0, 0, 1, 1], [], []>} : vector<8x128xbf16>, vector<128x32xbf16>, vector<8x32xf32> -> vector<8x32xf32>
    %203 = arith.addf %171, %202 : vector<8x32xf32>
    %c1_130 = arith.constant 1 : index
    %c0_131 = arith.constant 0 : index
    %c0_132 = arith.constant 0 : index
    %204 = vector.load %arg5[%c1_130, %c0_131, %c0_132] : memref<2x1x32xf32, #tpu.memory_space<vmem>>, vector<1x1x32xf32>
    %205 = vector.shape_cast %204 : vector<1x1x32xf32> to vector<1x32xf32>
    %206 = arith.mulf %203, %203 : vector<8x32xf32>
    %cst_133 = arith.constant dense<0.000000e+00> : vector<8xf32>
    %207 = vector.multi_reduction <add>, %206, %cst_133 [1] : vector<8x32xf32> to vector<8xf32>
    %208 = vector.shape_cast %207 : vector<8xf32> to vector<8x1xf32>
    %cst_134 = arith.constant 3.200000e+01 : f32
    %209 = vector.broadcast %cst_134 : f32 to vector<8x1xf32>
    %210 = arith.divf %208, %209 : vector<8x1xf32>
    %cst_135 = arith.constant 9.99999997E-7 : f32
    %211 = vector.broadcast %cst_135 : f32 to vector<8x1xf32>
    %212 = arith.addf %210, %211 : vector<8x1xf32>
    %213 = math.rsqrt %212 : vector<8x1xf32>
    %214 = vector.broadcast %213 : vector<8x1xf32> to vector<8x32xf32>
    %215 = arith.mulf %203, %214 : vector<8x32xf32>
    %216 = vector.broadcast %205 : vector<1x32xf32> to vector<8x32xf32>
    %217 = arith.mulf %215, %216 : vector<8x32xf32>
    %218 = arith.truncf %217 : vector<8x32xf32> to vector<8x32xbf16>
    %cst_136 = arith.constant 0.000000e+00 : f32
    %219 = vector.broadcast %cst_136 : f32 to vector<8x32xf32>
    %c1_137 = arith.constant 1 : index
    %c0_138 = arith.constant 0 : index
    %c0_139 = arith.constant 0 : index
    %c0_140 = arith.constant 0 : index
    %220 = vector.load %arg6[%c1_137, %c0_138, %c0_139, %c0_140] : memref<2x4x32x8xbf16, #tpu.memory_space<vmem>>, vector<1x1x32x8xbf16>
    %221 = vector.shape_cast %220 : vector<1x1x32x8xbf16> to vector<32x8xbf16>
    %cst_141 = arith.constant dense<0.000000e+00> : vector<8x8xf32>
    %222 = tpu.matmul %218, %221, %cst_141 {dimension_numbers = #tpu.dot_dimension_numbers<[1], [0], [0], [1], [0, 0, 1, 1], [], []>} : vector<8x32xbf16>, vector<32x8xbf16>, vector<8x8xf32> -> vector<8x8xf32>
    %223 = arith.truncf %222 : vector<8x8xf32> to vector<8x8xbf16>
    %c1_142 = arith.constant 1 : index
    %c0_143 = arith.constant 0 : index
    %c0_144 = arith.constant 0 : index
    %c0_145 = arith.constant 0 : index
    %224 = vector.load %arg7[%c1_142, %c0_143, %c0_144, %c0_145] : memref<2x4x32x8xbf16, #tpu.memory_space<vmem>>, vector<1x1x32x8xbf16>
    %225 = vector.shape_cast %224 : vector<1x1x32x8xbf16> to vector<32x8xbf16>
    %cst_146 = arith.constant dense<0.000000e+00> : vector<8x8xf32>
    %226 = tpu.matmul %218, %225, %cst_146 {dimension_numbers = #tpu.dot_dimension_numbers<[1], [0], [0], [1], [0, 0, 1, 1], [], []>} : vector<8x32xbf16>, vector<32x8xbf16>, vector<8x8xf32> -> vector<8x8xf32>
    %227 = arith.truncf %226 : vector<8x8xf32> to vector<8x8xbf16>
    %c1_147 = arith.constant 1 : index
    %c0_148 = arith.constant 0 : index
    %c0_149 = arith.constant 0 : index
    %c0_150 = arith.constant 0 : index
    %228 = vector.load %arg8[%c1_147, %c0_148, %c0_149, %c0_150] : memref<2x4x32x8xbf16, #tpu.memory_space<vmem>>, vector<1x1x32x8xbf16>
    %229 = vector.shape_cast %228 : vector<1x1x32x8xbf16> to vector<32x8xbf16>
    %cst_151 = arith.constant dense<0.000000e+00> : vector<8x8xf32>
    %230 = tpu.matmul %218, %229, %cst_151 {dimension_numbers = #tpu.dot_dimension_numbers<[1], [0], [0], [1], [0, 0, 1, 1], [], []>} : vector<8x32xbf16>, vector<32x8xbf16>, vector<8x8xf32> -> vector<8x8xf32>
    %231 = arith.truncf %230 : vector<8x8xf32> to vector<8x8xbf16>
    %cst_152 = arith.constant dense<0.000000e+00> : vector<8x8xf32>
    %232 = tpu.matmul %223, %227, %cst_152 {dimension_numbers = #tpu.dot_dimension_numbers<[1], [1], [0], [0], [0, 0, 1, 0], [], []>} : vector<8x8xbf16>, vector<8x8xbf16>, vector<8x8xf32> -> vector<8x8xf32>
    %cst_153 = arith.constant 0.353553385 : f32
    %233 = vector.broadcast %cst_153 : f32 to vector<8x8xf32>
    %234 = arith.mulf %232, %233 : vector<8x8xf32>
    %235 = vector.broadcast %1 : vector<1x8xf32> to vector<8x8xf32>
    %236 = arith.addf %234, %235 : vector<8x8xf32>
    %cst_154 = arith.constant dense<0xFF800000> : vector<8xf32>
    %237 = vector.multi_reduction <maximumf>, %236, %cst_154 [1] : vector<8x8xf32> to vector<8xf32>
    %238 = vector.shape_cast %237 : vector<8xf32> to vector<8x1xf32>
    %239 = vector.broadcast %238 : vector<8x1xf32> to vector<8x8xf32>
    %240 = arith.subf %236, %239 : vector<8x8xf32>
    %241 = math.exp %240 : vector<8x8xf32>
    %cst_155 = arith.constant dense<0.000000e+00> : vector<8xf32>
    %242 = vector.multi_reduction <add>, %241, %cst_155 [1] : vector<8x8xf32> to vector<8xf32>
    %243 = vector.shape_cast %242 : vector<8xf32> to vector<8x1xf32>
    %244 = tpu.reciprocal %243 {approx = true} : vector<8x1xf32> -> vector<8x1xf32>
    %245 = vector.broadcast %244 : vector<8x1xf32> to vector<8x8xf32>
    %246 = arith.mulf %241, %245 : vector<8x8xf32>
    %247 = arith.truncf %246 : vector<8x8xf32> to vector<8x8xbf16>
    %cst_156 = arith.constant dense<0.000000e+00> : vector<8x8xf32>
    %248 = tpu.matmul %247, %231, %cst_156 {dimension_numbers = #tpu.dot_dimension_numbers<[1], [0], [0], [1], [0, 0, 1, 1], [], []>} : vector<8x8xbf16>, vector<8x8xbf16>, vector<8x8xf32> -> vector<8x8xf32>
    %c1_157 = arith.constant 1 : index
    %c0_158 = arith.constant 0 : index
    %c0_159 = arith.constant 0 : index
    %c0_160 = arith.constant 0 : index
    %249 = vector.load %arg9[%c1_157, %c0_158, %c0_159, %c0_160] : memref<2x4x8x32xbf16, #tpu.memory_space<vmem>>, vector<1x1x8x32xbf16>
    %250 = vector.shape_cast %249 : vector<1x1x8x32xbf16> to vector<8x32xbf16>
    %251 = arith.truncf %248 : vector<8x8xf32> to vector<8x8xbf16>
    %cst_161 = arith.constant dense<0.000000e+00> : vector<8x32xf32>
    %252 = tpu.matmul %251, %250, %cst_161 {dimension_numbers = #tpu.dot_dimension_numbers<[1], [0], [0], [1], [0, 0, 1, 1], [], []>} : vector<8x8xbf16>, vector<8x32xbf16>, vector<8x32xf32> -> vector<8x32xf32>
    %253 = arith.addf %219, %252 : vector<8x32xf32>
    %c1_162 = arith.constant 1 : index
    %c1_163 = arith.constant 1 : index
    %c0_164 = arith.constant 0 : index
    %c0_165 = arith.constant 0 : index
    %254 = vector.load %arg6[%c1_162, %c1_163, %c0_164, %c0_165] : memref<2x4x32x8xbf16, #tpu.memory_space<vmem>>, vector<1x1x32x8xbf16>
    %255 = vector.shape_cast %254 : vector<1x1x32x8xbf16> to vector<32x8xbf16>
    %cst_166 = arith.constant dense<0.000000e+00> : vector<8x8xf32>
    %256 = tpu.matmul %218, %255, %cst_166 {dimension_numbers = #tpu.dot_dimension_numbers<[1], [0], [0], [1], [0, 0, 1, 1], [], []>} : vector<8x32xbf16>, vector<32x8xbf16>, vector<8x8xf32> -> vector<8x8xf32>
    %257 = arith.truncf %256 : vector<8x8xf32> to vector<8x8xbf16>
    %c1_167 = arith.constant 1 : index
    %c1_168 = arith.constant 1 : index
    %c0_169 = arith.constant 0 : index
    %c0_170 = arith.constant 0 : index
    %258 = vector.load %arg7[%c1_167, %c1_168, %c0_169, %c0_170] : memref<2x4x32x8xbf16, #tpu.memory_space<vmem>>, vector<1x1x32x8xbf16>
    %259 = vector.shape_cast %258 : vector<1x1x32x8xbf16> to vector<32x8xbf16>
    %cst_171 = arith.constant dense<0.000000e+00> : vector<8x8xf32>
    %260 = tpu.matmul %218, %259, %cst_171 {dimension_numbers = #tpu.dot_dimension_numbers<[1], [0], [0], [1], [0, 0, 1, 1], [], []>} : vector<8x32xbf16>, vector<32x8xbf16>, vector<8x8xf32> -> vector<8x8xf32>
    %261 = arith.truncf %260 : vector<8x8xf32> to vector<8x8xbf16>
    %c1_172 = arith.constant 1 : index
    %c1_173 = arith.constant 1 : index
    %c0_174 = arith.constant 0 : index
    %c0_175 = arith.constant 0 : index
    %262 = vector.load %arg8[%c1_172, %c1_173, %c0_174, %c0_175] : memref<2x4x32x8xbf16, #tpu.memory_space<vmem>>, vector<1x1x32x8xbf16>
    %263 = vector.shape_cast %262 : vector<1x1x32x8xbf16> to vector<32x8xbf16>
    %cst_176 = arith.constant dense<0.000000e+00> : vector<8x8xf32>
    %264 = tpu.matmul %218, %263, %cst_176 {dimension_numbers = #tpu.dot_dimension_numbers<[1], [0], [0], [1], [0, 0, 1, 1], [], []>} : vector<8x32xbf16>, vector<32x8xbf16>, vector<8x8xf32> -> vector<8x8xf32>
    %265 = arith.truncf %264 : vector<8x8xf32> to vector<8x8xbf16>
    %cst_177 = arith.constant dense<0.000000e+00> : vector<8x8xf32>
    %266 = tpu.matmul %257, %261, %cst_177 {dimension_numbers = #tpu.dot_dimension_numbers<[1], [1], [0], [0], [0, 0, 1, 0], [], []>} : vector<8x8xbf16>, vector<8x8xbf16>, vector<8x8xf32> -> vector<8x8xf32>
    %cst_178 = arith.constant 0.353553385 : f32
    %267 = vector.broadcast %cst_178 : f32 to vector<8x8xf32>
    %268 = arith.mulf %266, %267 : vector<8x8xf32>
    %269 = vector.broadcast %1 : vector<1x8xf32> to vector<8x8xf32>
    %270 = arith.addf %268, %269 : vector<8x8xf32>
    %cst_179 = arith.constant dense<0xFF800000> : vector<8xf32>
    %271 = vector.multi_reduction <maximumf>, %270, %cst_179 [1] : vector<8x8xf32> to vector<8xf32>
    %272 = vector.shape_cast %271 : vector<8xf32> to vector<8x1xf32>
    %273 = vector.broadcast %272 : vector<8x1xf32> to vector<8x8xf32>
    %274 = arith.subf %270, %273 : vector<8x8xf32>
    %275 = math.exp %274 : vector<8x8xf32>
    %cst_180 = arith.constant dense<0.000000e+00> : vector<8xf32>
    %276 = vector.multi_reduction <add>, %275, %cst_180 [1] : vector<8x8xf32> to vector<8xf32>
    %277 = vector.shape_cast %276 : vector<8xf32> to vector<8x1xf32>
    %278 = tpu.reciprocal %277 {approx = true} : vector<8x1xf32> -> vector<8x1xf32>
    %279 = vector.broadcast %278 : vector<8x1xf32> to vector<8x8xf32>
    %280 = arith.mulf %275, %279 : vector<8x8xf32>
    %281 = arith.truncf %280 : vector<8x8xf32> to vector<8x8xbf16>
    %cst_181 = arith.constant dense<0.000000e+00> : vector<8x8xf32>
    %282 = tpu.matmul %281, %265, %cst_181 {dimension_numbers = #tpu.dot_dimension_numbers<[1], [0], [0], [1], [0, 0, 1, 1], [], []>} : vector<8x8xbf16>, vector<8x8xbf16>, vector<8x8xf32> -> vector<8x8xf32>
    %c1_182 = arith.constant 1 : index
    %c1_183 = arith.constant 1 : index
    %c0_184 = arith.constant 0 : index
    %c0_185 = arith.constant 0 : index
    %283 = vector.load %arg9[%c1_182, %c1_183, %c0_184, %c0_185] : memref<2x4x8x32xbf16, #tpu.memory_space<vmem>>, vector<1x1x8x32xbf16>
    %284 = vector.shape_cast %283 : vector<1x1x8x32xbf16> to vector<8x32xbf16>
    %285 = arith.truncf %282 : vector<8x8xf32> to vector<8x8xbf16>
    %cst_186 = arith.constant dense<0.000000e+00> : vector<8x32xf32>
    %286 = tpu.matmul %285, %284, %cst_186 {dimension_numbers = #tpu.dot_dimension_numbers<[1], [0], [0], [1], [0, 0, 1, 1], [], []>} : vector<8x8xbf16>, vector<8x32xbf16>, vector<8x32xf32> -> vector<8x32xf32>
    %287 = arith.addf %253, %286 : vector<8x32xf32>
    %c1_187 = arith.constant 1 : index
    %c2_188 = arith.constant 2 : index
    %c0_189 = arith.constant 0 : index
    %c0_190 = arith.constant 0 : index
    %288 = vector.load %arg6[%c1_187, %c2_188, %c0_189, %c0_190] : memref<2x4x32x8xbf16, #tpu.memory_space<vmem>>, vector<1x1x32x8xbf16>
    %289 = vector.shape_cast %288 : vector<1x1x32x8xbf16> to vector<32x8xbf16>
    %cst_191 = arith.constant dense<0.000000e+00> : vector<8x8xf32>
    %290 = tpu.matmul %218, %289, %cst_191 {dimension_numbers = #tpu.dot_dimension_numbers<[1], [0], [0], [1], [0, 0, 1, 1], [], []>} : vector<8x32xbf16>, vector<32x8xbf16>, vector<8x8xf32> -> vector<8x8xf32>
    %291 = arith.truncf %290 : vector<8x8xf32> to vector<8x8xbf16>
    %c1_192 = arith.constant 1 : index
    %c2_193 = arith.constant 2 : index
    %c0_194 = arith.constant 0 : index
    %c0_195 = arith.constant 0 : index
    %292 = vector.load %arg7[%c1_192, %c2_193, %c0_194, %c0_195] : memref<2x4x32x8xbf16, #tpu.memory_space<vmem>>, vector<1x1x32x8xbf16>
    %293 = vector.shape_cast %292 : vector<1x1x32x8xbf16> to vector<32x8xbf16>
    %cst_196 = arith.constant dense<0.000000e+00> : vector<8x8xf32>
    %294 = tpu.matmul %218, %293, %cst_196 {dimension_numbers = #tpu.dot_dimension_numbers<[1], [0], [0], [1], [0, 0, 1, 1], [], []>} : vector<8x32xbf16>, vector<32x8xbf16>, vector<8x8xf32> -> vector<8x8xf32>
    %295 = arith.truncf %294 : vector<8x8xf32> to vector<8x8xbf16>
    %c1_197 = arith.constant 1 : index
    %c2_198 = arith.constant 2 : index
    %c0_199 = arith.constant 0 : index
    %c0_200 = arith.constant 0 : index
    %296 = vector.load %arg8[%c1_197, %c2_198, %c0_199, %c0_200] : memref<2x4x32x8xbf16, #tpu.memory_space<vmem>>, vector<1x1x32x8xbf16>
    %297 = vector.shape_cast %296 : vector<1x1x32x8xbf16> to vector<32x8xbf16>
    %cst_201 = arith.constant dense<0.000000e+00> : vector<8x8xf32>
    %298 = tpu.matmul %218, %297, %cst_201 {dimension_numbers = #tpu.dot_dimension_numbers<[1], [0], [0], [1], [0, 0, 1, 1], [], []>} : vector<8x32xbf16>, vector<32x8xbf16>, vector<8x8xf32> -> vector<8x8xf32>
    %299 = arith.truncf %298 : vector<8x8xf32> to vector<8x8xbf16>
    %cst_202 = arith.constant dense<0.000000e+00> : vector<8x8xf32>
    %300 = tpu.matmul %291, %295, %cst_202 {dimension_numbers = #tpu.dot_dimension_numbers<[1], [1], [0], [0], [0, 0, 1, 0], [], []>} : vector<8x8xbf16>, vector<8x8xbf16>, vector<8x8xf32> -> vector<8x8xf32>
    %cst_203 = arith.constant 0.353553385 : f32
    %301 = vector.broadcast %cst_203 : f32 to vector<8x8xf32>
    %302 = arith.mulf %300, %301 : vector<8x8xf32>
    %303 = vector.broadcast %1 : vector<1x8xf32> to vector<8x8xf32>
    %304 = arith.addf %302, %303 : vector<8x8xf32>
    %cst_204 = arith.constant dense<0xFF800000> : vector<8xf32>
    %305 = vector.multi_reduction <maximumf>, %304, %cst_204 [1] : vector<8x8xf32> to vector<8xf32>
    %306 = vector.shape_cast %305 : vector<8xf32> to vector<8x1xf32>
    %307 = vector.broadcast %306 : vector<8x1xf32> to vector<8x8xf32>
    %308 = arith.subf %304, %307 : vector<8x8xf32>
    %309 = math.exp %308 : vector<8x8xf32>
    %cst_205 = arith.constant dense<0.000000e+00> : vector<8xf32>
    %310 = vector.multi_reduction <add>, %309, %cst_205 [1] : vector<8x8xf32> to vector<8xf32>
    %311 = vector.shape_cast %310 : vector<8xf32> to vector<8x1xf32>
    %312 = tpu.reciprocal %311 {approx = true} : vector<8x1xf32> -> vector<8x1xf32>
    %313 = vector.broadcast %312 : vector<8x1xf32> to vector<8x8xf32>
    %314 = arith.mulf %309, %313 : vector<8x8xf32>
    %315 = arith.truncf %314 : vector<8x8xf32> to vector<8x8xbf16>
    %cst_206 = arith.constant dense<0.000000e+00> : vector<8x8xf32>
    %316 = tpu.matmul %315, %299, %cst_206 {dimension_numbers = #tpu.dot_dimension_numbers<[1], [0], [0], [1], [0, 0, 1, 1], [], []>} : vector<8x8xbf16>, vector<8x8xbf16>, vector<8x8xf32> -> vector<8x8xf32>
    %c1_207 = arith.constant 1 : index
    %c2_208 = arith.constant 2 : index
    %c0_209 = arith.constant 0 : index
    %c0_210 = arith.constant 0 : index
    %317 = vector.load %arg9[%c1_207, %c2_208, %c0_209, %c0_210] : memref<2x4x8x32xbf16, #tpu.memory_space<vmem>>, vector<1x1x8x32xbf16>
    %318 = vector.shape_cast %317 : vector<1x1x8x32xbf16> to vector<8x32xbf16>
    %319 = arith.truncf %316 : vector<8x8xf32> to vector<8x8xbf16>
    %cst_211 = arith.constant dense<0.000000e+00> : vector<8x32xf32>
    %320 = tpu.matmul %319, %318, %cst_211 {dimension_numbers = #tpu.dot_dimension_numbers<[1], [0], [0], [1], [0, 0, 1, 1], [], []>} : vector<8x8xbf16>, vector<8x32xbf16>, vector<8x32xf32> -> vector<8x32xf32>
    %321 = arith.addf %287, %320 : vector<8x32xf32>
    %c1_212 = arith.constant 1 : index
    %c3_213 = arith.constant 3 : index
    %c0_214 = arith.constant 0 : index
    %c0_215 = arith.constant 0 : index
    %322 = vector.load %arg6[%c1_212, %c3_213, %c0_214, %c0_215] : memref<2x4x32x8xbf16, #tpu.memory_space<vmem>>, vector<1x1x32x8xbf16>
    %323 = vector.shape_cast %322 : vector<1x1x32x8xbf16> to vector<32x8xbf16>
    %cst_216 = arith.constant dense<0.000000e+00> : vector<8x8xf32>
    %324 = tpu.matmul %218, %323, %cst_216 {dimension_numbers = #tpu.dot_dimension_numbers<[1], [0], [0], [1], [0, 0, 1, 1], [], []>} : vector<8x32xbf16>, vector<32x8xbf16>, vector<8x8xf32> -> vector<8x8xf32>
    %325 = arith.truncf %324 : vector<8x8xf32> to vector<8x8xbf16>
    %c1_217 = arith.constant 1 : index
    %c3_218 = arith.constant 3 : index
    %c0_219 = arith.constant 0 : index
    %c0_220 = arith.constant 0 : index
    %326 = vector.load %arg7[%c1_217, %c3_218, %c0_219, %c0_220] : memref<2x4x32x8xbf16, #tpu.memory_space<vmem>>, vector<1x1x32x8xbf16>
    %327 = vector.shape_cast %326 : vector<1x1x32x8xbf16> to vector<32x8xbf16>
    %cst_221 = arith.constant dense<0.000000e+00> : vector<8x8xf32>
    %328 = tpu.matmul %218, %327, %cst_221 {dimension_numbers = #tpu.dot_dimension_numbers<[1], [0], [0], [1], [0, 0, 1, 1], [], []>} : vector<8x32xbf16>, vector<32x8xbf16>, vector<8x8xf32> -> vector<8x8xf32>
    %329 = arith.truncf %328 : vector<8x8xf32> to vector<8x8xbf16>
    %c1_222 = arith.constant 1 : index
    %c3_223 = arith.constant 3 : index
    %c0_224 = arith.constant 0 : index
    %c0_225 = arith.constant 0 : index
    %330 = vector.load %arg8[%c1_222, %c3_223, %c0_224, %c0_225] : memref<2x4x32x8xbf16, #tpu.memory_space<vmem>>, vector<1x1x32x8xbf16>
    %331 = vector.shape_cast %330 : vector<1x1x32x8xbf16> to vector<32x8xbf16>
    %cst_226 = arith.constant dense<0.000000e+00> : vector<8x8xf32>
    %332 = tpu.matmul %218, %331, %cst_226 {dimension_numbers = #tpu.dot_dimension_numbers<[1], [0], [0], [1], [0, 0, 1, 1], [], []>} : vector<8x32xbf16>, vector<32x8xbf16>, vector<8x8xf32> -> vector<8x8xf32>
    %333 = arith.truncf %332 : vector<8x8xf32> to vector<8x8xbf16>
    %cst_227 = arith.constant dense<0.000000e+00> : vector<8x8xf32>
    %334 = tpu.matmul %325, %329, %cst_227 {dimension_numbers = #tpu.dot_dimension_numbers<[1], [1], [0], [0], [0, 0, 1, 0], [], []>} : vector<8x8xbf16>, vector<8x8xbf16>, vector<8x8xf32> -> vector<8x8xf32>
    %cst_228 = arith.constant 0.353553385 : f32
    %335 = vector.broadcast %cst_228 : f32 to vector<8x8xf32>
    %336 = arith.mulf %334, %335 : vector<8x8xf32>
    %337 = vector.broadcast %1 : vector<1x8xf32> to vector<8x8xf32>
    %338 = arith.addf %336, %337 : vector<8x8xf32>
    %cst_229 = arith.constant dense<0xFF800000> : vector<8xf32>
    %339 = vector.multi_reduction <maximumf>, %338, %cst_229 [1] : vector<8x8xf32> to vector<8xf32>
    %340 = vector.shape_cast %339 : vector<8xf32> to vector<8x1xf32>
    %341 = vector.broadcast %340 : vector<8x1xf32> to vector<8x8xf32>
    %342 = arith.subf %338, %341 : vector<8x8xf32>
    %343 = math.exp %342 : vector<8x8xf32>
    %cst_230 = arith.constant dense<0.000000e+00> : vector<8xf32>
    %344 = vector.multi_reduction <add>, %343, %cst_230 [1] : vector<8x8xf32> to vector<8xf32>
    %345 = vector.shape_cast %344 : vector<8xf32> to vector<8x1xf32>
    %346 = tpu.reciprocal %345 {approx = true} : vector<8x1xf32> -> vector<8x1xf32>
    %347 = vector.broadcast %346 : vector<8x1xf32> to vector<8x8xf32>
    %348 = arith.mulf %343, %347 : vector<8x8xf32>
    %349 = arith.truncf %348 : vector<8x8xf32> to vector<8x8xbf16>
    %cst_231 = arith.constant dense<0.000000e+00> : vector<8x8xf32>
    %350 = tpu.matmul %349, %333, %cst_231 {dimension_numbers = #tpu.dot_dimension_numbers<[1], [0], [0], [1], [0, 0, 1, 1], [], []>} : vector<8x8xbf16>, vector<8x8xbf16>, vector<8x8xf32> -> vector<8x8xf32>
    %c1_232 = arith.constant 1 : index
    %c3_233 = arith.constant 3 : index
    %c0_234 = arith.constant 0 : index
    %c0_235 = arith.constant 0 : index
    %351 = vector.load %arg9[%c1_232, %c3_233, %c0_234, %c0_235] : memref<2x4x8x32xbf16, #tpu.memory_space<vmem>>, vector<1x1x8x32xbf16>
    %352 = vector.shape_cast %351 : vector<1x1x8x32xbf16> to vector<8x32xbf16>
    %353 = arith.truncf %350 : vector<8x8xf32> to vector<8x8xbf16>
    %cst_236 = arith.constant dense<0.000000e+00> : vector<8x32xf32>
    %354 = tpu.matmul %353, %352, %cst_236 {dimension_numbers = #tpu.dot_dimension_numbers<[1], [0], [0], [1], [0, 0, 1, 1], [], []>} : vector<8x8xbf16>, vector<8x32xbf16>, vector<8x32xf32> -> vector<8x32xf32>
    %355 = arith.addf %321, %354 : vector<8x32xf32>
    %356 = arith.addf %203, %355 : vector<8x32xf32>
    %c1_237 = arith.constant 1 : index
    %c0_238 = arith.constant 0 : index
    %c0_239 = arith.constant 0 : index
    %357 = vector.load %arg10[%c1_237, %c0_238, %c0_239] : memref<2x1x32xf32, #tpu.memory_space<vmem>>, vector<1x1x32xf32>
    %358 = vector.shape_cast %357 : vector<1x1x32xf32> to vector<1x32xf32>
    %359 = arith.mulf %356, %356 : vector<8x32xf32>
    %cst_240 = arith.constant dense<0.000000e+00> : vector<8xf32>
    %360 = vector.multi_reduction <add>, %359, %cst_240 [1] : vector<8x32xf32> to vector<8xf32>
    %361 = vector.shape_cast %360 : vector<8xf32> to vector<8x1xf32>
    %cst_241 = arith.constant 3.200000e+01 : f32
    %362 = vector.broadcast %cst_241 : f32 to vector<8x1xf32>
    %363 = arith.divf %361, %362 : vector<8x1xf32>
    %cst_242 = arith.constant 9.99999997E-7 : f32
    %364 = vector.broadcast %cst_242 : f32 to vector<8x1xf32>
    %365 = arith.addf %363, %364 : vector<8x1xf32>
    %366 = math.rsqrt %365 : vector<8x1xf32>
    %367 = vector.broadcast %366 : vector<8x1xf32> to vector<8x32xf32>
    %368 = arith.mulf %356, %367 : vector<8x32xf32>
    %369 = vector.broadcast %358 : vector<1x32xf32> to vector<8x32xf32>
    %370 = arith.mulf %368, %369 : vector<8x32xf32>
    %c1_243 = arith.constant 1 : index
    %c0_244 = arith.constant 0 : index
    %c0_245 = arith.constant 0 : index
    %371 = vector.load %arg11[%c1_243, %c0_244, %c0_245] : memref<2x32x256xbf16, #tpu.memory_space<vmem>>, vector<1x32x256xbf16>
    %372 = vector.shape_cast %371 : vector<1x32x256xbf16> to vector<32x256xbf16>
    %373 = arith.truncf %370 : vector<8x32xf32> to vector<8x32xbf16>
    %cst_246 = arith.constant dense<0.000000e+00> : vector<8x256xf32>
    %374 = tpu.matmul %373, %372, %cst_246 {dimension_numbers = #tpu.dot_dimension_numbers<[1], [0], [0], [1], [0, 0, 1, 1], [], []>} : vector<8x32xbf16>, vector<32x256xbf16>, vector<8x256xf32> -> vector<8x256xf32>
    %375 = vector.extract_strided_slice %374 {offsets = [0, 0], sizes = [8, 128], strides = [1, 1]} : vector<8x256xf32> to vector<8x128xf32>
    %376 = vector.extract_strided_slice %374 {offsets = [0, 128], sizes = [8, 128], strides = [1, 1]} : vector<8x256xf32> to vector<8x128xf32>
    %377 = arith.negf %376 : vector<8x128xf32>
    %378 = math.exp %377 : vector<8x128xf32>
    %cst_247 = arith.constant 1.000000e+00 : f32
    %379 = vector.broadcast %cst_247 : f32 to vector<8x128xf32>
    %380 = arith.addf %379, %378 : vector<8x128xf32>
    %381 = arith.divf %379, %380 : vector<8x128xf32>
    %382 = arith.mulf %376, %381 : vector<8x128xf32>
    %383 = arith.mulf %375, %382 : vector<8x128xf32>
    %c1_248 = arith.constant 1 : index
    %c0_249 = arith.constant 0 : index
    %c0_250 = arith.constant 0 : index
    %384 = vector.load %arg12[%c1_248, %c0_249, %c0_250] : memref<2x128x32xbf16, #tpu.memory_space<vmem>>, vector<1x128x32xbf16>
    %385 = vector.shape_cast %384 : vector<1x128x32xbf16> to vector<128x32xbf16>
    %386 = arith.truncf %383 : vector<8x128xf32> to vector<8x128xbf16>
    %cst_251 = arith.constant dense<0.000000e+00> : vector<8x32xf32>
    %387 = tpu.matmul %386, %385, %cst_251 {dimension_numbers = #tpu.dot_dimension_numbers<[1], [0], [0], [1], [0, 0, 1, 1], [], []>} : vector<8x128xbf16>, vector<128x32xbf16>, vector<8x32xf32> -> vector<8x32xf32>
    %388 = arith.addf %356, %387 : vector<8x32xf32>
    %cst_252 = arith.constant 1.000000e+00 : bf16
    %389 = vector.broadcast %cst_252 : bf16 to vector<1x8xbf16>
    %390 = arith.truncf %388 : vector<8x32xf32> to vector<8x32xbf16>
    %cst_253 = arith.constant dense<0.000000e+00> : vector<1x32xf32>
    %391 = tpu.matmul %389, %390, %cst_253 {dimension_numbers = #tpu.dot_dimension_numbers<[1], [0], [0], [1], [0, 0, 1, 1], [], []>} : vector<1x8xbf16>, vector<8x32xbf16>, vector<1x32xf32> -> vector<1x32xf32>
    %c0_254 = arith.constant 0 : index
    %c0_255 = arith.constant 0 : index
    %392 = vector.load %arg13[%c0_254, %c0_255] : memref<1x32xf32, #tpu.memory_space<vmem>>, vector<1x32xf32>
    %393 = arith.mulf %391, %391 : vector<1x32xf32>
    %cst_256 = arith.constant dense<0.000000e+00> : vector<1xf32>
    %394 = vector.multi_reduction <add>, %393, %cst_256 [1] : vector<1x32xf32> to vector<1xf32>
    %395 = vector.shape_cast %394 : vector<1xf32> to vector<1x1xf32>
    %cst_257 = arith.constant 3.200000e+01 : f32
    %396 = vector.broadcast %cst_257 : f32 to vector<1x1xf32>
    %397 = arith.divf %395, %396 : vector<1x1xf32>
    %cst_258 = arith.constant 9.99999997E-7 : f32
    %398 = vector.broadcast %cst_258 : f32 to vector<1x1xf32>
    %399 = arith.addf %397, %398 : vector<1x1xf32>
    %400 = math.rsqrt %399 : vector<1x1xf32>
    %401 = vector.broadcast %400 : vector<1x1xf32> to vector<1x32xf32>
    %402 = arith.mulf %391, %401 : vector<1x32xf32>
    %403 = arith.mulf %402, %392 : vector<1x32xf32>
    %c0_259 = arith.constant 0 : index
    %c0_260 = arith.constant 0 : index
    %404 = vector.load %arg14[%c0_259, %c0_260] : memref<32x16xbf16, #tpu.memory_space<vmem>>, vector<32x16xbf16>
    %405 = arith.truncf %403 : vector<1x32xf32> to vector<1x32xbf16>
    %cst_261 = arith.constant dense<0.000000e+00> : vector<1x16xf32>
    %406 = tpu.matmul %405, %404, %cst_261 {dimension_numbers = #tpu.dot_dimension_numbers<[1], [0], [0], [1], [0, 0, 1, 1], [], []>} : vector<1x32xbf16>, vector<32x16xbf16>, vector<1x16xf32> -> vector<1x16xf32>
    %407 = vector.extract_strided_slice %406 {offsets = [0, 0], sizes = [1, 8], strides = [1, 1]} : vector<1x16xf32> to vector<1x8xf32>
    %408 = vector.extract_strided_slice %406 {offsets = [0, 8], sizes = [1, 8], strides = [1, 1]} : vector<1x16xf32> to vector<1x8xf32>
    %409 = arith.negf %408 : vector<1x8xf32>
    %410 = math.exp %409 : vector<1x8xf32>
    %cst_262 = arith.constant 1.000000e+00 : f32
    %411 = vector.broadcast %cst_262 : f32 to vector<1x8xf32>
    %412 = arith.addf %411, %410 : vector<1x8xf32>
    %413 = arith.divf %411, %412 : vector<1x8xf32>
    %414 = arith.mulf %408, %413 : vector<1x8xf32>
    %415 = arith.mulf %407, %414 : vector<1x8xf32>
    %c0_263 = arith.constant 0 : index
    %c0_264 = arith.constant 0 : index
    %416 = vector.load %arg15[%c0_263, %c0_264] : memref<8x8xbf16, #tpu.memory_space<vmem>>, vector<8x8xbf16>
    %417 = arith.truncf %415 : vector<1x8xf32> to vector<1x8xbf16>
    %cst_265 = arith.constant dense<0.000000e+00> : vector<1x8xf32>
    %418 = tpu.matmul %417, %416, %cst_265 {dimension_numbers = #tpu.dot_dimension_numbers<[1], [0], [0], [1], [0, 0, 1, 1], [], []>} : vector<1x8xbf16>, vector<8x8xbf16>, vector<1x8xf32> -> vector<1x8xf32>
    %c0_266 = arith.constant 0 : index
    %c0_267 = arith.constant 0 : index
    %419 = vector.load %arg16[%c0_266, %c0_267] : memref<1x8xf32, #tpu.memory_space<vmem>>, vector<1x8xf32>
    %420 = arith.mulf %418, %418 : vector<1x8xf32>
    %cst_268 = arith.constant dense<0.000000e+00> : vector<1xf32>
    %421 = vector.multi_reduction <add>, %420, %cst_268 [1] : vector<1x8xf32> to vector<1xf32>
    %422 = vector.shape_cast %421 : vector<1xf32> to vector<1x1xf32>
    %cst_269 = arith.constant 8.000000e+00 : f32
    %423 = vector.broadcast %cst_269 : f32 to vector<1x1xf32>
    %424 = arith.divf %422, %423 : vector<1x1xf32>
    %cst_270 = arith.constant 9.99999997E-7 : f32
    %425 = vector.broadcast %cst_270 : f32 to vector<1x1xf32>
    %426 = arith.addf %424, %425 : vector<1x1xf32>
    %427 = math.rsqrt %426 : vector<1x1xf32>
    %428 = vector.broadcast %427 : vector<1x1xf32> to vector<1x8xf32>
    %429 = arith.mulf %418, %428 : vector<1x8xf32>
    %430 = arith.mulf %429, %419 : vector<1x8xf32>
    %c0_271 = arith.constant 0 : index
    %c0_272 = arith.constant 0 : index
    %431 = vector.load %arg17[%c0_271, %c0_272] : memref<8x4xbf16, #tpu.memory_space<vmem>>, vector<8x4xbf16>
    %432 = arith.truncf %430 : vector<1x8xf32> to vector<1x8xbf16>
    %cst_273 = arith.constant dense<0.000000e+00> : vector<1x4xf32>
    %433 = tpu.matmul %432, %431, %cst_273 {dimension_numbers = #tpu.dot_dimension_numbers<[1], [0], [0], [1], [0, 0, 1, 1], [], []>} : vector<1x8xbf16>, vector<8x4xbf16>, vector<1x4xf32> -> vector<1x4xf32>
    %434 = vector.extract_strided_slice %433 {offsets = [0, 0], sizes = [1, 2], strides = [1, 1]} : vector<1x4xf32> to vector<1x2xf32>
    %435 = vector.extract_strided_slice %433 {offsets = [0, 2], sizes = [1, 2], strides = [1, 1]} : vector<1x4xf32> to vector<1x2xf32>
    %436 = arith.negf %435 : vector<1x2xf32>
    %437 = math.exp %436 : vector<1x2xf32>
    %cst_274 = arith.constant 1.000000e+00 : f32
    %438 = vector.broadcast %cst_274 : f32 to vector<1x2xf32>
    %439 = arith.addf %438, %437 : vector<1x2xf32>
    %440 = arith.divf %438, %439 : vector<1x2xf32>
    %441 = arith.mulf %435, %440 : vector<1x2xf32>
    %442 = arith.mulf %434, %441 : vector<1x2xf32>
    %c0_275 = arith.constant 0 : index
    %c0_276 = arith.constant 0 : index
    %443 = vector.load %arg18[%c0_275, %c0_276] : memref<2x2xbf16, #tpu.memory_space<vmem>>, vector<2x2xbf16>
    %444 = arith.truncf %442 : vector<1x2xf32> to vector<1x2xbf16>
    %cst_277 = arith.constant dense<0.000000e+00> : vector<1x2xf32>
    %445 = tpu.matmul %444, %443, %cst_277 {dimension_numbers = #tpu.dot_dimension_numbers<[1], [0], [0], [1], [0, 0, 1, 1], [], []>} : vector<1x2xbf16>, vector<2x2xbf16>, vector<1x2xf32> -> vector<1x2xf32>
    %c0_278 = arith.constant 0 : index
    %c0_279 = arith.constant 0 : index
    %c0_280 = arith.constant 0 : index
    %446 = vector.load %arg19[%c0_278, %c0_279, %c0_280] : memref<1x1x2xf32, #tpu.memory_space<vmem>>, vector<1x1x2xf32>
    %447 = vector.shape_cast %446 : vector<1x1x2xf32> to vector<1x2xf32>
    %448 = vector.shape_cast %445 : vector<1x2xf32> to vector<1x1x2xf32>
    tpu.vector_store %arg19[%c0_278, %c0_279, %c0_280], %448 {strides = array<i32>} : memref<1x1x2xf32, #tpu.memory_space<vmem>>, vector<1x1x2xf32>,
    return
  }
  func.func @transform_0(%arg0: i32) -> (i32, i32) {
    %c0_i32 = arith.constant 0 : i32
    %c0_i32_0 = arith.constant 0 : i32
    return %arg0, %c0_i32 : i32, i32
  }
  func.func @transform_1(%arg0: i32) -> (i32, i32, i32) {
    %c0_i32 = arith.constant 0 : i32
    %c0_i32_0 = arith.constant 0 : i32
    %c0_i32_1 = arith.constant 0 : i32
    return %arg0, %c0_i32, %c0_i32_0 : i32, i32, i32
  }
  func.func @transform_2(%arg0: i32) -> (i32, i32) {
    %c0_i32 = arith.constant 0 : i32
    %c0_i32_0 = arith.constant 0 : i32
    %c0_i32_1 = arith.constant 0 : i32
    return %c0_i32, %c0_i32_0 : i32, i32
  }
  func.func @transform_3(%arg0: i32) -> (i32, i32) {
    %c0_i32 = arith.constant 0 : i32
    %c0_i32_0 = arith.constant 0 : i32
    %c0_i32_1 = arith.constant 0 : i32
    return %c0_i32, %c0_i32_0 : i32, i32
  }
  func.func @transform_4(%arg0: i32) -> (i32, i32, i32) {
    %c0_i32 = arith.constant 0 : i32
    %c0_i32_0 = arith.constant 0 : i32
    %c0_i32_1 = arith.constant 0 : i32
    %c0_i32_2 = arith.constant 0 : i32
    return %c0_i32, %c0_i32_0, %c0_i32_1 : i32, i32, i32
  }
  func.func @transform_5(%arg0: i32) -> (i32, i32, i32, i32) {
    %c0_i32 = arith.constant 0 : i32
    %c0_i32_0 = arith.constant 0 : i32
    %c0_i32_1 = arith.constant 0 : i32
    %c0_i32_2 = arith.constant 0 : i32
    %c0_i32_3 = arith.constant 0 : i32
    return %c0_i32, %c0_i32_0, %c0_i32_1, %c0_i32_2 : i32, i32, i32, i32
  }
  func.func @transform_6(%arg0: i32) -> (i32, i32, i32, i32) {
    %c0_i32 = arith.constant 0 : i32
    %c0_i32_0 = arith.constant 0 : i32
    %c0_i32_1 = arith.constant 0 : i32
    %c0_i32_2 = arith.constant 0 : i32
    %c0_i32_3 = arith.constant 0 : i32
    return %c0_i32, %c0_i32_0, %c0_i32_1, %c0_i32_2 : i32, i32, i32, i32
  }
  func.func @transform_7(%arg0: i32) -> (i32, i32, i32, i32) {
    %c0_i32 = arith.constant 0 : i32
    %c0_i32_0 = arith.constant 0 : i32
    %c0_i32_1 = arith.constant 0 : i32
    %c0_i32_2 = arith.constant 0 : i32
    %c0_i32_3 = arith.constant 0 : i32
    return %c0_i32, %c0_i32_0, %c0_i32_1, %c0_i32_2 : i32, i32, i32, i32
  }
  func.func @transform_8(%arg0: i32) -> (i32, i32, i32, i32) {
    %c0_i32 = arith.constant 0 : i32
    %c0_i32_0 = arith.constant 0 : i32
    %c0_i32_1 = arith.constant 0 : i32
    %c0_i32_2 = arith.constant 0 : i32
    %c0_i32_3 = arith.constant 0 : i32
    return %c0_i32, %c0_i32_0, %c0_i32_1, %c0_i32_2 : i32, i32, i32, i32
  }
  func.func @transform_9(%arg0: i32) -> (i32, i32, i32) {
    %c0_i32 = arith.constant 0 : i32
    %c0_i32_0 = arith.constant 0 : i32
    %c0_i32_1 = arith.constant 0 : i32
    %c0_i32_2 = arith.constant 0 : i32
    return %c0_i32, %c0_i32_0, %c0_i32_1 : i32, i32, i32
  }
  func.func @transform_10(%arg0: i32) -> (i32, i32, i32) {
    %c0_i32 = arith.constant 0 : i32
    %c0_i32_0 = arith.constant 0 : i32
    %c0_i32_1 = arith.constant 0 : i32
    %c0_i32_2 = arith.constant 0 : i32
    return %c0_i32, %c0_i32_0, %c0_i32_1 : i32, i32, i32
  }
  func.func @transform_11(%arg0: i32) -> (i32, i32, i32) {
    %c0_i32 = arith.constant 0 : i32
    %c0_i32_0 = arith.constant 0 : i32
    %c0_i32_1 = arith.constant 0 : i32
    %c0_i32_2 = arith.constant 0 : i32
    return %c0_i32, %c0_i32_0, %c0_i32_1 : i32, i32, i32
  }
  func.func @transform_12(%arg0: i32) -> (i32, i32) {
    %c0_i32 = arith.constant 0 : i32
    %c0_i32_0 = arith.constant 0 : i32
    %c0_i32_1 = arith.constant 0 : i32
    return %c0_i32, %c0_i32_0 : i32, i32
  }
  func.func @transform_13(%arg0: i32) -> (i32, i32) {
    %c0_i32 = arith.constant 0 : i32
    %c0_i32_0 = arith.constant 0 : i32
    %c0_i32_1 = arith.constant 0 : i32
    return %c0_i32, %c0_i32_0 : i32, i32
  }
  func.func @transform_14(%arg0: i32) -> (i32, i32) {
    %c0_i32 = arith.constant 0 : i32
    %c0_i32_0 = arith.constant 0 : i32
    %c0_i32_1 = arith.constant 0 : i32
    return %c0_i32, %c0_i32_0 : i32, i32
  }
  func.func @transform_15(%arg0: i32) -> (i32, i32) {
    %c0_i32 = arith.constant 0 : i32
    %c0_i32_0 = arith.constant 0 : i32
    %c0_i32_1 = arith.constant 0 : i32
    return %c0_i32, %c0_i32_0 : i32, i32
  }
  func.func @transform_16(%arg0: i32) -> (i32, i32) {
    %c0_i32 = arith.constant 0 : i32
    %c0_i32_0 = arith.constant 0 : i32
    %c0_i32_1 = arith.constant 0 : i32
    return %c0_i32, %c0_i32_0 : i32, i32
  }
  func.func @transform_17(%arg0: i32) -> (i32, i32) {
    %c0_i32 = arith.constant 0 : i32
    %c0_i32_0 = arith.constant 0 : i32
    %c0_i32_1 = arith.constant 0 : i32
    return %c0_i32, %c0_i32_0 : i32, i32
  }
  func.func @transform_18(%arg0: i32) -> (i32, i32, i32) {
    %c0_i32 = arith.constant 0 : i32
    %c0_i32_0 = arith.constant 0 : i32
    %c0_i32_1 = arith.constant 0 : i32
    return %arg0, %c0_i32, %c0_i32_0 : i32, i32, i32
  }
}

</mosaic_0001>

<llo_original>
// kernel: classifier_forward.1
$region0: #{classifier_forward.1}
  #allocation0 [shape = 'u32[]', space=smem, size = 0x4, offset = 0x4, fixed_abs, tag = 'smem constant byte address 0x4 - core index']
  #allocation1 [shape = 'u32[144,128]{1,0:T(1,128)}', space=vmem, size = 0x12000, scoped, tag = 'internal scratch']
  %s0 = inlined_call_operand.vmem [shape: f32[16,8], index: 0, kind: input, shape index: {}]
  %s1 = inlined_call_operand.vmem [shape: f32[2,1,8], index: 1, kind: input, shape index: {}]
  %s2 = inlined_call_operand.vmem [shape: bf16[8,32], index: 2, kind: input, shape index: {}]
  %s3 = inlined_call_operand.vmem [shape: f32[1,32], index: 3, kind: input, shape index: {}]
  %s4 = inlined_call_operand.vmem [shape: f32[2,1,32], index: 4, kind: input, shape index: {}]
  %s5 = inlined_call_operand.vmem [shape: bf16[2,4,32,8], index: 5, kind: input, shape index: {}]
  %s6 = inlined_call_operand.vmem [shape: bf16[2,4,32,8], index: 6, kind: input, shape index: {}]
  %s7 = inlined_call_operand.vmem [shape: bf16[2,4,32,8], index: 7, kind: input, shape index: {}]
  %s8 = inlined_call_operand.vmem [shape: bf16[2,4,8,32], index: 8, kind: input, shape index: {}]
  %s9 = inlined_call_operand.vmem [shape: f32[2,1,32], index: 9, kind: input, shape index: {}]
  %s10 = inlined_call_operand.vmem [shape: bf16[2,32,256], index: 10, kind: input, shape index: {}]
  %s11 = inlined_call_operand.vmem [shape: bf16[2,128,32], index: 11, kind: input, shape index: {}]
  %s12 = inlined_call_operand.vmem [shape: f32[1,32], index: 12, kind: input, shape index: {}]
  %s13 = inlined_call_operand.vmem [shape: bf16[32,16], index: 13, kind: input, shape index: {}]
  %s14 = inlined_call_operand.vmem [shape: bf16[8,8], index: 14, kind: input, shape index: {}]
  %s15 = inlined_call_operand.vmem [shape: f32[1,8], index: 15, kind: input, shape index: {}]
  %s16 = inlined_call_operand.vmem [shape: bf16[8,4], index: 16, kind: input, shape index: {}]
  %s17 = inlined_call_operand.vmem [shape: bf16[2,2], index: 17, kind: input, shape index: {}]
  %s18 = inlined_call_operand.vmem [shape: f32[2,1,2], index: 18, kind: output, shape index: {}]
  %s19 = sld [smem:[#allocation0]]
  $region105: #{classifier_forward.1} parent=0
    _
  %s21 = ssub.s32 1, %s19
  %s22 = scalar_select 0, %s21, %s19
  loop: start=0, step=1, limit=4
  $region2: #{classifier_forward.1} parent=0 // loop_pre_header
    _
  $region3: #{classifier_forward.1} parent=0 // loop_header
    %s24 = sphi 0, %s28
    %p25 = scmp.ge.s32.totalorder %s24, 4
    %s34 = sphi 0, %s36
    %s37 = sphi 0, %s34
    %s38 = sphi 0, %s37
    %s54 = sphi 0, %s38
    %s60 = sphi 0, %s62
    %s63 = sphi 0, %s60
    %s64 = sphi 0, %s63
    %s80 = sphi 0, %s64
    %s84 = sphi 0, %s84
    %s86 = sphi 0, %s84
    %s87 = sphi 0, %s86
    %s101 = sphi 0, %s87
    %s105 = sphi 0, %s105
    %s107 = sphi 0, %s105
    %s108 = sphi 0, %s107
    %s122 = sphi 0, %s108
    %s126 = sphi 0, %s126
    %s128 = sphi 0, %s126
    %s129 = sphi 0, %s128
    %s143 = sphi 0, %s129
    %s147 = sphi 0, %s147
    %s149 = sphi 0, %s147
    %s150 = sphi 0, %s149
    %s164 = sphi 0, %s150
    %s168 = sphi 0, %s168
    %s170 = sphi 0, %s168
    %s171 = sphi 0, %s170
    %s185 = sphi 0, %s171
    %s189 = sphi 0, %s189
    %s191 = sphi 0, %s189
    %s192 = sphi 0, %s191
    %s206 = sphi 0, %s192
    %s210 = sphi 0, %s210
    %s212 = sphi 0, %s210
    %s213 = sphi 0, %s212
    %s227 = sphi 0, %s213
    %s231 = sphi 0, %s231
    %s233 = sphi 0, %s231
    %s234 = sphi 0, %s233
    %s248 = sphi 0, %s234
    %s252 = sphi 0, %s252
    %s254 = sphi 0, %s252
    %s255 = sphi 0, %s254
    %s269 = sphi 0, %s255
    %s273 = sphi 0, %s273
    %s275 = sphi 0, %s273
    %s276 = sphi 0, %s275
    %s290 = sphi 0, %s276
    %s294 = sphi 0, %s294
    %s296 = sphi 0, %s294
    %s297 = sphi 0, %s296
    %s311 = sphi 0, %s297
    %s315 = sphi 0, %s315
    %s317 = sphi 0, %s315
    %s318 = sphi 0, %s317
    %s332 = sphi 0, %s318
    %s336 = sphi 0, %s336
    %s338 = sphi 0, %s336
    %s339 = sphi 0, %s338
    %s353 = sphi 0, %s339
    %s357 = sphi 0, %s357
    %s359 = sphi 0, %s357
    %s360 = sphi 0, %s359
    %s374 = sphi 0, %s360
    %s378 = sphi 0, %s378
    %s380 = sphi 0, %s378
    %s381 = sphi 0, %s380
    %s395 = sphi 0, %s381
    %s399 = sphi 0, %s399
    %s401 = sphi 0, %s399
    %s402 = sphi 0, %s401
    %s416 = sphi 0, %s402
    %s422 = sphi 0, %s424
    %s425 = sphi 0, %s422
    %s426 = sphi 0, %s425
    %s442 = sphi 0, %s426
  $region4: #{classifier_forward.1} parent=0 // loop_header_branch
    %27 = sbr.rel (%p25) target = $region8
  $region5: #{classifier_forward.1} parent=0 // loop_body
    %s29 = ssub.s32 %s24, 1
    %s30 = ssub.s32 %s24, 2
    %s31 = sadd.s32 %s24, 1
    %s32 = ssub.s32 %s24, %s31
    %p33 = scmp.eq.s32.totalorder %s32, 0
    %s35 = sadd.s32 %s34, 1
    %s36 = scalar_select %p33, %s34, %s35
    %p39 = pneg %p33
    %p40 = scmp.eq.s32.totalorder %s24, 1
    %p41 = por %p39, %p40
    %p42 = scmp.ne.s32.totalorder %s34, %s37
    %p43 = scmp.eq.s32.totalorder %s24, 0
    %p44 = por %p42, %p43
    %p45 = scmp.ne.s32.totalorder %s34, %s37
    %p46 = scmp.eq.s32.totalorder %s29, 1
    %p47 = por %p45, %p46
    %p48 = scmp.ne.s32.totalorder %s37, %s38
    %p49 = scmp.eq.s32.totalorder %s29, 0
    %p50 = por %p48, %p49
    %p51 = scmp.ne.s32.totalorder %s37, %s38
    %p52 = scmp.eq.s32.totalorder %s30, 1
    %p53 = por %p51, %p52
    %p55 = scmp.ne.s32.totalorder %s38, %s54
    %p56 = scmp.eq.s32.totalorder %s30, 0
    %p57 = por %p55, %p56
    %s58 = ssub.s32 %s24, %s31
    %p59 = scmp.eq.s32.totalorder %s58, 0
    %s61 = sadd.s32 %s60, 1
    %s62 = scalar_select %p59, %s60, %s61
    %p65 = pneg %p59
    %p66 = scmp.eq.s32.totalorder %s24, 1
    %p67 = por %p65, %p66
    %p68 = scmp.ne.s32.totalorder %s60, %s63
    %p69 = scmp.eq.s32.totalorder %s24, 0
    %p70 = por %p68, %p69
    %p71 = scmp.ne.s32.totalorder %s60, %s63
    %p72 = scmp.eq.s32.totalorder %s29, 1
    %p73 = por %p71, %p72
    %p74 = scmp.ne.s32.totalorder %s63, %s64
    %p75 = scmp.eq.s32.totalorder %s29, 0
    %p76 = por %p74, %p75
    %p77 = scmp.ne.s32.totalorder %s63, %s64
    %p78 = scmp.eq.s32.totalorder %s30, 1
    %p79 = por %p77, %p78
    %p81 = scmp.ne.s32.totalorder %s64, %s80
    %p82 = scmp.eq.s32.totalorder %s30, 0
    %p83 = por %p81, %p82
    %s85 = sadd.s32 %s84, 1
    %p88 = scmp.eq.s32.totalorder %s24, 1
    %p89 = scmp.ne.s32.totalorder %s84, %s86
    %p90 = scmp.eq.s32.totalorder %s24, 0
    %p91 = por %p89, %p90
    %p92 = scmp.ne.s32.totalorder %s84, %s86
    %p93 = scmp.eq.s32.totalorder %s29, 1
    %p94 = por %p92, %p93
    %p95 = scmp.ne.s32.totalorder %s86, %s87
    %p96 = scmp.eq.s32.totalorder %s29, 0
    %p97 = por %p95, %p96
    %p98 = scmp.ne.s32.totalorder %s86, %s87
    %p99 = scmp.eq.s32.totalorder %s30, 1
    %p100 = por %p98, %p99
    %p102 = scmp.ne.s32.totalorder %s87, %s101
    %p103 = scmp.eq.s32.totalorder %s30, 0
    %p104 = por %p102, %p103
    %s106 = sadd.s32 %s105, 1
    %p109 = scmp.eq.s32.totalorder %s24, 1
    %p110 = scmp.ne.s32.totalorder %s105, %s107
    %p111 = scmp.eq.s32.totalorder %s24, 0
    %p112 = por %p110, %p111
    %p113 = scmp.ne.s32.totalorder %s105, %s107
    %p114 = scmp.eq.s32.totalorder %s29, 1
    %p115 = por %p113, %p114
    %p116 = scmp.ne.s32.totalorder %s107, %s108
    %p117 = scmp.eq.s32.totalorder %s29, 0
    %p118 = por %p116, %p117
    %p119 = scmp.ne.s32.totalorder %s107, %s108
    %p120 = scmp.eq.s32.totalorder %s30, 1
    %p121 = por %p119, %p120
    %p123 = scmp.ne.s32.totalorder %s108, %s122
    %p124 = scmp.eq.s32.totalorder %s30, 0
    %p125 = por %p123, %p124
    %s127 = sadd.s32 %s126, 1
    %p130 = scmp.eq.s32.totalorder %s24, 1
    %p131 = scmp.ne.s32.totalorder %s126, %s128
    %p132 = scmp.eq.s32.totalorder %s24, 0
    %p133 = por %p131, %p132
    %p134 = scmp.ne.s32.totalorder %s126, %s128
    %p135 = scmp.eq.s32.totalorder %s29, 1
    %p136 = por %p134, %p135
    %p137 = scmp.ne.s32.totalorder %s128, %s129
    %p138 = scmp.eq.s32.totalorder %s29, 0
    %p139 = por %p137, %p138
    %p140 = scmp.ne.s32.totalorder %s128, %s129
    %p141 = scmp.eq.s32.totalorder %s30, 1
    %p142 = por %p140, %p141
    %p144 = scmp.ne.s32.totalorder %s129, %s143
    %p145 = scmp.eq.s32.totalorder %s30, 0
    %p146 = por %p144, %p145
    %s148 = sadd.s32 %s147, 1
    %p151 = scmp.eq.s32.totalorder %s24, 1
    %p152 = scmp.ne.s32.totalorder %s147, %s149
    %p153 = scmp.eq.s32.totalorder %s24, 0
    %p154 = por %p152, %p153
    %p155 = scmp.ne.s32.totalorder %s147, %s149
    %p156 = scmp.eq.s32.totalorder %s29, 1
    %p157 = por %p155, %p156
    %p158 = scmp.ne.s32.totalorder %s149, %s150
    %p159 = scmp.eq.s32.totalorder %s29, 0
    %p160 = por %p158, %p159
    %p161 = scmp.ne.s32.totalorder %s149, %s150
    %p162 = scmp.eq.s32.totalorder %s30, 1
    %p163 = por %p161, %p162
    %p165 = scmp.ne.s32.totalorder %s150, %s164
    %p166 = scmp.eq.s32.totalorder %s30, 0
    %p167 = por %p165, %p166
    %s169 = sadd.s32 %s168, 1
    %p172 = scmp.eq.s32.totalorder %s24, 1
    %p173 = scmp.ne.s32.totalorder %s168, %s170
    %p174 = scmp.eq.s32.totalorder %s24, 0
    %p175 = por %p173, %p174
    %p176 = scmp.ne.s32.totalorder %s168, %s170
    %p177 = scmp.eq.s32.totalorder %s29, 1
    %p178 = por %p176, %p177
    %p179 = scmp.ne.s32.totalorder %s170, %s171
    %p180 = scmp.eq.s32.totalorder %s29, 0
    %p181 = por %p179, %p180
    %p182 = scmp.ne.s32.totalorder %s170, %s171
    %p183 = scmp.eq.s32.totalorder %s30, 1
    %p184 = por %p182, %p183
    %p186 = scmp.ne.s32.totalorder %s171, %s185
    %p187 = scmp.eq.s32.totalorder %s30, 0
    %p188 = por %p186, %p187
    %s190 = sadd.s32 %s189, 1
    %p193 = scmp.eq.s32.totalorder %s24, 1
    %p194 = scmp.ne.s32.totalorder %s189, %s191
    %p195 = scmp.eq.s32.totalorder %s24, 0
    %p196 = por %p194, %p195
    %p197 = scmp.ne.s32.totalorder %s189, %s191
    %p198 = scmp.eq.s32.totalorder %s29, 1
    %p199 = por %p197, %p198
    %p200 = scmp.ne.s32.totalorder %s191, %s192
    %p201 = scmp.eq.s32.totalorder %s29, 0
    %p202 = por %p200, %p201
    %p203 = scmp.ne.s32.totalorder %s191, %s192
    %p204 = scmp.eq.s32.totalorder %s30, 1
    %p205 = por %p203, %p204
    %p207 = scmp.ne.s32.totalorder %s192, %s206
    %p208 = scmp.eq.s32.totalorder %s30, 0
    %p209 = por %p207, %p208
    %s211 = sadd.s32 %s210, 1
    %p214 = scmp.eq.s32.totalorder %s24, 1
    %p215 = scmp.ne.s32.totalorder %s210, %s212
    %p216 = scmp.eq.s32.totalorder %s24, 0
    %p217 = por %p215, %p216
    %p218 = scmp.ne.s32.totalorder %s210, %s212
    %p219 = scmp.eq.s32.totalorder %s29, 1
    %p220 = por %p218, %p219
    %p221 = scmp.ne.s32.totalorder %s212, %s213
    %p222 = scmp.eq.s32.totalorder %s29, 0
    %p223 = por %p221, %p222
    %p224 = scmp.ne.s32.totalorder %s212, %s213
    %p225 = scmp.eq.s32.totalorder %s30, 1
    %p226 = por %p224, %p225
    %p228 = scmp.ne.s32.totalorder %s213, %s227
    %p229 = scmp.eq.s32.totalorder %s30, 0
    %p230 = por %p228, %p229
    %s232 = sadd.s32 %s231, 1
    %p235 = scmp.eq.s32.totalorder %s24, 1
    %p236 = scmp.ne.s32.totalorder %s231, %s233
    %p237 = scmp.eq.s32.totalorder %s24, 0
    %p238 = por %p236, %p237
    %p239 = scmp.ne.s32.totalorder %s231, %s233
    %p240 = scmp.eq.s32.totalorder %s29, 1
    %p241 = por %p239, %p240
    %p242 = scmp.ne.s32.totalorder %s233, %s234
    %p243 = scmp.eq.s32.totalorder %s29, 0
    %p244 = por %p242, %p243
    %p245 = scmp.ne.s32.totalorder %s233, %s234
    %p246 = scmp.eq.s32.totalorder %s30, 1
    %p247 = por %p245, %p246
    %p249 = scmp.ne.s32.totalorder %s234, %s248
    %p250 = scmp.eq.s32.totalorder %s30, 0
    %p251 = por %p249, %p250
    %s253 = sadd.s32 %s252, 1
    %p256 = scmp.eq.s32.totalorder %s24, 1
    %p257 = scmp.ne.s32.totalorder %s252, %s254
    %p258 = scmp.eq.s32.totalorder %s24, 0
    %p259 = por %p257, %p258
    %p260 = scmp.ne.s32.totalorder %s252, %s254
    %p261 = scmp.eq.s32.totalorder %s29, 1
    %p262 = por %p260, %p261
    %p263 = scmp.ne.s32.totalorder %s254, %s255
    %p264 = scmp.eq.s32.totalorder %s29, 0
    %p265 = por %p263, %p264
    %p266 = scmp.ne.s32.totalorder %s254, %s255
    %p267 = scmp.eq.s32.totalorder %s30, 1
    %p268 = por %p266, %p267
    %p270 = scmp.ne.s32.totalorder %s255, %s269
    %p271 = scmp.eq.s32.totalorder %s30, 0
    %p272 = por %p270, %p271
    %s274 = sadd.s32 %s273, 1
    %p277 = scmp.eq.s32.totalorder %s24, 1
    %p278 = scmp.ne.s32.totalorder %s273, %s275
    %p279 = scmp.eq.s32.totalorder %s24, 0
    %p280 = por %p278, %p279
    %p281 = scmp.ne.s32.totalorder %s273, %s275
    %p282 = scmp.eq.s32.totalorder %s29, 1
    %p283 = por %p281, %p282
    %p284 = scmp.ne.s32.totalorder %s275, %s276
    %p285 = scmp.eq.s32.totalorder %s29, 0
    %p286 = por %p284, %p285
    %p287 = scmp.ne.s32.totalorder %s275, %s276
    %p288 = scmp.eq.s32.totalorder %s30, 1
    %p289 = por %p287, %p288
    %p291 = scmp.ne.s32.totalorder %s276, %s290
    %p292 = scmp.eq.s32.totalorder %s30, 0
    %p293 = por %p291, %p292
    %s295 = sadd.s32 %s294, 1
    %p298 = scmp.eq.s32.totalorder %s24, 1
    %p299 = scmp.ne.s32.totalorder %s294, %s296
    %p300 = scmp.eq.s32.totalorder %s24, 0
    %p301 = por %p299, %p300
    %p302 = scmp.ne.s32.totalorder %s294, %s296
    %p303 = scmp.eq.s32.totalorder %s29, 1
    %p304 = por %p302, %p303
    %p305 = scmp.ne.s32.totalorder %s296, %s297
    %p306 = scmp.eq.s32.totalorder %s29, 0
    %p307 = por %p305, %p306
    %p308 = scmp.ne.s32.totalorder %s296, %s297
    %p309 = scmp.eq.s32.totalorder %s30, 1
    %p310 = por %p308, %p309
    %p312 = scmp.ne.s32.totalorder %s297, %s311
    %p313 = scmp.eq.s32.totalorder %s30, 0
    %p314 = por %p312, %p313
    %s316 = sadd.s32 %s315, 1
    %p319 = scmp.eq.s32.totalorder %s24, 1
    %p320 = scmp.ne.s32.totalorder %s315, %s317
    %p321 = scmp.eq.s32.totalorder %s24, 0
    %p322 = por %p320, %p321
    %p323 = scmp.ne.s32.totalorder %s315, %s317
    %p324 = scmp.eq.s32.totalorder %s29, 1
    %p325 = por %p323, %p324
    %p326 = scmp.ne.s32.totalorder %s317, %s318
    %p327 = scmp.eq.s32.totalorder %s29, 0
    %p328 = por %p326, %p327
    %p329 = scmp.ne.s32.totalorder %s317, %s318
    %p330 = scmp.eq.s32.totalorder %s30, 1
    %p331 = por %p329, %p330
    %p333 = scmp.ne.s32.totalorder %s318, %s332
    %p334 = scmp.eq.s32.totalorder %s30, 0
    %p335 = por %p333, %p334
    %s337 = sadd.s32 %s336, 1
    %p340 = scmp.eq.s32.totalorder %s24, 1
    %p341 = scmp.ne.s32.totalorder %s336, %s338
    %p342 = scmp.eq.s32.totalorder %s24, 0
    %p343 = por %p341, %p342
    %p344 = scmp.ne.s32.totalorder %s336, %s338
    %p345 = scmp.eq.s32.totalorder %s29, 1
    %p346 = por %p344, %p345
    %p347 = scmp.ne.s32.totalorder %s338, %s339
    %p348 = scmp.eq.s32.totalorder %s29, 0
    %p349 = por %p347, %p348
    %p350 = scmp.ne.s32.totalorder %s338, %s339
    %p351 = scmp.eq.s32.totalorder %s30, 1
    %p352 = por %p350, %p351
    %p354 = scmp.ne.s32.totalorder %s339, %s353
    %p355 = scmp.eq.s32.totalorder %s30, 0
    %p356 = por %p354, %p355
    %s358 = sadd.s32 %s357, 1
    %p361 = scmp.eq.s32.totalorder %s24, 1
    %p362 = scmp.ne.s32.totalorder %s357, %s359
    %p363 = scmp.eq.s32.totalorder %s24, 0
    %p364 = por %p362, %p363
    %p365 = scmp.ne.s32.totalorder %s357, %s359
    %p366 = scmp.eq.s32.totalorder %s29, 1
    %p367 = por %p365, %p366
    %p368 = scmp.ne.s32.totalorder %s359, %s360
    %p369 = scmp.eq.s32.totalorder %s29, 0
    %p370 = por %p368, %p369
    %p371 = scmp.ne.s32.totalorder %s359, %s360
    %p372 = scmp.eq.s32.totalorder %s30, 1
    %p373 = por %p371, %p372
    %p375 = scmp.ne.s32.totalorder %s360, %s374
    %p376 = scmp.eq.s32.totalorder %s30, 0
    %p377 = por %p375, %p376
    %s379 = sadd.s32 %s378, 1
    %p382 = scmp.eq.s32.totalorder %s24, 1
    %p383 = scmp.ne.s32.totalorder %s378, %s380
    %p384 = scmp.eq.s32.totalorder %s24, 0
    %p385 = por %p383, %p384
    %p386 = scmp.ne.s32.totalorder %s378, %s380
    %p387 = scmp.eq.s32.totalorder %s29, 1
    %p388 = por %p386, %p387
    %p389 = scmp.ne.s32.totalorder %s380, %s381
    %p390 = scmp.eq.s32.totalorder %s29, 0
    %p391 = por %p389, %p390
    %p392 = scmp.ne.s32.totalorder %s380, %s381
    %p393 = scmp.eq.s32.totalorder %s30, 1
    %p394 = por %p392, %p393
    %p396 = scmp.ne.s32.totalorder %s381, %s395
    %p397 = scmp.eq.s32.totalorder %s30, 0
    %p398 = por %p396, %p397
    %s400 = sadd.s32 %s399, 1
    %p403 = scmp.eq.s32.totalorder %s24, 1
    %p404 = scmp.ne.s32.totalorder %s399, %s401
    %p405 = scmp.eq.s32.totalorder %s24, 0
    %p406 = por %p404, %p405
    %p407 = scmp.ne.s32.totalorder %s399, %s401
    %p408 = scmp.eq.s32.totalorder %s29, 1
    %p409 = por %p407, %p408
    %p410 = scmp.ne.s32.totalorder %s401, %s402
    %p411 = scmp.eq.s32.totalorder %s29, 0
    %p412 = por %p410, %p411
    %p413 = scmp.ne.s32.totalorder %s401, %s402
    %p414 = scmp.eq.s32.totalorder %s30, 1
    %p415 = por %p413, %p414
    %p417 = scmp.ne.s32.totalorder %s402, %s416
    %p418 = scmp.eq.s32.totalorder %s30, 0
    %p419 = por %p417, %p418
    %s420 = ssub.s32 %s24, %s31
    %p421 = scmp.eq.s32.totalorder %s420, 0
    %s423 = sadd.s32 %s422, 1
    %s424 = scalar_select %p421, %s422, %s423
    %p427 = pneg %p421
    %p428 = scmp.eq.s32.totalorder %s24, 1
    %p429 = por %p427, %p428
    %p430 = scmp.ne.s32.totalorder %s422, %s425
    %p431 = scmp.eq.s32.totalorder %s24, 0
    %p432 = por %p430, %p431
    %p433 = scmp.ne.s32.totalorder %s422, %s425
    %p434 = scmp.eq.s32.totalorder %s29, 1
    %p435 = por %p433, %p434
    %p436 = scmp.ne.s32.totalorder %s425, %s426
    %p437 = scmp.eq.s32.totalorder %s29, 0
    %p438 = por %p436, %p437
    %p439 = scmp.ne.s32.totalorder %s425, %s426
    %p440 = scmp.eq.s32.totalorder %s30, 1
    %p441 = por %p439, %p440
    %p443 = scmp.ne.s32.totalorder %s426, %s442
    %p444 = scmp.eq.s32.totalorder %s30, 0
    %p445 = por %p443, %p444
    %p446 = scmp.le.s32.totalorder 1, %s24
    %p447 = scmp.lt.s32.totalorder %s24, 3
    %p448 = pnand %p446, %p447
    %p449 = pneg %p448
    // Predicated region
    $region9: #{classifier_forward.1} parent=5 // pred_check
      _
    $region10: #{classifier_forward.1} parent=5 // pred_check_branch
      %451 = sbr.rel (%p448) target = $region12
    $region11: #{classifier_forward.1} parent=5 // pred_region
      %s452 = ssub.s32 %s24, 1
      // Predicated region
      $region13: #{classifier_forward.1} parent=11 // pred_check
        %p453 = pneg %p97
      $region14: #{classifier_forward.1} parent=11 // pred_check_branch
        %455 = sbr.rel (%p453) target = $region16
      $region15: #{classifier_forward.1} parent=11 // pred_region
        _
      $region16: #{classifier_forward.1} parent=11 // pred_fallthru
        _
      // Predicated region
      $region17: #{classifier_forward.1} parent=11 // pred_check
        %p456 = pneg %p118
      $region18: #{classifier_forward.1} parent=11 // pred_check_branch
        %458 = sbr.rel (%p456) target = $region20
      $region19: #{classifier_forward.1} parent=11 // pred_region
        _
      $region20: #{classifier_forward.1} parent=11 // pred_fallthru
        _
      // Predicated region
      $region21: #{classifier_forward.1} parent=11 // pred_check
        %p459 = pneg %p139
      $region22: #{classifier_forward.1} parent=11 // pred_check_branch
        %461 = sbr.rel (%p459) target = $region24
      $region23: #{classifier_forward.1} parent=11 // pred_region
        _
      $region24: #{classifier_forward.1} parent=11 // pred_fallthru
        _
      // Predicated region
      $region25: #{classifier_forward.1} parent=11 // pred_check
        %p462 = pneg %p160
      $region26: #{classifier_forward.1} parent=11 // pred_check_branch
        %464 = sbr.rel (%p462) target = $region28
      $region27: #{classifier_forward.1} parent=11 // pred_region
        _
      $region28: #{classifier_forward.1} parent=11 // pred_fallthru
        _
      // Predicated region
      $region29: #{classifier_forward.1} parent=11 // pred_check
        %p465 = pneg %p181
      $region30: #{classifier_forward.1} parent=11 // pred_check_branch
        %467 = sbr.rel (%p465) target = $region32
      $region31: #{classifier_forward.1} parent=11 // pred_region
        _
      $region32: #{classifier_forward.1} parent=11 // pred_fallthru
        _
      // Predicated region
      $region33: #{classifier_forward.1} parent=11 // pred_check
        %p468 = pneg %p202
      $region34: #{classifier_forward.1} parent=11 // pred_check_branch
        %470 = sbr.rel (%p468) target = $region36
      $region35: #{classifier_forward.1} parent=11 // pred_region
        _
      $region36: #{classifier_forward.1} parent=11 // pred_fallthru
        _
      // Predicated region
      $region37: #{classifier_forward.1} parent=11 // pred_check
        %p471 = pneg %p223
      $region38: #{classifier_forward.1} parent=11 // pred_check_branch
        %473 = sbr.rel (%p471) target = $region40
      $region39: #{classifier_forward.1} parent=11 // pred_region
        _
      $region40: #{classifier_forward.1} parent=11 // pred_fallthru
        _
      // Predicated region
      $region41: #{classifier_forward.1} parent=11 // pred_check
        %p474 = pneg %p244
      $region42: #{classifier_forward.1} parent=11 // pred_check_branch
        %476 = sbr.rel (%p474) target = $region44
      $region43: #{classifier_forward.1} parent=11 // pred_region
        _
      $region44: #{classifier_forward.1} parent=11 // pred_fallthru
        _
      // Predicated region
      $region45: #{classifier_forward.1} parent=11 // pred_check
        %p477 = pneg %p265
      $region46: #{classifier_forward.1} parent=11 // pred_check_branch
        %479 = sbr.rel (%p477) target = $region48
      $region47: #{classifier_forward.1} parent=11 // pred_region
        _
      $region48: #{classifier_forward.1} parent=11 // pred_fallthru
        _
      // Predicated region
      $region49: #{classifier_forward.1} parent=11 // pred_check
        %p480 = pneg %p286
      $region50: #{classifier_forward.1} parent=11 // pred_check_branch
        %482 = sbr.rel (%p480) target = $region52
      $region51: #{classifier_forward.1} parent=11 // pred_region
        _
      $region52: #{classifier_forward.1} parent=11 // pred_fallthru
        _
      // Predicated region
      $region53: #{classifier_forward.1} parent=11 // pred_check
        %p483 = pneg %p307
      $region54: #{classifier_forward.1} parent=11 // pred_check_branch
        %485 = sbr.rel (%p483) target = $region56
      $region55: #{classifier_forward.1} parent=11 // pred_region
        _
      $region56: #{classifier_forward.1} parent=11 // pred_fallthru
        _
      // Predicated region
      $region57: #{classifier_forward.1} parent=11 // pred_check
        %p486 = pneg %p328
      $region58: #{classifier_forward.1} parent=11 // pred_check_branch
        %488 = sbr.rel (%p486) target = $region60
      $region59: #{classifier_forward.1} parent=11 // pred_region
        _
      $region60: #{classifier_forward.1} parent=11 // pred_fallthru
        _
      // Predicated region
      $region61: #{classifier_forward.1} parent=11 // pred_check
        %p489 = pneg %p349
      $region62: #{classifier_forward.1} parent=11 // pred_check_branch
        %491 = sbr.rel (%p489) target = $region64
      $region63: #{classifier_forward.1} parent=11 // pred_region
        _
      $region64: #{classifier_forward.1} parent=11 // pred_fallthru
        _
      // Predicated region
      $region65: #{classifier_forward.1} parent=11 // pred_check
        %p492 = pneg %p370
      $region66: #{classifier_forward.1} parent=11 // pred_check_branch
        %494 = sbr.rel (%p492) target = $region68
      $region67: #{classifier_forward.1} parent=11 // pred_region
        _
      $region68: #{classifier_forward.1} parent=11 // pred_fallthru
        _
      // Predicated region
      $region69: #{classifier_forward.1} parent=11 // pred_check
        %p495 = pneg %p391
      $region70: #{classifier_forward.1} parent=11 // pred_check_branch
        %497 = sbr.rel (%p495) target = $region72
      $region71: #{classifier_forward.1} parent=11 // pred_region
        _
      $region72: #{classifier_forward.1} parent=11 // pred_fallthru
        _
      // Predicated region
      $region73: #{classifier_forward.1} parent=11 // pred_check
        %p498 = pneg %p412
      $region74: #{classifier_forward.1} parent=11 // pred_check_branch
        %500 = sbr.rel (%p498) target = $region76
      $region75: #{classifier_forward.1} parent=11 // pred_region
        _
      $region76: #{classifier_forward.1} parent=11 // pred_fallthru
        _
    $region12: #{classifier_forward.1} parent=5 // pred_fallthru
      _
    %p501 = scmp.lt.s32.totalorder %s24, 2
    // Predicated region
    $region77: #{classifier_forward.1} parent=5 // pred_check
      %p502 = pneg %p501
    $region78: #{classifier_forward.1} parent=5 // pred_check_branch
      %504 = sbr.rel (%p502) target = $region80
    $region79: #{classifier_forward.1} parent=5 // pred_region
      // Predicated region
      $region81: #{classifier_forward.1} parent=79 // pred_check
        %p505 = pneg %p44
      $region82: #{classifier_forward.1} parent=79 // pred_check_branch
        %507 = sbr.rel (%p505) target = $region84
      $region83: #{classifier_forward.1} parent=79 // pred_region
        %p508 = scmp.lt.s32.totalorder %s24, 1
        %s509 = scalar_select %p508, %s24, 1
        %s510 = smul.addr %s509, 8
        %s511 = scalar_lea.vmem %s0, %s510
      $region84: #{classifier_forward.1} parent=79 // pred_fallthru
        _
      // Predicated region
      $region85: #{classifier_forward.1} parent=79 // pred_check
        %p512 = pneg %p70
      $region86: #{classifier_forward.1} parent=79 // pred_check_branch
        %514 = sbr.rel (%p512) target = $region88
      $region87: #{classifier_forward.1} parent=79 // pred_region
        %p515 = scmp.lt.s32.totalorder %s24, 1
        %s516 = scalar_select %p515, %s24, 1
        %s517 = scalar_lea.vmem %s1, %s516
      $region88: #{classifier_forward.1} parent=79 // pred_fallthru
        _
    $region80: #{classifier_forward.1} parent=5 // pred_fallthru
      _
    %p518 = scmp.le.s32.totalorder 1, %s24
    %p519 = scmp.lt.s32.totalorder %s24, 3
    %p520 = pnand %p518, %p519
    %p521 = pneg %p520
    // Predicated region
    $region89: #{classifier_forward.1} parent=5 // pred_check
      _
    $region90: #{classifier_forward.1} parent=5 // pred_check_branch
      %523 = sbr.rel (%p520) target = $region92
    $region91: #{classifier_forward.1} parent=5 // pred_region
      %s524 = ssub.s32 %s24, 1
      %p525 = scmp.lt.s32.totalorder %s29, 1
      %s526 = scalar_select %p525, %s29, 1
      %s527 = smul.addr %s526, 8
      %s528 = scalar_lea.vmem %s0, %s527
      %p529 = pneg %p50
      %p530 = pneg %p47
      %p531 = scmp.lt.s32.totalorder %s29, 1
      %s532 = scalar_select %p531, %s29, 1
      %s533 = scalar_lea.vmem %s1, %s532
      %p534 = pneg %p76
      %p535 = pneg %p73
      %p536 = pneg %p97
      %p537 = pneg %p94
      %p538 = pneg %p118
      %p539 = pneg %p115
      %p540 = pneg %p139
      %p541 = pneg %p136
      %p542 = pneg %p160
      %p543 = pneg %p157
      %p544 = pneg %p181
      %p545 = pneg %p178
      %p546 = pneg %p202
      %p547 = pneg %p199
      %p548 = pneg %p223
      %p549 = pneg %p220
      %p550 = pneg %p244
      %p551 = pneg %p241
      %p552 = pneg %p265
      %p553 = pneg %p262
      %p554 = pneg %p286
      %p555 = pneg %p283
      %p556 = pneg %p307
      %p557 = pneg %p304
      %p558 = pneg %p328
      %p559 = pneg %p325
      %p560 = pneg %p349
      %p561 = pneg %p346
      %p562 = pneg %p370
      %p563 = pneg %p367
      %p564 = pneg %p391
      %p565 = pneg %p388
      %p566 = pneg %p412
      %p567 = pneg %p409
      %p568 = pneg %p438
      %p569 = pneg %p435
      %p570 = scmp.lt.s32.totalorder %s29, 1
      %s571 = scalar_select %p570, %s29, 1
      %s572 = scalar_lea.vmem %s18, %s571
      %p573 = scmp.lt.s32.totalorder %s29, 1
      %s574 = scalar_select %p573, %s29, 1
      %s575 = smul.addr %s574, 8
      %s576 = scalar_lea.vmem %s0, %s575
      %p577 = scmp.lt.s32.totalorder %s29, 1
      %s578 = scalar_select %p577, %s29, 1
      %s579 = scalar_lea.vmem %s1, %s578
      %p580 = scmp.lt.s32.totalorder %s29, 1
      %s581 = scalar_select %p580, %s29, 1
      %s582 = scalar_lea.vmem %s18, %s581
      %v585 = vld [vmem:[%s579] sm:$0x1]
      %v586 = vld [vmem:[%s576] sm:$0xff]
      %v587 = vld [vmem:[%s2] sm:$0xf]
      %v588 = vpack.c.bf16 %v586, %v586
      %vm589 = vcmask 64512
      %v591 = vsel %vm589, %v588, 0
      %vm593 = vcmask 1043456
      %v595 = vsel %vm593, %v587, 0
      %597 = vmatprep.subr.bf16.mxu0 0
      %598 = vmatpush1.bf16.msra.mxu0 0
      %599 = vmatprep.subr.bf16.mxu0 0
      %600 = vmatpush1.bf16.msra.mxu0 0
      %601 = vmatprep.subr.bf16.mxu0 0
      %602 = vmatpush1.bf16.msra.mxu0 0
      %603 = vmatprep.subr.bf16.mxu0 0
      %604 = vmatpush1.bf16.msra.mxu0 0
      %605 = vmatprep.subr.bf16.mxu0 0
      %606 = vmatpush1.bf16.msra.mxu0 0
      %607 = vmatprep.subr.bf16.mxu0 0
      %608 = vmatpush1.bf16.msra.mxu0 0
      %609 = vmatprep.subr.bf16.mxu0 0
      %610 = vmatpush1.bf16.msra.mxu0 0
      %611 = vmatprep.subr.bf16.mxu0 0
      %612 = vmatpush1.bf16.msra.mxu0 %v595
      %613 = vmatprep.subr.bf16.mxu0 0
      %614 = vmatpush2.bf16.msra.mxu0 0
      %615 = vmatprep.subr.bf16.mxu0 0
      %616 = vmatpush2.bf16.msra.mxu0 0
      %617 = vmatprep.subr.bf16.mxu0 0
      %618 = vmatpush2.bf16.msra.mxu0 0
      %619 = vmatprep.subr.bf16.mxu0 0
      %620 = vmatpush2.bf16.msra.mxu0 0
      %621 = vmatprep.subr.bf16.mxu0 0
      %622 = vmatpush2.bf16.msra.mxu0 0
      %623 = vmatprep.subr.bf16.mxu0 0
      %624 = vmatpush2.bf16.msra.mxu0 0
      %625 = vmatprep.subr.bf16.mxu0 0
      %626 = vmatpush2.bf16.msra.mxu0 0
      %627 = vmatprep.subr.bf16.mxu0 0
      %628 = vmatpush2.bf16.msra.mxu0 0
      %629 = vmatprep.mubr.bf16.mxu0 0
      %630 = vmatmul.mubr.bf16.gmra.mxu0 %v591
      %v631 = vpop.f32.mrf.mxu0
      %v632 = vadd.f32 0.0, %v631
      %v633 = vpop.f32.mrf.mxu0
      %v634 = vpop.f32.mrf.mxu0
      %v635 = vpop.f32.mrf.mxu0
      %636 = vdwg.mxu0
      %v637 = vld [vmem:[%s3] sm:$0x1]
      %v638 = vmul.f32 %v632, %v632
      %vm639 = vcmask 261120
      %v640 = vsel %vm639, %v638, 0.0
      %641 = vadd.xlane.f32.xlu0 %v640
      %v642 = vpop.xlane.xlu0 %641
      %v643 = vrcp.pop 32.0
      %v644 = vmul.f32 %v642, %v643
      %v645 = vadd.f32 %v644, 1e-06
      %v646 = vrsqrt.pop %v645
      %v647 = vmul.f32 %v632, %v646
      %v649 = vlaneseq
      %v650 = vshrl.u32 %v649, 7
      %v651 = vsub.s32 0, %v650
      %v652 = vrot.slane %v637, %v651
      %v654 = vmul.f32 %v647, %v652
      %v655 = vld [vmem:[%s4] sm:$0x1]
      %v656 = vmul.f32 %v654, %v654
      %v657 = vsel %vm639, %v656, 0.0
      %658 = vadd.xlane.f32.xlu0 %v657
      %v659 = vpop.xlane.xlu0 %658
      %v660 = vmul.f32 %v659, %v643
      %v661 = vadd.f32 %v660, 1e-06
      %v662 = vrsqrt.pop %v661
      %v663 = vmul.f32 %v654, %v662
      %v665 = vlaneseq
      %v666 = vshrl.u32 %v665, 7
      %v667 = vsub.s32 0, %v666
      %v668 = vrot.slane %v655, %v667
      %v670 = vmul.f32 %v663, %v668
      %v671 = vpack.c.bf16 %v670, %v670
      %v672 = vld [vmem:[%s5] sm:$0xf]
      %v673 = vld [vmem:[%s5 + $0x4] sm:$0xf]
      %v674 = vld [vmem:[%s5 + $0x8] sm:$0xf]
      %v675 = vld [vmem:[%s5 + $0xc] sm:$0xf]
      %v680 = vunpack.c.l.b16 %v672
      %v681 = vunpack.c.l.b16 %v673
      %v682 = vunpack.c.l.b16 %v674
      %v683 = vunpack.c.l.b16 %v675
      %v684 = vpack.c.b16 %v681, %v680
      %v685 = vpack.c.b16 %v683, %v682
      %v689 = vsel %vm639, %v671, 0
      %691 = vmatprep.subr.bf16.mxu0 0
      %692 = vmatpush1.bf16.msra.mxu0 0
      %693 = vmatprep.subr.bf16.mxu0 0
      %694 = vmatpush1.bf16.msra.mxu0 0
      %695 = vmatprep.subr.bf16.mxu0 0
      %696 = vmatpush1.bf16.msra.mxu0 0
      %697 = vmatprep.subr.bf16.mxu0 0
      %698 = vmatpush1.bf16.msra.mxu0 0
      %699 = vmatprep.subr.bf16.mxu0 0
      %700 = vmatpush1.bf16.msra.mxu0 0
      %701 = vmatprep.subr.bf16.mxu0 0
      %702 = vmatpush1.bf16.msra.mxu0 0
      %703 = vmatprep.subr.bf16.mxu0 0
      %704 = vmatpush1.bf16.msra.mxu0 %v685
      %705 = vmatprep.subr.bf16.mxu0 0
      %706 = vmatpush1.bf16.msra.mxu0 %v684
      %707 = vmatprep.subr.bf16.mxu0 0
      %708 = vmatpush2.bf16.msra.mxu0 0
      %709 = vmatprep.subr.bf16.mxu0 0
      %710 = vmatpush2.bf16.msra.mxu0 0
      %711 = vmatprep.subr.bf16.mxu0 0
      %712 = vmatpush2.bf16.msra.mxu0 0
      %713 = vmatprep.subr.bf16.mxu0 0
      %714 = vmatpush2.bf16.msra.mxu0 0
      %715 = vmatprep.subr.bf16.mxu0 0
      %716 = vmatpush2.bf16.msra.mxu0 0
      %717 = vmatprep.subr.bf16.mxu0 0
      %718 = vmatpush2.bf16.msra.mxu0 0
      %719 = vmatprep.subr.bf16.mxu0 0
      %720 = vmatpush2.bf16.msra.mxu0 0
      %721 = vmatprep.subr.bf16.mxu0 0
      %722 = vmatpush2.bf16.msra.mxu0 0
      %723 = vmatprep.mubr.bf16.mxu0 0
      %724 = vmatmul.mubr.bf16.gmra.mxu0 %v689
      %v725 = vpop.f32.mrf.mxu0
      %v726 = vadd.f32 0.0, %v725
      %v727 = vpop.f32.mrf.mxu0
      %v728 = vpop.f32.mrf.mxu0
      %v729 = vpop.f32.mrf.mxu0
      %730 = vdwg.mxu0
      %v731 = vpack.c.bf16 %v726, %v726
      %v732 = vld [vmem:[%s6] sm:$0xf]
      %v733 = vld [vmem:[%s6 + $0x4] sm:$0xf]
      %v734 = vld [vmem:[%s6 + $0x8] sm:$0xf]
      %v735 = vld [vmem:[%s6 + $0xc] sm:$0xf]
      %v740 = vunpack.c.l.b16 %v732
      %v741 = vunpack.c.l.b16 %v733
      %v742 = vunpack.c.l.b16 %v734
      %v743 = vunpack.c.l.b16 %v735
      %v744 = vpack.c.b16 %v741, %v740
      %v745 = vpack.c.b16 %v743, %v742
      %748 = vmatprep.subr.bf16.mxu0 0
      %749 = vmatpush1.bf16.msra.mxu0 0
      %750 = vmatprep.subr.bf16.mxu0 0
      %751 = vmatpush1.bf16.msra.mxu0 0
      %752 = vmatprep.subr.bf16.mxu0 0
      %753 = vmatpush1.bf16.msra.mxu0 0
      %754 = vmatprep.subr.bf16.mxu0 0
      %755 = vmatpush1.bf16.msra.mxu0 0
      %756 = vmatprep.subr.bf16.mxu0 0
      %757 = vmatpush1.bf16.msra.mxu0 0
      %758 = vmatprep.subr.bf16.mxu0 0
      %759 = vmatpush1.bf16.msra.mxu0 0
      %760 = vmatprep.subr.bf16.mxu0 0
      %761 = vmatpush1.bf16.msra.mxu0 %v745
      %762 = vmatprep.subr.bf16.mxu0 0
      %763 = vmatpush1.bf16.msra.mxu0 %v744
      %764 = vmatprep.subr.bf16.mxu0 0
      %765 = vmatpush2.bf16.msra.mxu0 0
      %766 = vmatprep.subr.bf16.mxu0 0
      %767 = vmatpush2.bf16.msra.mxu0 0
      %768 = vmatprep.subr.bf16.mxu0 0
      %769 = vmatpush2.bf16.msra.mxu0 0
      %770 = vmatprep.subr.bf16.mxu0 0
      %771 = vmatpush2.bf16.msra.mxu0 0
      %772 = vmatprep.subr.bf16.mxu0 0
      %773 = vmatpush2.bf16.msra.mxu0 0
      %774 = vmatprep.subr.bf16.mxu0 0
      %775 = vmatpush2.bf16.msra.mxu0 0
      %776 = vmatprep.subr.bf16.mxu0 0
      %777 = vmatpush2.bf16.msra.mxu0 0
      %778 = vmatprep.subr.bf16.mxu0 0
      %779 = vmatpush2.bf16.msra.mxu0 0
      %780 = vmatprep.mubr.bf16.mxu0 0
      %781 = vmatmul.mubr.bf16.gmra.mxu0 %v689
      %v782 = vpop.f32.mrf.mxu0
      %v783 = vadd.f32 0.0, %v782
      %v784 = vpop.f32.mrf.mxu0
      %v785 = vpop.f32.mrf.mxu0
      %v786 = vpop.f32.mrf.mxu0
      %787 = vdwg.mxu0
      %v788 = vpack.c.bf16 %v783, %v783
      %v789 = vld [vmem:[%s7] sm:$0xf]
      %v790 = vld [vmem:[%s7 + $0x4] sm:$0xf]
      %v791 = vld [vmem:[%s7 + $0x8] sm:$0xf]
      %v792 = vld [vmem:[%s7 + $0xc] sm:$0xf]
      %v797 = vunpack.c.l.b16 %v789
      %v798 = vunpack.c.l.b16 %v790
      %v799 = vunpack.c.l.b16 %v791
      %v800 = vunpack.c.l.b16 %v792
      %v801 = vpack.c.b16 %v798, %v797
      %v802 = vpack.c.b16 %v800, %v799
      %805 = vmatprep.subr.bf16.mxu0 0
      %806 = vmatpush1.bf16.msra.mxu0 0
      %807 = vmatprep.subr.bf16.mxu0 0
      %808 = vmatpush1.bf16.msra.mxu0 0
      %809 = vmatprep.subr.bf16.mxu0 0
      %810 = vmatpush1.bf16.msra.mxu0 0
      %811 = vmatprep.subr.bf16.mxu0 0
      %812 = vmatpush1.bf16.msra.mxu0 0
      %813 = vmatprep.subr.bf16.mxu0 0
      %814 = vmatpush1.bf16.msra.mxu0 0
      %815 = vmatprep.subr.bf16.mxu0 0
      %816 = vmatpush1.bf16.msra.mxu0 0
      %817 = vmatprep.subr.bf16.mxu0 0
      %818 = vmatpush1.bf16.msra.mxu0 %v802
      %819 = vmatprep.subr.bf16.mxu0 0
      %820 = vmatpush1.bf16.msra.mxu0 %v801
      %821 = vmatprep.subr.bf16.mxu0 0
      %822 = vmatpush2.bf16.msra.mxu0 0
      %823 = vmatprep.subr.bf16.mxu0 0
      %824 = vmatpush2.bf16.msra.mxu0 0
      %825 = vmatprep.subr.bf16.mxu0 0
      %826 = vmatpush2.bf16.msra.mxu0 0
      %827 = vmatprep.subr.bf16.mxu0 0
      %828 = vmatpush2.bf16.msra.mxu0 0
      %829 = vmatprep.subr.bf16.mxu0 0
      %830 = vmatpush2.bf16.msra.mxu0 0
      %831 = vmatprep.subr.bf16.mxu0 0
      %832 = vmatpush2.bf16.msra.mxu0 0
      %833 = vmatprep.subr.bf16.mxu0 0
      %834 = vmatpush2.bf16.msra.mxu0 0
      %835 = vmatprep.subr.bf16.mxu0 0
      %836 = vmatpush2.bf16.msra.mxu0 0
      %837 = vmatprep.mubr.bf16.mxu0 0
      %838 = vmatmul.mubr.bf16.gmra.mxu0 %v689
      %v839 = vpop.f32.mrf.mxu0
      %v840 = vadd.f32 0.0, %v839
      %v841 = vpop.f32.mrf.mxu0
      %v842 = vpop.f32.mrf.mxu0
      %v843 = vpop.f32.mrf.mxu0
      %844 = vdwg.mxu0
      %v845 = vpack.c.bf16 %v840, %v840
      %v847 = vsel %vm589, %v731, 0
      %v850 = vsel %vm589, %v788, 0
      %852 = vmatprep.subr.bf16.mxu0 0
      %853 = vmatpush1.bf16.xpose.msra.mxu0 0
      %854 = vmatprep.subr.bf16.mxu0 0
      %855 = vmatpush1.bf16.xpose.msra.mxu0 0
      %856 = vmatprep.subr.bf16.mxu0 0
      %857 = vmatpush1.bf16.xpose.msra.mxu0 0
      %858 = vmatprep.subr.bf16.mxu0 0
      %859 = vmatpush1.bf16.xpose.msra.mxu0 0
      %860 = vmatprep.subr.bf16.mxu0 0
      %861 = vmatpush1.bf16.xpose.msra.mxu0 0
      %862 = vmatprep.subr.bf16.mxu0 0
      %863 = vmatpush1.bf16.xpose.msra.mxu0 0
      %864 = vmatprep.subr.bf16.mxu0 0
      %865 = vmatpush1.bf16.xpose.msra.mxu0 0
      %866 = vmatprep.subr.bf16.mxu0 0
      %867 = vmatpush1.bf16.xpose.msra.mxu0 %v850
      %868 = vmatprep.subr.bf16.mxu0 0
      %869 = vmatpush2.bf16.xpose.msra.mxu0 0
      %870 = vmatprep.subr.bf16.mxu0 0
      %871 = vmatpush2.bf16.xpose.msra.mxu0 0
      %872 = vmatprep.subr.bf16.mxu0 0
      %873 = vmatpush2.bf16.xpose.msra.mxu0 0
      %874 = vmatprep.subr.bf16.mxu0 0
      %875 = vmatpush2.bf16.xpose.msra.mxu0 0
      %876 = vmatprep.subr.bf16.mxu0 0
      %877 = vmatpush2.bf16.xpose.msra.mxu0 0
      %878 = vmatprep.subr.bf16.mxu0 0
      %879 = vmatpush2.bf16.xpose.msra.mxu0 0
      %880 = vmatprep.subr.bf16.mxu0 0
      %881 = vmatpush2.bf16.xpose.msra.mxu0 0
      %882 = vmatprep.subr.bf16.mxu0 0
      %883 = vmatpush2.bf16.xpose.msra.mxu0 0
      %884 = vmatprep.mubr.bf16.mxu0 0
      %885 = vmatmul.mubr.bf16.gmra.mxu0 %v847
      %v886 = vpop.f32.mrf.mxu0
      %v887 = vadd.f32 0.0, %v886
      %v888 = vpop.f32.mrf.mxu0
      %v889 = vpop.f32.mrf.mxu0
      %v890 = vpop.f32.mrf.mxu0
      %891 = vdwg.mxu0
      %v892 = vmul.f32 %v887, 0.35355338
      %v894 = vlaneseq
      %v895 = vshrl.u32 %v894, 7
      %v896 = vsub.s32 0, %v895
      %v897 = vrot.slane %v585, %v896
      %v899 = vadd.f32 %v892, %v897
      %v900 = vsel %vm589, %v899, -inf
      %901 = vmax.xlane.f32.xlu0 %v900
      %v902 = vpop.xlane.xlu0 %901
      %v903 = vsub.f32 %v899, %v902
      %v904 = vmul.f32 %v903, 1.442695
      %v905 = vpow.pop %v904
      %v906 = vsel %vm589, %v905, 0.0
      %907 = vadd.xlane.f32.xlu0 %v906
      %v908 = vpop.xlane.xlu0 %907
      %v909 = vrcp.pop %v908
      %v910 = vmul.f32 %v905, %v909
      %v911 = vpack.c.bf16 %v910, %v910
      %v913 = vsel %vm589, %v911, 0
      %v916 = vsel %vm593, %v845, 0
      %918 = vmatprep.subr.bf16.mxu0 0
      %919 = vmatpush1.bf16.msra.mxu0 0
      %920 = vmatprep.subr.bf16.mxu0 0
      %921 = vmatpush1.bf16.msra.mxu0 0
      %922 = vmatprep.subr.bf16.mxu0 0
      %923 = vmatpush1.bf16.msra.mxu0 0
      %924 = vmatprep.subr.bf16.mxu0 0
      %925 = vmatpush1.bf16.msra.mxu0 0
      %926 = vmatprep.subr.bf16.mxu0 0
      %927 = vmatpush1.bf16.msra.mxu0 0
      %928 = vmatprep.subr.bf16.mxu0 0
      %929 = vmatpush1.bf16.msra.mxu0 0
      %930 = vmatprep.subr.bf16.mxu0 0
      %931 = vmatpush1.bf16.msra.mxu0 0
      %932 = vmatprep.subr.bf16.mxu0 0
      %933 = vmatpush1.bf16.msra.mxu0 %v916
      %934 = vmatprep.subr.bf16.mxu0 0
      %935 = vmatpush2.bf16.msra.mxu0 0
      %936 = vmatprep.subr.bf16.mxu0 0
      %937 = vmatpush2.bf16.msra.mxu0 0
      %938 = vmatprep.subr.bf16.mxu0 0
      %939 = vmatpush2.bf16.msra.mxu0 0
      %940 = vmatprep.subr.bf16.mxu0 0
      %941 = vmatpush2.bf16.msra.mxu0 0
      %942 = vmatprep.subr.bf16.mxu0 0
      %943 = vmatpush2.bf16.msra.mxu0 0
      %944 = vmatprep.subr.bf16.mxu0 0
      %945 = vmatpush2.bf16.msra.mxu0 0
      %946 = vmatprep.subr.bf16.mxu0 0
      %947 = vmatpush2.bf16.msra.mxu0 0
      %948 = vmatprep.subr.bf16.mxu0 0
      %949 = vmatpush2.bf16.msra.mxu0 0
      %950 = vmatprep.mubr.bf16.mxu0 0
      %951 = vmatmul.mubr.bf16.gmra.mxu0 %v913
      %v952 = vpop.f32.mrf.mxu0
      %v953 = vadd.f32 0.0, %v952
      %v954 = vpop.f32.mrf.mxu0
      %v955 = vpop.f32.mrf.mxu0
      %v956 = vpop.f32.mrf.mxu0
      %957 = vdwg.mxu0
      %v958 = vld [vmem:[%s8] sm:$0xf]
      %v959 = vpack.c.bf16 %v953, %v953
      %s960 = scalar_lea.vmem %s5, 16
      %v961 = vld [vmem:[%s960] sm:$0xf]
      %v962 = vld [vmem:[%s960 + $0x4] sm:$0xf]
      %v963 = vld [vmem:[%s960 + $0x8] sm:$0xf]
      %v964 = vld [vmem:[%s960 + $0xc] sm:$0xf]
      %v969 = vunpack.c.l.b16 %v961
      %v970 = vunpack.c.l.b16 %v962
      %v971 = vunpack.c.l.b16 %v963
      %v972 = vunpack.c.l.b16 %v964
      %v973 = vpack.c.b16 %v970, %v969
      %v974 = vpack.c.b16 %v972, %v971
      %977 = vmatprep.subr.bf16.mxu0 0
      %978 = vmatpush1.bf16.msra.mxu0 0
      %979 = vmatprep.subr.bf16.mxu0 0
      %980 = vmatpush1.bf16.msra.mxu0 0
      %981 = vmatprep.subr.bf16.mxu0 0
      %982 = vmatpush1.bf16.msra.mxu0 0
      %983 = vmatprep.subr.bf16.mxu0 0
      %984 = vmatpush1.bf16.msra.mxu0 0
      %985 = vmatprep.subr.bf16.mxu0 0
      %986 = vmatpush1.bf16.msra.mxu0 0
      %987 = vmatprep.subr.bf16.mxu0 0
      %988 = vmatpush1.bf16.msra.mxu0 0
      %989 = vmatprep.subr.bf16.mxu0 0
      %990 = vmatpush1.bf16.msra.mxu0 %v974
      %991 = vmatprep.subr.bf16.mxu0 0
      %992 = vmatpush1.bf16.msra.mxu0 %v973
      %993 = vmatprep.subr.bf16.mxu0 0
      %994 = vmatpush2.bf16.msra.mxu0 0
      %995 = vmatprep.subr.bf16.mxu0 0
      %996 = vmatpush2.bf16.msra.mxu0 0
      %997 = vmatprep.subr.bf16.mxu0 0
      %998 = vmatpush2.bf16.msra.mxu0 0
      %999 = vmatprep.subr.bf16.mxu0 0
      %1000 = vmatpush2.bf16.msra.mxu0 0
      %1001 = vmatprep.subr.bf16.mxu0 0
      %1002 = vmatpush2.bf16.msra.mxu0 0
      %1003 = vmatprep.subr.bf16.mxu0 0
      %1004 = vmatpush2.bf16.msra.mxu0 0
      %1005 = vmatprep.subr.bf16.mxu0 0
      %1006 = vmatpush2.bf16.msra.mxu0 0
      %1007 = vmatprep.subr.bf16.mxu0 0
      %1008 = vmatpush2.bf16.msra.mxu0 0
      %1009 = vmatprep.mubr.bf16.mxu0 0
      %1010 = vmatmul.mubr.bf16.gmra.mxu0 %v689
      %v1011 = vpop.f32.mrf.mxu0
      %v1012 = vadd.f32 0.0, %v1011
      %v1013 = vpop.f32.mrf.mxu0
      %v1014 = vpop.f32.mrf.mxu0
      %v1015 = vpop.f32.mrf.mxu0
      %1016 = vdwg.mxu0
      %v1017 = vpack.c.bf16 %v1012, %v1012
      %s1018 = scalar_lea.vmem %s6, 16
      %v1019 = vld [vmem:[%s1018] sm:$0xf]
      %v1020 = vld [vmem:[%s1018 + $0x4] sm:$0xf]
      %v1021 = vld [vmem:[%s1018 + $0x8] sm:$0xf]
      %v1022 = vld [vmem:[%s1018 + $0xc] sm:$0xf]
      %v1027 = vunpack.c.l.b16 %v1019
      %v1028 = vunpack.c.l.b16 %v1020
      %v1029 = vunpack.c.l.b16 %v1021
      %v1030 = vunpack.c.l.b16 %v1022
      %v1031 = vpack.c.b16 %v1028, %v1027
      %v1032 = vpack.c.b16 %v1030, %v1029
      %1035 = vmatprep.subr.bf16.mxu0 0
      %1036 = vmatpush1.bf16.msra.mxu0 0
      %1037 = vmatprep.subr.bf16.mxu0 0
      %1038 = vmatpush1.bf16.msra.mxu0 0
      %1039 = vmatprep.subr.bf16.mxu0 0
      %1040 = vmatpush1.bf16.msra.mxu0 0
      %1041 = vmatprep.subr.bf16.mxu0 0
      %1042 = vmatpush1.bf16.msra.mxu0 0
      %1043 = vmatprep.subr.bf16.mxu0 0
      %1044 = vmatpush1.bf16.msra.mxu0 0
      %1045 = vmatprep.subr.bf16.mxu0 0
      %1046 = vmatpush1.bf16.msra.mxu0 0
      %1047 = vmatprep.subr.bf16.mxu0 0
      %1048 = vmatpush1.bf16.msra.mxu0 %v1032
      %1049 = vmatprep.subr.bf16.mxu0 0
      %1050 = vmatpush1.bf16.msra.mxu0 %v1031
      %1051 = vmatprep.subr.bf16.mxu0 0
      %1052 = vmatpush2.bf16.msra.mxu0 0
      %1053 = vmatprep.subr.bf16.mxu0 0
      %1054 = vmatpush2.bf16.msra.mxu0 0
      %1055 = vmatprep.subr.bf16.mxu0 0
      %1056 = vmatpush2.bf16.msra.mxu0 0
      %1057 = vmatprep.subr.bf16.mxu0 0
      %1058 = vmatpush2.bf16.msra.mxu0 0
      %1059 = vmatprep.subr.bf16.mxu0 0
      %1060 = vmatpush2.bf16.msra.mxu0 0
      %1061 = vmatprep.subr.bf16.mxu0 0
      %1062 = vmatpush2.bf16.msra.mxu0 0
      %1063 = vmatprep.subr.bf16.mxu0 0
      %1064 = vmatpush2.bf16.msra.mxu0 0
      %1065 = vmatprep.subr.bf16.mxu0 0
      %1066 = vmatpush2.bf16.msra.mxu0 0
      %1067 = vmatprep.mubr.bf16.mxu0 0
      %1068 = vmatmul.mubr.bf16.gmra.mxu0 %v689
      %v1069 = vpop.f32.mrf.mxu0
      %v1070 = vadd.f32 0.0, %v1069
      %v1071 = vpop.f32.mrf.mxu0
      %v1072 = vpop.f32.mrf.mxu0
      %v1073 = vpop.f32.mrf.mxu0
      %1074 = vdwg.mxu0
      %v1075 = vpack.c.bf16 %v1070, %v1070
      %s1076 = scalar_lea.vmem %s7, 16
      %v1077 = vld [vmem:[%s1076] sm:$0xf]
      %v1078 = vld [vmem:[%s1076 + $0x4] sm:$0xf]
      %v1079 = vld [vmem:[%s1076 + $0x8] sm:$0xf]
      %v1080 = vld [vmem:[%s1076 + $0xc] sm:$0xf]
      %v1085 = vunpack.c.l.b16 %v1077
      %v1086 = vunpack.c.l.b16 %v1078
      %v1087 = vunpack.c.l.b16 %v1079
      %v1088 = vunpack.c.l.b16 %v1080
      %v1089 = vpack.c.b16 %v1086, %v1085
      %v1090 = vpack.c.b16 %v1088, %v1087
      %1093 = vmatprep.subr.bf16.mxu0 0
      %1094 = vmatpush1.bf16.msra.mxu0 0
      %1095 = vmatprep.subr.bf16.mxu0 0
      %1096 = vmatpush1.bf16.msra.mxu0 0
      %1097 = vmatprep.subr.bf16.mxu0 0
      %1098 = vmatpush1.bf16.msra.mxu0 0
      %1099 = vmatprep.subr.bf16.mxu0 0
      %1100 = vmatpush1.bf16.msra.mxu0 0
      %1101 = vmatprep.subr.bf16.mxu0 0
      %1102 = vmatpush1.bf16.msra.mxu0 0
      %1103 = vmatprep.subr.bf16.mxu0 0
      %1104 = vmatpush1.bf16.msra.mxu0 0
      %1105 = vmatprep.subr.bf16.mxu0 0
      %1106 = vmatpush1.bf16.msra.mxu0 %v1090
      %1107 = vmatprep.subr.bf16.mxu0 0
      %1108 = vmatpush1.bf16.msra.mxu0 %v1089
      %1109 = vmatprep.subr.bf16.mxu0 0
      %1110 = vmatpush2.bf16.msra.mxu0 0
      %1111 = vmatprep.subr.bf16.mxu0 0
      %1112 = vmatpush2.bf16.msra.mxu0 0
      %1113 = vmatprep.subr.bf16.mxu0 0
      %1114 = vmatpush2.bf16.msra.mxu0 0
      %1115 = vmatprep.subr.bf16.mxu0 0
      %1116 = vmatpush2.bf16.msra.mxu0 0
      %1117 = vmatprep.subr.bf16.mxu0 0
      %1118 = vmatpush2.bf16.msra.mxu0 0
      %1119 = vmatprep.subr.bf16.mxu0 0
      %1120 = vmatpush2.bf16.msra.mxu0 0
      %1121 = vmatprep.subr.bf16.mxu0 0
      %1122 = vmatpush2.bf16.msra.mxu0 0
      %1123 = vmatprep.subr.bf16.mxu0 0
      %1124 = vmatpush2.bf16.msra.mxu0 0
      %1125 = vmatprep.mubr.bf16.mxu0 0
      %1126 = vmatmul.mubr.bf16.gmra.mxu0 %v689
      %v1127 = vpop.f32.mrf.mxu0
      %v1128 = vadd.f32 0.0, %v1127
      %v1129 = vpop.f32.mrf.mxu0
      %v1130 = vpop.f32.mrf.mxu0
      %v1131 = vpop.f32.mrf.mxu0
      %1132 = vdwg.mxu0
      %v1133 = vpack.c.bf16 %v1128, %v1128
      %v1135 = vsel %vm589, %v1017, 0
      %v1138 = vsel %vm589, %v1075, 0
      %1140 = vmatprep.subr.bf16.mxu0 0
      %1141 = vmatpush1.bf16.xpose.msra.mxu0 0
      %1142 = vmatprep.subr.bf16.mxu0 0
      %1143 = vmatpush1.bf16.xpose.msra.mxu0 0
      %1144 = vmatprep.subr.bf16.mxu0 0
      %1145 = vmatpush1.bf16.xpose.msra.mxu0 0
      %1146 = vmatprep.subr.bf16.mxu0 0
      %1147 = vmatpush1.bf16.xpose.msra.mxu0 0
      %1148 = vmatprep.subr.bf16.mxu0 0
      %1149 = vmatpush1.bf16.xpose.msra.mxu0 0
      %1150 = vmatprep.subr.bf16.mxu0 0
      %1151 = vmatpush1.bf16.xpose.msra.mxu0 0
      %1152 = vmatprep.subr.bf16.mxu0 0
      %1153 = vmatpush1.bf16.xpose.msra.mxu0 0
      %1154 = vmatprep.subr.bf16.mxu0 0
      %1155 = vmatpush1.bf16.xpose.msra.mxu0 %v1138
      %1156 = vmatprep.subr.bf16.mxu0 0
      %1157 = vmatpush2.bf16.xpose.msra.mxu0 0
      %1158 = vmatprep.subr.bf16.mxu0 0
      %1159 = vmatpush2.bf16.xpose.msra.mxu0 0
      %1160 = vmatprep.subr.bf16.mxu0 0
      %1161 = vmatpush2.bf16.xpose.msra.mxu0 0
      %1162 = vmatprep.subr.bf16.mxu0 0
      %1163 = vmatpush2.bf16.xpose.msra.mxu0 0
      %1164 = vmatprep.subr.bf16.mxu0 0
      %1165 = vmatpush2.bf16.xpose.msra.mxu0 0
      %1166 = vmatprep.subr.bf16.mxu0 0
      %1167 = vmatpush2.bf16.xpose.msra.mxu0 0
      %1168 = vmatprep.subr.bf16.mxu0 0
      %1169 = vmatpush2.bf16.xpose.msra.mxu0 0
      %1170 = vmatprep.subr.bf16.mxu0 0
      %1171 = vmatpush2.bf16.xpose.msra.mxu0 0
      %1172 = vmatprep.mubr.bf16.mxu0 0
      %1173 = vmatmul.mubr.bf16.gmra.mxu0 %v1135
      %v1174 = vpop.f32.mrf.mxu0
      %v1175 = vadd.f32 0.0, %v1174
      %v1176 = vpop.f32.mrf.mxu0
      %v1177 = vpop.f32.mrf.mxu0
      %v1178 = vpop.f32.mrf.mxu0
      %1179 = vdwg.mxu0
      %v1180 = vmul.f32 %v1175, 0.35355338
      %v1181 = vadd.f32 %v1180, %v897
      %v1182 = vsel %vm589, %v1181, -inf
      %1183 = vmax.xlane.f32.xlu0 %v1182
      %v1184 = vpop.xlane.xlu0 %1183
      %v1185 = vsub.f32 %v1181, %v1184
      %v1186 = vmul.f32 %v1185, 1.442695
      %v1187 = vpow.pop %v1186
      %v1188 = vsel %vm589, %v1187, 0.0
      %1189 = vadd.xlane.f32.xlu0 %v1188
      %v1190 = vpop.xlane.xlu0 %1189
      %v1191 = vrcp.pop %v1190
      %v1192 = vmul.f32 %v1187, %v1191
      %v1193 = vpack.c.bf16 %v1192, %v1192
      %v1195 = vsel %vm589, %v1193, 0
      %v1198 = vsel %vm593, %v1133, 0
      %1200 = vmatprep.subr.bf16.mxu0 0
      %1201 = vmatpush1.bf16.msra.mxu0 0
      %1202 = vmatprep.subr.bf16.mxu0 0
      %1203 = vmatpush1.bf16.msra.mxu0 0
      %1204 = vmatprep.subr.bf16.mxu0 0
      %1205 = vmatpush1.bf16.msra.mxu0 0
      %1206 = vmatprep.subr.bf16.mxu0 0
      %1207 = vmatpush1.bf16.msra.mxu0 0
      %1208 = vmatprep.subr.bf16.mxu0 0
      %1209 = vmatpush1.bf16.msra.mxu0 0
      %1210 = vmatprep.subr.bf16.mxu0 0
      %1211 = vmatpush1.bf16.msra.mxu0 0
      %1212 = vmatprep.subr.bf16.mxu0 0
      %1213 = vmatpush1.bf16.msra.mxu0 0
      %1214 = vmatprep.subr.bf16.mxu0 0
      %1215 = vmatpush1.bf16.msra.mxu0 %v1198
      %1216 = vmatprep.subr.bf16.mxu0 0
      %1217 = vmatpush2.bf16.msra.mxu0 0
      %1218 = vmatprep.subr.bf16.mxu0 0
      %1219 = vmatpush2.bf16.msra.mxu0 0
      %1220 = vmatprep.subr.bf16.mxu0 0
      %1221 = vmatpush2.bf16.msra.mxu0 0
      %1222 = vmatprep.subr.bf16.mxu0 0
      %1223 = vmatpush2.bf16.msra.mxu0 0
      %1224 = vmatprep.subr.bf16.mxu0 0
      %1225 = vmatpush2.bf16.msra.mxu0 0
      %1226 = vmatprep.subr.bf16.mxu0 0
      %1227 = vmatpush2.bf16.msra.mxu0 0
      %1228 = vmatprep.subr.bf16.mxu0 0
      %1229 = vmatpush2.bf16.msra.mxu0 0
      %1230 = vmatprep.subr.bf16.mxu0 0
      %1231 = vmatpush2.bf16.msra.mxu0 0
      %1232 = vmatprep.mubr.bf16.mxu0 0
      %1233 = vmatmul.mubr.bf16.gmra.mxu0 %v1195
      %v1234 = vpop.f32.mrf.mxu0
      %v1235 = vadd.f32 0.0, %v1234
      %v1236 = vpop.f32.mrf.mxu0
      %v1237 = vpop.f32.mrf.mxu0
      %v1238 = vpop.f32.mrf.mxu0
      %1239 = vdwg.mxu0
      %s1240 = scalar_lea.vmem %s8, 4
      %v1241 = vld [vmem:[%s1240] sm:$0xf]
      %v1242 = vpack.c.bf16 %v1235, %v1235
      %v1244 = vsel %vm589, %v1242, 0
      %v1247 = vsel %vm593, %v1241, 0
      %1249 = vmatprep.subr.bf16.mxu0 0
      %1250 = vmatpush1.bf16.msra.mxu0 0
      %1251 = vmatprep.subr.bf16.mxu0 0
      %1252 = vmatpush1.bf16.msra.mxu0 0
      %1253 = vmatprep.subr.bf16.mxu0 0
      %1254 = vmatpush1.bf16.msra.mxu0 0
      %1255 = vmatprep.subr.bf16.mxu0 0
      %1256 = vmatpush1.bf16.msra.mxu0 0
      %1257 = vmatprep.subr.bf16.mxu0 0
      %1258 = vmatpush1.bf16.msra.mxu0 0
      %1259 = vmatprep.subr.bf16.mxu0 0
      %1260 = vmatpush1.bf16.msra.mxu0 0
      %1261 = vmatprep.subr.bf16.mxu0 0
      %1262 = vmatpush1.bf16.msra.mxu0 0
      %1263 = vmatprep.subr.bf16.mxu0 0
      %1264 = vmatpush1.bf16.msra.mxu0 %v1247
      %1265 = vmatprep.subr.bf16.mxu0 0
      %1266 = vmatpush2.bf16.msra.mxu0 0
      %1267 = vmatprep.subr.bf16.mxu0 0
      %1268 = vmatpush2.bf16.msra.mxu0 0
      %1269 = vmatprep.subr.bf16.mxu0 0
      %1270 = vmatpush2.bf16.msra.mxu0 0
      %1271 = vmatprep.subr.bf16.mxu0 0
      %1272 = vmatpush2.bf16.msra.mxu0 0
      %1273 = vmatprep.subr.bf16.mxu0 0
      %1274 = vmatpush2.bf16.msra.mxu0 0
      %1275 = vmatprep.subr.bf16.mxu0 0
      %1276 = vmatpush2.bf16.msra.mxu0 0
      %1277 = vmatprep.subr.bf16.mxu0 0
      %1278 = vmatpush2.bf16.msra.mxu0 0
      %1279 = vmatprep.subr.bf16.mxu0 0
      %1280 = vmatpush2.bf16.msra.mxu0 0
      %1281 = vmatprep.mubr.bf16.mxu0 0
      %1282 = vmatmul.mubr.bf16.gmra.mxu0 %v1244
      %v1283 = vpop.f32.mrf.mxu0
      %v1284 = vadd.f32 0.0, %v1283
      %v1285 = vpop.f32.mrf.mxu0
      %v1286 = vpop.f32.mrf.mxu0
      %v1287 = vpop.f32.mrf.mxu0
      %1288 = vdwg.mxu0
      %v1290 = vsel %vm589, %v959, 0
      %v1293 = vsel %vm593, %v958, 0
      %1295 = vmatprep.subr.bf16.mxu0 0
      %1296 = vmatpush1.bf16.msra.mxu0 0
      %1297 = vmatprep.subr.bf16.mxu0 0
      %1298 = vmatpush1.bf16.msra.mxu0 0
      %1299 = vmatprep.subr.bf16.mxu0 0
      %1300 = vmatpush1.bf16.msra.mxu0 0
      %1301 = vmatprep.subr.bf16.mxu0 0
      %1302 = vmatpush1.bf16.msra.mxu0 0
      %1303 = vmatprep.subr.bf16.mxu0 0
      %1304 = vmatpush1.bf16.msra.mxu0 0
      %1305 = vmatprep.subr.bf16.mxu0 0
      %1306 = vmatpush1.bf16.msra.mxu0 0
      %1307 = vmatprep.subr.bf16.mxu0 0
      %1308 = vmatpush1.bf16.msra.mxu0 0
      %1309 = vmatprep.subr.bf16.mxu0 0
      %1310 = vmatpush1.bf16.msra.mxu0 %v1293
      %1311 = vmatprep.subr.bf16.mxu0 0
      %1312 = vmatpush2.bf16.msra.mxu0 0
      %1313 = vmatprep.subr.bf16.mxu0 0
      %1314 = vmatpush2.bf16.msra.mxu0 0
      %1315 = vmatprep.subr.bf16.mxu0 0
      %1316 = vmatpush2.bf16.msra.mxu0 0
      %1317 = vmatprep.subr.bf16.mxu0 0
      %1318 = vmatpush2.bf16.msra.mxu0 0
      %1319 = vmatprep.subr.bf16.mxu0 0
      %1320 = vmatpush2.bf16.msra.mxu0 0
      %1321 = vmatprep.subr.bf16.mxu0 0
      %1322 = vmatpush2.bf16.msra.mxu0 0
      %1323 = vmatprep.subr.bf16.mxu0 0
      %1324 = vmatpush2.bf16.msra.mxu0 0
      %1325 = vmatprep.subr.bf16.mxu0 0
      %1326 = vmatpush2.bf16.msra.mxu0 0
      %1327 = vmatprep.mubr.bf16.mxu0 0
      %1328 = vmatmul.mubr.bf16.gmra.mxu0 %v1290
      %v1329 = vpop.f32.mrf.mxu0
      %v1330 = vadd.f32 %v1284, %v1329
      %v1331 = vpop.f32.mrf.mxu0
      %v1332 = vpop.f32.mrf.mxu0
      %v1333 = vpop.f32.mrf.mxu0
      %1334 = vdwg.mxu0
      %s1335 = scalar_lea.vmem %s5, 32
      %v1336 = vld [vmem:[%s1335] sm:$0xf]
      %v1337 = vld [vmem:[%s1335 + $0x4] sm:$0xf]
      %v1338 = vld [vmem:[%s1335 + $0x8] sm:$0xf]
      %v1339 = vld [vmem:[%s1335 + $0xc] sm:$0xf]
      %v1344 = vunpack.c.l.b16 %v1336
      %v1345 = vunpack.c.l.b16 %v1337
      %v1346 = vunpack.c.l.b16 %v1338
      %v1347 = vunpack.c.l.b16 %v1339
      %v1348 = vpack.c.b16 %v1345, %v1344
      %v1349 = vpack.c.b16 %v1347, %v1346
      %1352 = vmatprep.subr.bf16.mxu0 0
      %1353 = vmatpush1.bf16.msra.mxu0 0
      %1354 = vmatprep.subr.bf16.mxu0 0
      %1355 = vmatpush1.bf16.msra.mxu0 0
      %1356 = vmatprep.subr.bf16.mxu0 0
      %1357 = vmatpush1.bf16.msra.mxu0 0
      %1358 = vmatprep.subr.bf16.mxu0 0
      %1359 = vmatpush1.bf16.msra.mxu0 0
      %1360 = vmatprep.subr.bf16.mxu0 0
      %1361 = vmatpush1.bf16.msra.mxu0 0
      %1362 = vmatprep.subr.bf16.mxu0 0
      %1363 = vmatpush1.bf16.msra.mxu0 0
      %1364 = vmatprep.subr.bf16.mxu0 0
      %1365 = vmatpush1.bf16.msra.mxu0 %v1349
      %1366 = vmatprep.subr.bf16.mxu0 0
      %1367 = vmatpush1.bf16.msra.mxu0 %v1348
      %1368 = vmatprep.subr.bf16.mxu0 0
      %1369 = vmatpush2.bf16.msra.mxu0 0
      %1370 = vmatprep.subr.bf16.mxu0 0
      %1371 = vmatpush2.bf16.msra.mxu0 0
      %1372 = vmatprep.subr.bf16.mxu0 0
      %1373 = vmatpush2.bf16.msra.mxu0 0
      %1374 = vmatprep.subr.bf16.mxu0 0
      %1375 = vmatpush2.bf16.msra.mxu0 0
      %1376 = vmatprep.subr.bf16.mxu0 0
      %1377 = vmatpush2.bf16.msra.mxu0 0
      %1378 = vmatprep.subr.bf16.mxu0 0
      %1379 = vmatpush2.bf16.msra.mxu0 0
      %1380 = vmatprep.subr.bf16.mxu0 0
      %1381 = vmatpush2.bf16.msra.mxu0 0
      %1382 = vmatprep.subr.bf16.mxu0 0
      %1383 = vmatpush2.bf16.msra.mxu0 0
      %1384 = vmatprep.mubr.bf16.mxu0 0
      %1385 = vmatmul.mubr.bf16.gmra.mxu0 %v689
      %v1386 = vpop.f32.mrf.mxu0
      %v1387 = vadd.f32 0.0, %v1386
      %v1388 = vpop.f32.mrf.mxu0
      %v1389 = vpop.f32.mrf.mxu0
      %v1390 = vpop.f32.mrf.mxu0
      %1391 = vdwg.mxu0
      %v1392 = vpack.c.bf16 %v1387, %v1387
      %s1393 = scalar_lea.vmem %s6, 32
      %v1394 = vld [vmem:[%s1393] sm:$0xf]
      %v1395 = vld [vmem:[%s1393 + $0x4] sm:$0xf]
      %v1396 = vld [vmem:[%s1393 + $0x8] sm:$0xf]
      %v1397 = vld [vmem:[%s1393 + $0xc] sm:$0xf]
      %v1402 = vunpack.c.l.b16 %v1394
      %v1403 = vunpack.c.l.b16 %v1395
      %v1404 = vunpack.c.l.b16 %v1396
      %v1405 = vunpack.c.l.b16 %v1397
      %v1406 = vpack.c.b16 %v1403, %v1402
      %v1407 = vpack.c.b16 %v1405, %v1404
      %1410 = vmatprep.subr.bf16.mxu0 0
      %1411 = vmatpush1.bf16.msra.mxu0 0
      %1412 = vmatprep.subr.bf16.mxu0 0
      %1413 = vmatpush1.bf16.msra.mxu0 0
      %1414 = vmatprep.subr.bf16.mxu0 0
      %1415 = vmatpush1.bf16.msra.mxu0 0
      %1416 = vmatprep.subr.bf16.mxu0 0
      %1417 = vmatpush1.bf16.msra.mxu0 0
      %1418 = vmatprep.subr.bf16.mxu0 0
      %1419 = vmatpush1.bf16.msra.mxu0 0
      %1420 = vmatprep.subr.bf16.mxu0 0
      %1421 = vmatpush1.bf16.msra.mxu0 0
      %1422 = vmatprep.subr.bf16.mxu0 0
      %1423 = vmatpush1.bf16.msra.mxu0 %v1407
      %1424 = vmatprep.subr.bf16.mxu0 0
      %1425 = vmatpush1.bf16.msra.mxu0 %v1406
      %1426 = vmatprep.subr.bf16.mxu0 0
      %1427 = vmatpush2.bf16.msra.mxu0 0
      %1428 = vmatprep.subr.bf16.mxu0 0
      %1429 = vmatpush2.bf16.msra.mxu0 0
      %1430 = vmatprep.subr.bf16.mxu0 0
      %1431 = vmatpush2.bf16.msra.mxu0 0
      %1432 = vmatprep.subr.bf16.mxu0 0
      %1433 = vmatpush2.bf16.msra.mxu0 0
      %1434 = vmatprep.subr.bf16.mxu0 0
      %1435 = vmatpush2.bf16.msra.mxu0 0
      %1436 = vmatprep.subr.bf16.mxu0 0
      %1437 = vmatpush2.bf16.msra.mxu0 0
      %1438 = vmatprep.subr.bf16.mxu0 0
      %1439 = vmatpush2.bf16.msra.mxu0 0
      %1440 = vmatprep.subr.bf16.mxu0 0
      %1441 = vmatpush2.bf16.msra.mxu0 0
      %1442 = vmatprep.mubr.bf16.mxu0 0
      %1443 = vmatmul.mubr.bf16.gmra.mxu0 %v689
      %v1444 = vpop.f32.mrf.mxu0
      %v1445 = vadd.f32 0.0, %v1444
      %v1446 = vpop.f32.mrf.mxu0
      %v1447 = vpop.f32.mrf.mxu0
      %v1448 = vpop.f32.mrf.mxu0
      %1449 = vdwg.mxu0
      %v1450 = vpack.c.bf16 %v1445, %v1445
      %s1451 = scalar_lea.vmem %s7, 32
      %v1452 = vld [vmem:[%s1451] sm:$0xf]
      %v1453 = vld [vmem:[%s1451 + $0x4] sm:$0xf]
      %v1454 = vld [vmem:[%s1451 + $0x8] sm:$0xf]
      %v1455 = vld [vmem:[%s1451 + $0xc] sm:$0xf]
      %v1460 = vunpack.c.l.b16 %v1452
      %v1461 = vunpack.c.l.b16 %v1453
      %v1462 = vunpack.c.l.b16 %v1454
      %v1463 = vunpack.c.l.b16 %v1455
      %v1464 = vpack.c.b16 %v1461, %v1460
      %v1465 = vpack.c.b16 %v1463, %v1462
      %1468 = vmatprep.subr.bf16.mxu0 0
      %1469 = vmatpush1.bf16.msra.mxu0 0
      %1470 = vmatprep.subr.bf16.mxu0 0
      %1471 = vmatpush1.bf16.msra.mxu0 0
      %1472 = vmatprep.subr.bf16.mxu0 0
      %1473 = vmatpush1.bf16.msra.mxu0 0
      %1474 = vmatprep.subr.bf16.mxu0 0
      %1475 = vmatpush1.bf16.msra.mxu0 0
      %1476 = vmatprep.subr.bf16.mxu0 0
      %1477 = vmatpush1.bf16.msra.mxu0 0
      %1478 = vmatprep.subr.bf16.mxu0 0
      %1479 = vmatpush1.bf16.msra.mxu0 0
      %1480 = vmatprep.subr.bf16.mxu0 0
      %1481 = vmatpush1.bf16.msra.mxu0 %v1465
      %1482 = vmatprep.subr.bf16.mxu0 0
      %1483 = vmatpush1.bf16.msra.mxu0 %v1464
      %1484 = vmatprep.subr.bf16.mxu0 0
      %1485 = vmatpush2.bf16.msra.mxu0 0
      %1486 = vmatprep.subr.bf16.mxu0 0
      %1487 = vmatpush2.bf16.msra.mxu0 0
      %1488 = vmatprep.subr.bf16.mxu0 0
      %1489 = vmatpush2.bf16.msra.mxu0 0
      %1490 = vmatprep.subr.bf16.mxu0 0
      %1491 = vmatpush2.bf16.msra.mxu0 0
      %1492 = vmatprep.subr.bf16.mxu0 0
      %1493 = vmatpush2.bf16.msra.mxu0 0
      %1494 = vmatprep.subr.bf16.mxu0 0
      %1495 = vmatpush2.bf16.msra.mxu0 0
      %1496 = vmatprep.subr.bf16.mxu0 0
      %1497 = vmatpush2.bf16.msra.mxu0 0
      %1498 = vmatprep.subr.bf16.mxu0 0
      %1499 = vmatpush2.bf16.msra.mxu0 0
      %1500 = vmatprep.mubr.bf16.mxu0 0
      %1501 = vmatmul.mubr.bf16.gmra.mxu0 %v689
      %v1502 = vpop.f32.mrf.mxu0
      %v1503 = vadd.f32 0.0, %v1502
      %v1504 = vpop.f32.mrf.mxu0
      %v1505 = vpop.f32.mrf.mxu0
      %v1506 = vpop.f32.mrf.mxu0
      %1507 = vdwg.mxu0
      %v1508 = vpack.c.bf16 %v1503, %v1503
      %v1510 = vsel %vm589, %v1392, 0
      %v1513 = vsel %vm589, %v1450, 0
      %1515 = vmatprep.subr.bf16.mxu0 0
      %1516 = vmatpush1.bf16.xpose.msra.mxu0 0
      %1517 = vmatprep.subr.bf16.mxu0 0
      %1518 = vmatpush1.bf16.xpose.msra.mxu0 0
      %1519 = vmatprep.subr.bf16.mxu0 0
      %1520 = vmatpush1.bf16.xpose.msra.mxu0 0
      %1521 = vmatprep.subr.bf16.mxu0 0
      %1522 = vmatpush1.bf16.xpose.msra.mxu0 0
      %1523 = vmatprep.subr.bf16.mxu0 0
      %1524 = vmatpush1.bf16.xpose.msra.mxu0 0
      %1525 = vmatprep.subr.bf16.mxu0 0
      %1526 = vmatpush1.bf16.xpose.msra.mxu0 0
      %1527 = vmatprep.subr.bf16.mxu0 0
      %1528 = vmatpush1.bf16.xpose.msra.mxu0 0
      %1529 = vmatprep.subr.bf16.mxu0 0
      %1530 = vmatpush1.bf16.xpose.msra.mxu0 %v1513
      %1531 = vmatprep.subr.bf16.mxu0 0
      %1532 = vmatpush2.bf16.xpose.msra.mxu0 0
      %1533 = vmatprep.subr.bf16.mxu0 0
      %1534 = vmatpush2.bf16.xpose.msra.mxu0 0
      %1535 = vmatprep.subr.bf16.mxu0 0
      %1536 = vmatpush2.bf16.xpose.msra.mxu0 0
      %1537 = vmatprep.subr.bf16.mxu0 0
      %1538 = vmatpush2.bf16.xpose.msra.mxu0 0
      %1539 = vmatprep.subr.bf16.mxu0 0
      %1540 = vmatpush2.bf16.xpose.msra.mxu0 0
      %1541 = vmatprep.subr.bf16.mxu0 0
      %1542 = vmatpush2.bf16.xpose.msra.mxu0 0
      %1543 = vmatprep.subr.bf16.mxu0 0
      %1544 = vmatpush2.bf16.xpose.msra.mxu0 0
      %1545 = vmatprep.subr.bf16.mxu0 0
      %1546 = vmatpush2.bf16.xpose.msra.mxu0 0
      %1547 = vmatprep.mubr.bf16.mxu0 0
      %1548 = vmatmul.mubr.bf16.gmra.mxu0 %v1510
      %v1549 = vpop.f32.mrf.mxu0
      %v1550 = vadd.f32 0.0, %v1549
      %v1551 = vpop.f32.mrf.mxu0
      %v1552 = vpop.f32.mrf.mxu0
      %v1553 = vpop.f32.mrf.mxu0
      %1554 = vdwg.mxu0
      %v1555 = vmul.f32 %v1550, 0.35355338
      %v1556 = vadd.f32 %v1555, %v897
      %v1557 = vsel %vm589, %v1556, -inf
      %1558 = vmax.xlane.f32.xlu0 %v1557
      %v1559 = vpop.xlane.xlu0 %1558
      %v1560 = vsub.f32 %v1556, %v1559
      %v1561 = vmul.f32 %v1560, 1.442695
      %v1562 = vpow.pop %v1561
      %v1563 = vsel %vm589, %v1562, 0.0
      %1564 = vadd.xlane.f32.xlu0 %v1563
      %v1565 = vpop.xlane.xlu0 %1564
      %v1566 = vrcp.pop %v1565
      %v1567 = vmul.f32 %v1562, %v1566
      %v1568 = vpack.c.bf16 %v1567, %v1567
      %v1570 = vsel %vm589, %v1568, 0
      %v1573 = vsel %vm593, %v1508, 0
      %1575 = vmatprep.subr.bf16.mxu0 0
      %1576 = vmatpush1.bf16.msra.mxu0 0
      %1577 = vmatprep.subr.bf16.mxu0 0
      %1578 = vmatpush1.bf16.msra.mxu0 0
      %1579 = vmatprep.subr.bf16.mxu0 0
      %1580 = vmatpush1.bf16.msra.mxu0 0
      %1581 = vmatprep.subr.bf16.mxu0 0
      %1582 = vmatpush1.bf16.msra.mxu0 0
      %1583 = vmatprep.subr.bf16.mxu0 0
      %1584 = vmatpush1.bf16.msra.mxu0 0
      %1585 = vmatprep.subr.bf16.mxu0 0
      %1586 = vmatpush1.bf16.msra.mxu0 0
      %1587 = vmatprep.subr.bf16.mxu0 0
      %1588 = vmatpush1.bf16.msra.mxu0 0
      %1589 = vmatprep.subr.bf16.mxu0 0
      %1590 = vmatpush1.bf16.msra.mxu0 %v1573
      %1591 = vmatprep.subr.bf16.mxu0 0
      %1592 = vmatpush2.bf16.msra.mxu0 0
      %1593 = vmatprep.subr.bf16.mxu0 0
      %1594 = vmatpush2.bf16.msra.mxu0 0
      %1595 = vmatprep.subr.bf16.mxu0 0
      %1596 = vmatpush2.bf16.msra.mxu0 0
      %1597 = vmatprep.subr.bf16.mxu0 0
      %1598 = vmatpush2.bf16.msra.mxu0 0
      %1599 = vmatprep.subr.bf16.mxu0 0
      %1600 = vmatpush2.bf16.msra.mxu0 0
      %1601 = vmatprep.subr.bf16.mxu0 0
      %1602 = vmatpush2.bf16.msra.mxu0 0
      %1603 = vmatprep.subr.bf16.mxu0 0
      %1604 = vmatpush2.bf16.msra.mxu0 0
      %1605 = vmatprep.subr.bf16.mxu0 0
      %1606 = vmatpush2.bf16.msra.mxu0 0
      %1607 = vmatprep.mubr.bf16.mxu0 0
      %1608 = vmatmul.mubr.bf16.gmra.mxu0 %v1570
      %v1609 = vpop.f32.mrf.mxu0
      %v1610 = vadd.f32 0.0, %v1609
      %v1611 = vpop.f32.mrf.mxu0
      %v1612 = vpop.f32.mrf.mxu0
      %v1613 = vpop.f32.mrf.mxu0
      %1614 = vdwg.mxu0
      %s1615 = scalar_lea.vmem %s8, 8
      %v1616 = vld [vmem:[%s1615] sm:$0xf]
      %v1617 = vpack.c.bf16 %v1610, %v1610
      %v1619 = vsel %vm589, %v1617, 0
      %v1622 = vsel %vm593, %v1616, 0
      %1624 = vmatprep.subr.bf16.mxu0 0
      %1625 = vmatpush1.bf16.msra.mxu0 0
      %1626 = vmatprep.subr.bf16.mxu0 0
      %1627 = vmatpush1.bf16.msra.mxu0 0
      %1628 = vmatprep.subr.bf16.mxu0 0
      %1629 = vmatpush1.bf16.msra.mxu0 0
      %1630 = vmatprep.subr.bf16.mxu0 0
      %1631 = vmatpush1.bf16.msra.mxu0 0
      %1632 = vmatprep.subr.bf16.mxu0 0
      %1633 = vmatpush1.bf16.msra.mxu0 0
      %1634 = vmatprep.subr.bf16.mxu0 0
      %1635 = vmatpush1.bf16.msra.mxu0 0
      %1636 = vmatprep.subr.bf16.mxu0 0
      %1637 = vmatpush1.bf16.msra.mxu0 0
      %1638 = vmatprep.subr.bf16.mxu0 0
      %1639 = vmatpush1.bf16.msra.mxu0 %v1622
      %1640 = vmatprep.subr.bf16.mxu0 0
      %1641 = vmatpush2.bf16.msra.mxu0 0
      %1642 = vmatprep.subr.bf16.mxu0 0
      %1643 = vmatpush2.bf16.msra.mxu0 0
      %1644 = vmatprep.subr.bf16.mxu0 0
      %1645 = vmatpush2.bf16.msra.mxu0 0
      %1646 = vmatprep.subr.bf16.mxu0 0
      %1647 = vmatpush2.bf16.msra.mxu0 0
      %1648 = vmatprep.subr.bf16.mxu0 0
      %1649 = vmatpush2.bf16.msra.mxu0 0
      %1650 = vmatprep.subr.bf16.mxu0 0
      %1651 = vmatpush2.bf16.msra.mxu0 0
      %1652 = vmatprep.subr.bf16.mxu0 0
      %1653 = vmatpush2.bf16.msra.mxu0 0
      %1654 = vmatprep.subr.bf16.mxu0 0
      %1655 = vmatpush2.bf16.msra.mxu0 0
      %1656 = vmatprep.mubr.bf16.mxu0 0
      %1657 = vmatmul.mubr.bf16.gmra.mxu0 %v1619
      %v1658 = vpop.f32.mrf.mxu0
      %v1659 = vadd.f32 0.0, %v1658
      %v1660 = vpop.f32.mrf.mxu0
      %v1661 = vpop.f32.mrf.mxu0
      %v1662 = vpop.f32.mrf.mxu0
      %1663 = vdwg.mxu0
      %v1664 = vadd.f32 %v1330, %v1659
      %s1665 = scalar_lea.vmem %s5, 48
      %v1666 = vld [vmem:[%s1665] sm:$0xf]
      %v1667 = vld [vmem:[%s1665 + $0x4] sm:$0xf]
      %v1668 = vld [vmem:[%s1665 + $0x8] sm:$0xf]
      %v1669 = vld [vmem:[%s1665 + $0xc] sm:$0xf]
      %v1674 = vunpack.c.l.b16 %v1666
      %v1675 = vunpack.c.l.b16 %v1667
      %v1676 = vunpack.c.l.b16 %v1668
      %v1677 = vunpack.c.l.b16 %v1669
      %v1678 = vpack.c.b16 %v1675, %v1674
      %v1679 = vpack.c.b16 %v1677, %v1676
      %1682 = vmatprep.subr.bf16.mxu0 0
      %1683 = vmatpush1.bf16.msra.mxu0 0
      %1684 = vmatprep.subr.bf16.mxu0 0
      %1685 = vmatpush1.bf16.msra.mxu0 0
      %1686 = vmatprep.subr.bf16.mxu0 0
      %1687 = vmatpush1.bf16.msra.mxu0 0
      %1688 = vmatprep.subr.bf16.mxu0 0
      %1689 = vmatpush1.bf16.msra.mxu0 0
      %1690 = vmatprep.subr.bf16.mxu0 0
      %1691 = vmatpush1.bf16.msra.mxu0 0
      %1692 = vmatprep.subr.bf16.mxu0 0
      %1693 = vmatpush1.bf16.msra.mxu0 0
      %1694 = vmatprep.subr.bf16.mxu0 0
      %1695 = vmatpush1.bf16.msra.mxu0 %v1679
      %1696 = vmatprep.subr.bf16.mxu0 0
      %1697 = vmatpush1.bf16.msra.mxu0 %v1678
      %1698 = vmatprep.subr.bf16.mxu0 0
      %1699 = vmatpush2.bf16.msra.mxu0 0
      %1700 = vmatprep.subr.bf16.mxu0 0
      %1701 = vmatpush2.bf16.msra.mxu0 0
      %1702 = vmatprep.subr.bf16.mxu0 0
      %1703 = vmatpush2.bf16.msra.mxu0 0
      %1704 = vmatprep.subr.bf16.mxu0 0
      %1705 = vmatpush2.bf16.msra.mxu0 0
      %1706 = vmatprep.subr.bf16.mxu0 0
      %1707 = vmatpush2.bf16.msra.mxu0 0
      %1708 = vmatprep.subr.bf16.mxu0 0
      %1709 = vmatpush2.bf16.msra.mxu0 0
      %1710 = vmatprep.subr.bf16.mxu0 0
      %1711 = vmatpush2.bf16.msra.mxu0 0
      %1712 = vmatprep.subr.bf16.mxu0 0
      %1713 = vmatpush2.bf16.msra.mxu0 0
      %1714 = vmatprep.mubr.bf16.mxu0 0
      %1715 = vmatmul.mubr.bf16.gmra.mxu0 %v689
      %v1716 = vpop.f32.mrf.mxu0
      %v1717 = vadd.f32 0.0, %v1716
      %v1718 = vpop.f32.mrf.mxu0
      %v1719 = vpop.f32.mrf.mxu0
      %v1720 = vpop.f32.mrf.mxu0
      %1721 = vdwg.mxu0
      %v1722 = vpack.c.bf16 %v1717, %v1717
      %s1723 = scalar_lea.vmem %s6, 48
      %v1724 = vld [vmem:[%s1723] sm:$0xf]
      %v1725 = vld [vmem:[%s1723 + $0x4] sm:$0xf]
      %v1726 = vld [vmem:[%s1723 + $0x8] sm:$0xf]
      %v1727 = vld [vmem:[%s1723 + $0xc] sm:$0xf]
      %v1732 = vunpack.c.l.b16 %v1724
      %v1733 = vunpack.c.l.b16 %v1725
      %v1734 = vunpack.c.l.b16 %v1726
      %v1735 = vunpack.c.l.b16 %v1727
      %v1736 = vpack.c.b16 %v1733, %v1732
      %v1737 = vpack.c.b16 %v1735, %v1734
      %1740 = vmatprep.subr.bf16.mxu0 0
      %1741 = vmatpush1.bf16.msra.mxu0 0
      %1742 = vmatprep.subr.bf16.mxu0 0
      %1743 = vmatpush1.bf16.msra.mxu0 0
      %1744 = vmatprep.subr.bf16.mxu0 0
      %1745 = vmatpush1.bf16.msra.mxu0 0
      %1746 = vmatprep.subr.bf16.mxu0 0
      %1747 = vmatpush1.bf16.msra.mxu0 0
      %1748 = vmatprep.subr.bf16.mxu0 0
      %1749 = vmatpush1.bf16.msra.mxu0 0
      %1750 = vmatprep.subr.bf16.mxu0 0
      %1751 = vmatpush1.bf16.msra.mxu0 0
      %1752 = vmatprep.subr.bf16.mxu0 0
      %1753 = vmatpush1.bf16.msra.mxu0 %v1737
      %1754 = vmatprep.subr.bf16.mxu0 0
      %1755 = vmatpush1.bf16.msra.mxu0 %v1736
      %1756 = vmatprep.subr.bf16.mxu0 0
      %1757 = vmatpush2.bf16.msra.mxu0 0
      %1758 = vmatprep.subr.bf16.mxu0 0
      %1759 = vmatpush2.bf16.msra.mxu0 0
      %1760 = vmatprep.subr.bf16.mxu0 0
      %1761 = vmatpush2.bf16.msra.mxu0 0
      %1762 = vmatprep.subr.bf16.mxu0 0
      %1763 = vmatpush2.bf16.msra.mxu0 0
      %1764 = vmatprep.subr.bf16.mxu0 0
      %1765 = vmatpush2.bf16.msra.mxu0 0
      %1766 = vmatprep.subr.bf16.mxu0 0
      %1767 = vmatpush2.bf16.msra.mxu0 0
      %1768 = vmatprep.subr.bf16.mxu0 0
      %1769 = vmatpush2.bf16.msra.mxu0 0
      %1770 = vmatprep.subr.bf16.mxu0 0
      %1771 = vmatpush2.bf16.msra.mxu0 0
      %1772 = vmatprep.mubr.bf16.mxu0 0
      %1773 = vmatmul.mubr.bf16.gmra.mxu0 %v689
      %v1774 = vpop.f32.mrf.mxu0
      %v1775 = vadd.f32 0.0, %v1774
      %v1776 = vpop.f32.mrf.mxu0
      %v1777 = vpop.f32.mrf.mxu0
      %v1778 = vpop.f32.mrf.mxu0
      %1779 = vdwg.mxu0
      %v1780 = vpack.c.bf16 %v1775, %v1775
      %s1781 = scalar_lea.vmem %s7, 48
      %v1782 = vld [vmem:[%s1781] sm:$0xf]
      %v1783 = vld [vmem:[%s1781 + $0x4] sm:$0xf]
      %v1784 = vld [vmem:[%s1781 + $0x8] sm:$0xf]
      %v1785 = vld [vmem:[%s1781 + $0xc] sm:$0xf]
      %v1790 = vunpack.c.l.b16 %v1782
      %v1791 = vunpack.c.l.b16 %v1783
      %v1792 = vunpack.c.l.b16 %v1784
      %v1793 = vunpack.c.l.b16 %v1785
      %v1794 = vpack.c.b16 %v1791, %v1790
      %v1795 = vpack.c.b16 %v1793, %v1792
      %1798 = vmatprep.subr.bf16.mxu0 0
      %1799 = vmatpush1.bf16.msra.mxu0 0
      %1800 = vmatprep.subr.bf16.mxu0 0
      %1801 = vmatpush1.bf16.msra.mxu0 0
      %1802 = vmatprep.subr.bf16.mxu0 0
      %1803 = vmatpush1.bf16.msra.mxu0 0
      %1804 = vmatprep.subr.bf16.mxu0 0
      %1805 = vmatpush1.bf16.msra.mxu0 0
      %1806 = vmatprep.subr.bf16.mxu0 0
      %1807 = vmatpush1.bf16.msra.mxu0 0
      %1808 = vmatprep.subr.bf16.mxu0 0
      %1809 = vmatpush1.bf16.msra.mxu0 0
      %1810 = vmatprep.subr.bf16.mxu0 0
      %1811 = vmatpush1.bf16.msra.mxu0 %v1795
      %1812 = vmatprep.subr.bf16.mxu0 0
      %1813 = vmatpush1.bf16.msra.mxu0 %v1794
      %1814 = vmatprep.subr.bf16.mxu0 0
      %1815 = vmatpush2.bf16.msra.mxu0 0
      %1816 = vmatprep.subr.bf16.mxu0 0
      %1817 = vmatpush2.bf16.msra.mxu0 0
      %1818 = vmatprep.subr.bf16.mxu0 0
      %1819 = vmatpush2.bf16.msra.mxu0 0
      %1820 = vmatprep.subr.bf16.mxu0 0
      %1821 = vmatpush2.bf16.msra.mxu0 0
      %1822 = vmatprep.subr.bf16.mxu0 0
      %1823 = vmatpush2.bf16.msra.mxu0 0
      %1824 = vmatprep.subr.bf16.mxu0 0
      %1825 = vmatpush2.bf16.msra.mxu0 0
      %1826 = vmatprep.subr.bf16.mxu0 0
      %1827 = vmatpush2.bf16.msra.mxu0 0
      %1828 = vmatprep.subr.bf16.mxu0 0
      %1829 = vmatpush2.bf16.msra.mxu0 0
      %1830 = vmatprep.mubr.bf16.mxu0 0
      %1831 = vmatmul.mubr.bf16.gmra.mxu0 %v689
      %v1832 = vpop.f32.mrf.mxu0
      %v1833 = vadd.f32 0.0, %v1832
      %v1834 = vpop.f32.mrf.mxu0
      %v1835 = vpop.f32.mrf.mxu0
      %v1836 = vpop.f32.mrf.mxu0
      %1837 = vdwg.mxu0
      %v1838 = vpack.c.bf16 %v1833, %v1833
      %v1840 = vsel %vm589, %v1722, 0
      %v1843 = vsel %vm589, %v1780, 0
      %1845 = vmatprep.subr.bf16.mxu0 0
      %1846 = vmatpush1.bf16.xpose.msra.mxu0 0
      %1847 = vmatprep.subr.bf16.mxu0 0
      %1848 = vmatpush1.bf16.xpose.msra.mxu0 0
      %1849 = vmatprep.subr.bf16.mxu0 0
      %1850 = vmatpush1.bf16.xpose.msra.mxu0 0
      %1851 = vmatprep.subr.bf16.mxu0 0
      %1852 = vmatpush1.bf16.xpose.msra.mxu0 0
      %1853 = vmatprep.subr.bf16.mxu0 0
      %1854 = vmatpush1.bf16.xpose.msra.mxu0 0
      %1855 = vmatprep.subr.bf16.mxu0 0
      %1856 = vmatpush1.bf16.xpose.msra.mxu0 0
      %1857 = vmatprep.subr.bf16.mxu0 0
      %1858 = vmatpush1.bf16.xpose.msra.mxu0 0
      %1859 = vmatprep.subr.bf16.mxu0 0
      %1860 = vmatpush1.bf16.xpose.msra.mxu0 %v1843
      %1861 = vmatprep.subr.bf16.mxu0 0
      %1862 = vmatpush2.bf16.xpose.msra.mxu0 0
      %1863 = vmatprep.subr.bf16.mxu0 0
      %1864 = vmatpush2.bf16.xpose.msra.mxu0 0
      %1865 = vmatprep.subr.bf16.mxu0 0
      %1866 = vmatpush2.bf16.xpose.msra.mxu0 0
      %1867 = vmatprep.subr.bf16.mxu0 0
      %1868 = vmatpush2.bf16.xpose.msra.mxu0 0
      %1869 = vmatprep.subr.bf16.mxu0 0
      %1870 = vmatpush2.bf16.xpose.msra.mxu0 0
      %1871 = vmatprep.subr.bf16.mxu0 0
      %1872 = vmatpush2.bf16.xpose.msra.mxu0 0
      %1873 = vmatprep.subr.bf16.mxu0 0
      %1874 = vmatpush2.bf16.xpose.msra.mxu0 0
      %1875 = vmatprep.subr.bf16.mxu0 0
      %1876 = vmatpush2.bf16.xpose.msra.mxu0 0
      %1877 = vmatprep.mubr.bf16.mxu0 0
      %1878 = vmatmul.mubr.bf16.gmra.mxu0 %v1840
      %v1879 = vpop.f32.mrf.mxu0
      %v1880 = vadd.f32 0.0, %v1879
      %v1881 = vpop.f32.mrf.mxu0
      %v1882 = vpop.f32.mrf.mxu0
      %v1883 = vpop.f32.mrf.mxu0
      %1884 = vdwg.mxu0
      %v1885 = vmul.f32 %v1880, 0.35355338
      %v1886 = vadd.f32 %v1885, %v897
      %v1887 = vsel %vm589, %v1886, -inf
      %1888 = vmax.xlane.f32.xlu0 %v1887
      %v1889 = vpop.xlane.xlu0 %1888
      %v1890 = vsub.f32 %v1886, %v1889
      %v1891 = vmul.f32 %v1890, 1.442695
      %v1892 = vpow.pop %v1891
      %v1893 = vsel %vm589, %v1892, 0.0
      %1894 = vadd.xlane.f32.xlu0 %v1893
      %v1895 = vpop.xlane.xlu0 %1894
      %v1896 = vrcp.pop %v1895
      %v1897 = vmul.f32 %v1892, %v1896
      %v1898 = vpack.c.bf16 %v1897, %v1897
      %v1900 = vsel %vm589, %v1898, 0
      %v1903 = vsel %vm593, %v1838, 0
      %1905 = vmatprep.subr.bf16.mxu0 0
      %1906 = vmatpush1.bf16.msra.mxu0 0
      %1907 = vmatprep.subr.bf16.mxu0 0
      %1908 = vmatpush1.bf16.msra.mxu0 0
      %1909 = vmatprep.subr.bf16.mxu0 0
      %1910 = vmatpush1.bf16.msra.mxu0 0
      %1911 = vmatprep.subr.bf16.mxu0 0
      %1912 = vmatpush1.bf16.msra.mxu0 0
      %1913 = vmatprep.subr.bf16.mxu0 0
      %1914 = vmatpush1.bf16.msra.mxu0 0
      %1915 = vmatprep.subr.bf16.mxu0 0
      %1916 = vmatpush1.bf16.msra.mxu0 0
      %1917 = vmatprep.subr.bf16.mxu0 0
      %1918 = vmatpush1.bf16.msra.mxu0 0
      %1919 = vmatprep.subr.bf16.mxu0 0
      %1920 = vmatpush1.bf16.msra.mxu0 %v1903
      %1921 = vmatprep.subr.bf16.mxu0 0
      %1922 = vmatpush2.bf16.msra.mxu0 0
      %1923 = vmatprep.subr.bf16.mxu0 0
      %1924 = vmatpush2.bf16.msra.mxu0 0
      %1925 = vmatprep.subr.bf16.mxu0 0
      %1926 = vmatpush2.bf16.msra.mxu0 0
      %1927 = vmatprep.subr.bf16.mxu0 0
      %1928 = vmatpush2.bf16.msra.mxu0 0
      %1929 = vmatprep.subr.bf16.mxu0 0
      %1930 = vmatpush2.bf16.msra.mxu0 0
      %1931 = vmatprep.subr.bf16.mxu0 0
      %1932 = vmatpush2.bf16.msra.mxu0 0
      %1933 = vmatprep.subr.bf16.mxu0 0
      %1934 = vmatpush2.bf16.msra.mxu0 0
      %1935 = vmatprep.subr.bf16.mxu0 0
      %1936 = vmatpush2.bf16.msra.mxu0 0
      %1937 = vmatprep.mubr.bf16.mxu0 0
      %1938 = vmatmul.mubr.bf16.gmra.mxu0 %v1900
      %v1939 = vpop.f32.mrf.mxu0
      %v1940 = vadd.f32 0.0, %v1939
      %v1941 = vpop.f32.mrf.mxu0
      %v1942 = vpop.f32.mrf.mxu0
      %v1943 = vpop.f32.mrf.mxu0
      %1944 = vdwg.mxu0
      %s1945 = scalar_lea.vmem %s8, 12
      %v1946 = vld [vmem:[%s1945] sm:$0xf]
      %v1947 = vpack.c.bf16 %v1940, %v1940
      %v1949 = vsel %vm589, %v1947, 0
      %v1952 = vsel %vm593, %v1946, 0
      %1954 = vmatprep.subr.bf16.mxu0 0
      %1955 = vmatpush1.bf16.msra.mxu0 0
      %1956 = vmatprep.subr.bf16.mxu0 0
      %1957 = vmatpush1.bf16.msra.mxu0 0
      %1958 = vmatprep.subr.bf16.mxu0 0
      %1959 = vmatpush1.bf16.msra.mxu0 0
      %1960 = vmatprep.subr.bf16.mxu0 0
      %1961 = vmatpush1.bf16.msra.mxu0 0
      %1962 = vmatprep.subr.bf16.mxu0 0
      %1963 = vmatpush1.bf16.msra.mxu0 0
      %1964 = vmatprep.subr.bf16.mxu0 0
      %1965 = vmatpush1.bf16.msra.mxu0 0
      %1966 = vmatprep.subr.bf16.mxu0 0
      %1967 = vmatpush1.bf16.msra.mxu0 0
      %1968 = vmatprep.subr.bf16.mxu0 0
      %1969 = vmatpush1.bf16.msra.mxu0 %v1952
      %1970 = vmatprep.subr.bf16.mxu0 0
      %1971 = vmatpush2.bf16.msra.mxu0 0
      %1972 = vmatprep.subr.bf16.mxu0 0
      %1973 = vmatpush2.bf16.msra.mxu0 0
      %1974 = vmatprep.subr.bf16.mxu0 0
      %1975 = vmatpush2.bf16.msra.mxu0 0
      %1976 = vmatprep.subr.bf16.mxu0 0
      %1977 = vmatpush2.bf16.msra.mxu0 0
      %1978 = vmatprep.subr.bf16.mxu0 0
      %1979 = vmatpush2.bf16.msra.mxu0 0
      %1980 = vmatprep.subr.bf16.mxu0 0
      %1981 = vmatpush2.bf16.msra.mxu0 0
      %1982 = vmatprep.subr.bf16.mxu0 0
      %1983 = vmatpush2.bf16.msra.mxu0 0
      %1984 = vmatprep.subr.bf16.mxu0 0
      %1985 = vmatpush2.bf16.msra.mxu0 0
      %1986 = vmatprep.mubr.bf16.mxu0 0
      %1987 = vmatmul.mubr.bf16.gmra.mxu0 %v1949
      %v1988 = vpop.f32.mrf.mxu0
      %v1989 = vadd.f32 0.0, %v1988
      %v1990 = vpop.f32.mrf.mxu0
      %v1991 = vpop.f32.mrf.mxu0
      %v1992 = vpop.f32.mrf.mxu0
      %1993 = vdwg.mxu0
      %v1994 = vadd.f32 %v1664, %v1989
      %v1995 = vadd.f32 %v654, %v1994
      %v1996 = vld [vmem:[%s9] sm:$0x1]
      %v1997 = vmul.f32 %v1995, %v1995
      %v1998 = vsel %vm639, %v1997, 0.0
      %1999 = vadd.xlane.f32.xlu0 %v1998
      %v2000 = vpop.xlane.xlu0 %1999
      %v2001 = vmul.f32 %v2000, %v643
      %v2002 = vadd.f32 %v2001, 1e-06
      %v2003 = vrsqrt.pop %v2002
      %v2004 = vmul.f32 %v1995, %v2003
      %v2006 = vlaneseq
      %v2007 = vshrl.u32 %v2006, 7
      %v2008 = vsub.s32 0, %v2007
      %v2009 = vrot.slane %v1996, %v2008
      %v2011 = vmul.f32 %v2004, %v2009
      %v2012 = vld [vmem:[%s10] sm:$0xff]
      %v2013 = vld [vmem:[%s10 + $0x8] sm:$0xff]
      %v2014 = vld [vmem:[%s10 + $0x10] sm:$0xff]
      %v2015 = vld [vmem:[%s10 + $0x18] sm:$0xff]
      %v2016 = vpack.c.bf16 %v2011, %v2011
      %v2021 = vunpack.c.l.b16 %v2012
      %v2022 = vunpack.c.h.b16 %v2012
      %v2023 = vunpack.c.l.b16 %v2013
      %v2024 = vunpack.c.h.b16 %v2013
      %v2025 = vunpack.c.l.b16 %v2014
      %v2026 = vunpack.c.h.b16 %v2014
      %v2027 = vunpack.c.l.b16 %v2015
      %v2028 = vunpack.c.h.b16 %v2015
      %v2029 = vpack.c.b16 %v2023, %v2021
      %v2030 = vpack.c.b16 %v2024, %v2022
      %v2031 = vpack.c.b16 %v2027, %v2025
      %v2032 = vpack.c.b16 %v2028, %v2026
      %v2038 = vsel %vm639, %v2016, 0
      %2040 = vmatprep.subr.bf16.mxu0 0
      %2041 = vmatpush1.bf16.msra.mxu0 0
      %2042 = vmatprep.subr.bf16.mxu0 0
      %2043 = vmatpush1.bf16.msra.mxu0 0
      %2044 = vmatprep.subr.bf16.mxu0 0
      %2045 = vmatpush1.bf16.msra.mxu0 0
      %2046 = vmatprep.subr.bf16.mxu0 0
      %2047 = vmatpush1.bf16.msra.mxu0 0
      %2048 = vmatprep.subr.bf16.mxu0 0
      %2049 = vmatpush1.bf16.msra.mxu0 0
      %2050 = vmatprep.subr.bf16.mxu0 0
      %2051 = vmatpush1.bf16.msra.mxu0 0
      %2052 = vmatprep.subr.bf16.mxu0 %v2032
      %2053 = vmatpush1.bf16.msra.mxu0 %v2031
      %2054 = vmatprep.subr.bf16.mxu0 %v2030
      %2055 = vmatpush1.bf16.msra.mxu0 %v2029
      %2056 = vmatprep.subr.bf16.mxu0 0
      %2057 = vmatpush2.bf16.msra.mxu0 0
      %2058 = vmatprep.subr.bf16.mxu0 0
      %2059 = vmatpush2.bf16.msra.mxu0 0
      %2060 = vmatprep.subr.bf16.mxu0 0
      %2061 = vmatpush2.bf16.msra.mxu0 0
      %2062 = vmatprep.subr.bf16.mxu0 0
      %2063 = vmatpush2.bf16.msra.mxu0 0
      %2064 = vmatprep.subr.bf16.mxu0 0
      %2065 = vmatpush2.bf16.msra.mxu0 0
      %2066 = vmatprep.subr.bf16.mxu0 0
      %2067 = vmatpush2.bf16.msra.mxu0 0
      %2068 = vmatprep.subr.bf16.mxu0 0
      %2069 = vmatpush2.bf16.msra.mxu0 0
      %2070 = vmatprep.subr.bf16.mxu0 0
      %2071 = vmatpush2.bf16.msra.mxu0 0
      %2072 = vmatprep.mubr.bf16.mxu0 0
      %2073 = vmatmul.mubr.bf16.gmra.mxu0 %v2038
      %v2074 = vpop.f32.mrf.mxu0
      %v2075 = vadd.f32 0.0, %v2074
      %v2076 = vpop.f32.mrf.mxu0
      %v2077 = vadd.f32 0.0, %v2076
      %v2078 = vpop.f32.mrf.mxu0
      %v2079 = vpop.f32.mrf.mxu0
      %2080 = vdwg.mxu0
      %v2081 = vxor.u32 %v2077, 2147483648
      %v2082 = vmul.f32 %v2081, 1.442695
      %v2083 = vpow.pop %v2082
      %v2084 = vadd.f32 %v2083, 1.0
      %v2085 = vrcp.pop %v2084
      %v2086 = vmul.f32 1.0, %v2085
      %v2087 = vmul.f32 %v2077, %v2086
      %v2088 = vmul.f32 %v2075, %v2087
      %v2089 = vld [vmem:[%s11] sm:$0xf]
      %v2090 = vld [vmem:[%s11 + $0x4] sm:$0xf]
      %v2091 = vld [vmem:[%s11 + $0x8] sm:$0xf]
      %v2092 = vld [vmem:[%s11 + $0xc] sm:$0xf]
      %v2093 = vld [vmem:[%s11 + $0x10] sm:$0xf]
      %v2094 = vld [vmem:[%s11 + $0x14] sm:$0xf]
      %v2095 = vld [vmem:[%s11 + $0x18] sm:$0xf]
      %v2096 = vld [vmem:[%s11 + $0x1c] sm:$0xf]
      %v2097 = vld [vmem:[%s11 + $0x20] sm:$0xf]
      %v2098 = vld [vmem:[%s11 + $0x24] sm:$0xf]
      %v2099 = vld [vmem:[%s11 + $0x28] sm:$0xf]
      %v2100 = vld [vmem:[%s11 + $0x2c] sm:$0xf]
      %v2101 = vld [vmem:[%s11 + $0x30] sm:$0xf]
      %v2102 = vld [vmem:[%s11 + $0x34] sm:$0xf]
      %v2103 = vld [vmem:[%s11 + $0x38] sm:$0xf]
      %v2104 = vld [vmem:[%s11 + $0x3c] sm:$0xf]
      %v2105 = vpack.c.bf16 %v2088, %v2088
      %v2122 = vunpack.c.l.b16 %v2089
      %v2123 = vunpack.c.l.b16 %v2090
      %v2124 = vunpack.c.l.b16 %v2091
      %v2125 = vunpack.c.l.b16 %v2092
      %v2126 = vunpack.c.l.b16 %v2093
      %v2127 = vunpack.c.l.b16 %v2094
      %v2128 = vunpack.c.l.b16 %v2095
      %v2129 = vunpack.c.l.b16 %v2096
      %v2130 = vunpack.c.l.b16 %v2097
      %v2131 = vunpack.c.l.b16 %v2098
      %v2132 = vunpack.c.l.b16 %v2099
      %v2133 = vunpack.c.l.b16 %v2100
      %v2134 = vunpack.c.l.b16 %v2101
      %v2135 = vunpack.c.l.b16 %v2102
      %v2136 = vunpack.c.l.b16 %v2103
      %v2137 = vunpack.c.l.b16 %v2104
      %v2138 = vpack.c.b16 %v2123, %v2122
      %v2139 = vpack.c.b16 %v2125, %v2124
      %v2140 = vpack.c.b16 %v2127, %v2126
      %v2141 = vpack.c.b16 %v2129, %v2128
      %v2142 = vpack.c.b16 %v2131, %v2130
      %v2143 = vpack.c.b16 %v2133, %v2132
      %v2144 = vpack.c.b16 %v2135, %v2134
      %v2145 = vpack.c.b16 %v2137, %v2136
      %2154 = vmatprep.subr.bf16.mxu0 0
      %2155 = vmatpush1.bf16.msra.mxu0 %v2145
      %2156 = vmatprep.subr.bf16.mxu0 0
      %2157 = vmatpush1.bf16.msra.mxu0 %v2144
      %2158 = vmatprep.subr.bf16.mxu0 0
      %2159 = vmatpush1.bf16.msra.mxu0 %v2143
      %2160 = vmatprep.subr.bf16.mxu0 0
      %2161 = vmatpush1.bf16.msra.mxu0 %v2142
      %2162 = vmatprep.subr.bf16.mxu0 0
      %2163 = vmatpush1.bf16.msra.mxu0 %v2141
      %2164 = vmatprep.subr.bf16.mxu0 0
      %2165 = vmatpush1.bf16.msra.mxu0 %v2140
      %2166 = vmatprep.subr.bf16.mxu0 0
      %2167 = vmatpush1.bf16.msra.mxu0 %v2139
      %2168 = vmatprep.subr.bf16.mxu0 0
      %2169 = vmatpush1.bf16.msra.mxu0 %v2138
      %2170 = vmatprep.subr.bf16.mxu0 0
      %2171 = vmatpush2.bf16.msra.mxu0 0
      %2172 = vmatprep.subr.bf16.mxu0 0
      %2173 = vmatpush2.bf16.msra.mxu0 0
      %2174 = vmatprep.subr.bf16.mxu0 0
      %2175 = vmatpush2.bf16.msra.mxu0 0
      %2176 = vmatprep.subr.bf16.mxu0 0
      %2177 = vmatpush2.bf16.msra.mxu0 0
      %2178 = vmatprep.subr.bf16.mxu0 0
      %2179 = vmatpush2.bf16.msra.mxu0 0
      %2180 = vmatprep.subr.bf16.mxu0 0
      %2181 = vmatpush2.bf16.msra.mxu0 0
      %2182 = vmatprep.subr.bf16.mxu0 0
      %2183 = vmatpush2.bf16.msra.mxu0 0
      %2184 = vmatprep.subr.bf16.mxu0 0
      %2185 = vmatpush2.bf16.msra.mxu0 0
      %2186 = vmatprep.mubr.bf16.mxu0 0
      %2187 = vmatmul.mubr.bf16.gmra.mxu0 %v2105
      %v2188 = vpop.f32.mrf.mxu0
      %v2189 = vadd.f32 0.0, %v2188
      %v2190 = vpop.f32.mrf.mxu0
      %v2191 = vpop.f32.mrf.mxu0
      %v2192 = vpop.f32.mrf.mxu0
      %2193 = vdwg.mxu0
      %v2194 = vadd.f32 %v1995, %v2189
      %s2195 = scalar_lea.vmem %s4, 1
      %v2196 = vld [vmem:[%s2195] sm:$0x1]
      %v2197 = vmul.f32 %v2194, %v2194
      %v2198 = vsel %vm639, %v2197, 0.0
      %2199 = vadd.xlane.f32.xlu0 %v2198
      %v2200 = vpop.xlane.xlu0 %2199
      %v2201 = vmul.f32 %v2200, %v643
      %v2202 = vadd.f32 %v2201, 1e-06
      %v2203 = vrsqrt.pop %v2202
      %v2204 = vmul.f32 %v2194, %v2203
      %v2206 = vlaneseq
      %v2207 = vshrl.u32 %v2206, 7
      %v2208 = vsub.s32 0, %v2207
      %v2209 = vrot.slane %v2196, %v2208
      %v2211 = vmul.f32 %v2204, %v2209
      %v2212 = vpack.c.bf16 %v2211, %v2211
      %s2213 = scalar_lea.vmem %s5, 64
      %v2214 = vld [vmem:[%s2213] sm:$0xf]
      %v2215 = vld [vmem:[%s2213 + $0x4] sm:$0xf]
      %v2216 = vld [vmem:[%s2213 + $0x8] sm:$0xf]
      %v2217 = vld [vmem:[%s2213 + $0xc] sm:$0xf]
      %v2222 = vunpack.c.l.b16 %v2214
      %v2223 = vunpack.c.l.b16 %v2215
      %v2224 = vunpack.c.l.b16 %v2216
      %v2225 = vunpack.c.l.b16 %v2217
      %v2226 = vpack.c.b16 %v2223, %v2222
      %v2227 = vpack.c.b16 %v2225, %v2224
      %v2231 = vsel %vm639, %v2212, 0
      %2233 = vmatprep.subr.bf16.mxu0 0
      %2234 = vmatpush1.bf16.msra.mxu0 0
      %2235 = vmatprep.subr.bf16.mxu0 0
      %2236 = vmatpush1.bf16.msra.mxu0 0
      %2237 = vmatprep.subr.bf16.mxu0 0
      %2238 = vmatpush1.bf16.msra.mxu0 0
      %2239 = vmatprep.subr.bf16.mxu0 0
      %2240 = vmatpush1.bf16.msra.mxu0 0
      %2241 = vmatprep.subr.bf16.mxu0 0
      %2242 = vmatpush1.bf16.msra.mxu0 0
      %2243 = vmatprep.subr.bf16.mxu0 0
      %2244 = vmatpush1.bf16.msra.mxu0 0
      %2245 = vmatprep.subr.bf16.mxu0 0
      %2246 = vmatpush1.bf16.msra.mxu0 %v2227
      %2247 = vmatprep.subr.bf16.mxu0 0
      %2248 = vmatpush1.bf16.msra.mxu0 %v2226
      %2249 = vmatprep.subr.bf16.mxu0 0
      %2250 = vmatpush2.bf16.msra.mxu0 0
      %2251 = vmatprep.subr.bf16.mxu0 0
      %2252 = vmatpush2.bf16.msra.mxu0 0
      %2253 = vmatprep.subr.bf16.mxu0 0
      %2254 = vmatpush2.bf16.msra.mxu0 0
      %2255 = vmatprep.subr.bf16.mxu0 0
      %2256 = vmatpush2.bf16.msra.mxu0 0
      %2257 = vmatprep.subr.bf16.mxu0 0
      %2258 = vmatpush2.bf16.msra.mxu0 0
      %2259 = vmatprep.subr.bf16.mxu0 0
      %2260 = vmatpush2.bf16.msra.mxu0 0
      %2261 = vmatprep.subr.bf16.mxu0 0
      %2262 = vmatpush2.bf16.msra.mxu0 0
      %2263 = vmatprep.subr.bf16.mxu0 0
      %2264 = vmatpush2.bf16.msra.mxu0 0
      %2265 = vmatprep.mubr.bf16.mxu0 0
      %2266 = vmatmul.mubr.bf16.gmra.mxu0 %v2231
      %v2267 = vpop.f32.mrf.mxu0
      %v2268 = vadd.f32 0.0, %v2267
      %v2269 = vpop.f32.mrf.mxu0
      %v2270 = vpop.f32.mrf.mxu0
      %v2271 = vpop.f32.mrf.mxu0
      %2272 = vdwg.mxu0
      %v2273 = vpack.c.bf16 %v2268, %v2268
      %s2274 = scalar_lea.vmem %s6, 64
      %v2275 = vld [vmem:[%s2274] sm:$0xf]
      %v2276 = vld [vmem:[%s2274 + $0x4] sm:$0xf]
      %v2277 = vld [vmem:[%s2274 + $0x8] sm:$0xf]
      %v2278 = vld [vmem:[%s2274 + $0xc] sm:$0xf]
      %v2283 = vunpack.c.l.b16 %v2275
      %v2284 = vunpack.c.l.b16 %v2276
      %v2285 = vunpack.c.l.b16 %v2277
      %v2286 = vunpack.c.l.b16 %v2278
      %v2287 = vpack.c.b16 %v2284, %v2283
      %v2288 = vpack.c.b16 %v2286, %v2285
      %2291 = vmatprep.subr.bf16.mxu0 0
      %2292 = vmatpush1.bf16.msra.mxu0 0
      %2293 = vmatprep.subr.bf16.mxu0 0
      %2294 = vmatpush1.bf16.msra.mxu0 0
      %2295 = vmatprep.subr.bf16.mxu0 0
      %2296 = vmatpush1.bf16.msra.mxu0 0
      %2297 = vmatprep.subr.bf16.mxu0 0
      %2298 = vmatpush1.bf16.msra.mxu0 0
      %2299 = vmatprep.subr.bf16.mxu0 0
      %2300 = vmatpush1.bf16.msra.mxu0 0
      %2301 = vmatprep.subr.bf16.mxu0 0
      %2302 = vmatpush1.bf16.msra.mxu0 0
      %2303 = vmatprep.subr.bf16.mxu0 0
      %2304 = vmatpush1.bf16.msra.mxu0 %v2288
      %2305 = vmatprep.subr.bf16.mxu0 0
      %2306 = vmatpush1.bf16.msra.mxu0 %v2287
      %2307 = vmatprep.subr.bf16.mxu0 0
      %2308 = vmatpush2.bf16.msra.mxu0 0
      %2309 = vmatprep.subr.bf16.mxu0 0
      %2310 = vmatpush2.bf16.msra.mxu0 0
      %2311 = vmatprep.subr.bf16.mxu0 0
      %2312 = vmatpush2.bf16.msra.mxu0 0
      %2313 = vmatprep.subr.bf16.mxu0 0
      %2314 = vmatpush2.bf16.msra.mxu0 0
      %2315 = vmatprep.subr.bf16.mxu0 0
      %2316 = vmatpush2.bf16.msra.mxu0 0
      %2317 = vmatprep.subr.bf16.mxu0 0
      %2318 = vmatpush2.bf16.msra.mxu0 0
      %2319 = vmatprep.subr.bf16.mxu0 0
      %2320 = vmatpush2.bf16.msra.mxu0 0
      %2321 = vmatprep.subr.bf16.mxu0 0
      %2322 = vmatpush2.bf16.msra.mxu0 0
      %2323 = vmatprep.mubr.bf16.mxu0 0
      %2324 = vmatmul.mubr.bf16.gmra.mxu0 %v2231
      %v2325 = vpop.f32.mrf.mxu0
      %v2326 = vadd.f32 0.0, %v2325
      %v2327 = vpop.f32.mrf.mxu0
      %v2328 = vpop.f32.mrf.mxu0
      %v2329 = vpop.f32.mrf.mxu0
      %2330 = vdwg.mxu0
      %v2331 = vpack.c.bf16 %v2326, %v2326
      %s2332 = scalar_lea.vmem %s7, 64
      %v2333 = vld [vmem:[%s2332] sm:$0xf]
      %v2334 = vld [vmem:[%s2332 + $0x4] sm:$0xf]
      %v2335 = vld [vmem:[%s2332 + $0x8] sm:$0xf]
      %v2336 = vld [vmem:[%s2332 + $0xc] sm:$0xf]
      %v2341 = vunpack.c.l.b16 %v2333
      %v2342 = vunpack.c.l.b16 %v2334
      %v2343 = vunpack.c.l.b16 %v2335
      %v2344 = vunpack.c.l.b16 %v2336
      %v2345 = vpack.c.b16 %v2342, %v2341
      %v2346 = vpack.c.b16 %v2344, %v2343
      %2349 = vmatprep.subr.bf16.mxu0 0
      %2350 = vmatpush1.bf16.msra.mxu0 0
      %2351 = vmatprep.subr.bf16.mxu0 0
      %2352 = vmatpush1.bf16.msra.mxu0 0
      %2353 = vmatprep.subr.bf16.mxu0 0
      %2354 = vmatpush1.bf16.msra.mxu0 0
      %2355 = vmatprep.subr.bf16.mxu0 0
      %2356 = vmatpush1.bf16.msra.mxu0 0
      %2357 = vmatprep.subr.bf16.mxu0 0
      %2358 = vmatpush1.bf16.msra.mxu0 0
      %2359 = vmatprep.subr.bf16.mxu0 0
      %2360 = vmatpush1.bf16.msra.mxu0 0
      %2361 = vmatprep.subr.bf16.mxu0 0
      %2362 = vmatpush1.bf16.msra.mxu0 %v2346
      %2363 = vmatprep.subr.bf16.mxu0 0
      %2364 = vmatpush1.bf16.msra.mxu0 %v2345
      %2365 = vmatprep.subr.bf16.mxu0 0
      %2366 = vmatpush2.bf16.msra.mxu0 0
      %2367 = vmatprep.subr.bf16.mxu0 0
      %2368 = vmatpush2.bf16.msra.mxu0 0
      %2369 = vmatprep.subr.bf16.mxu0 0
      %2370 = vmatpush2.bf16.msra.mxu0 0
      %2371 = vmatprep.subr.bf16.mxu0 0
      %2372 = vmatpush2.bf16.msra.mxu0 0
      %2373 = vmatprep.subr.bf16.mxu0 0
      %2374 = vmatpush2.bf16.msra.mxu0 0
      %2375 = vmatprep.subr.bf16.mxu0 0
      %2376 = vmatpush2.bf16.msra.mxu0 0
      %2377 = vmatprep.subr.bf16.mxu0 0
      %2378 = vmatpush2.bf16.msra.mxu0 0
      %2379 = vmatprep.subr.bf16.mxu0 0
      %2380 = vmatpush2.bf16.msra.mxu0 0
      %2381 = vmatprep.mubr.bf16.mxu0 0
      %2382 = vmatmul.mubr.bf16.gmra.mxu0 %v2231
      %v2383 = vpop.f32.mrf.mxu0
      %v2384 = vadd.f32 0.0, %v2383
      %v2385 = vpop.f32.mrf.mxu0
      %v2386 = vpop.f32.mrf.mxu0
      %v2387 = vpop.f32.mrf.mxu0
      %2388 = vdwg.mxu0
      %v2389 = vpack.c.bf16 %v2384, %v2384
      %v2391 = vsel %vm589, %v2273, 0
      %v2394 = vsel %vm589, %v2331, 0
      %2396 = vmatprep.subr.bf16.mxu0 0
      %2397 = vmatpush1.bf16.xpose.msra.mxu0 0
      %2398 = vmatprep.subr.bf16.mxu0 0
      %2399 = vmatpush1.bf16.xpose.msra.mxu0 0
      %2400 = vmatprep.subr.bf16.mxu0 0
      %2401 = vmatpush1.bf16.xpose.msra.mxu0 0
      %2402 = vmatprep.subr.bf16.mxu0 0
      %2403 = vmatpush1.bf16.xpose.msra.mxu0 0
      %2404 = vmatprep.subr.bf16.mxu0 0
      %2405 = vmatpush1.bf16.xpose.msra.mxu0 0
      %2406 = vmatprep.subr.bf16.mxu0 0
      %2407 = vmatpush1.bf16.xpose.msra.mxu0 0
      %2408 = vmatprep.subr.bf16.mxu0 0
      %2409 = vmatpush1.bf16.xpose.msra.mxu0 0
      %2410 = vmatprep.subr.bf16.mxu0 0
      %2411 = vmatpush1.bf16.xpose.msra.mxu0 %v2394
      %2412 = vmatprep.subr.bf16.mxu0 0
      %2413 = vmatpush2.bf16.xpose.msra.mxu0 0
      %2414 = vmatprep.subr.bf16.mxu0 0
      %2415 = vmatpush2.bf16.xpose.msra.mxu0 0
      %2416 = vmatprep.subr.bf16.mxu0 0
      %2417 = vmatpush2.bf16.xpose.msra.mxu0 0
      %2418 = vmatprep.subr.bf16.mxu0 0
      %2419 = vmatpush2.bf16.xpose.msra.mxu0 0
      %2420 = vmatprep.subr.bf16.mxu0 0
      %2421 = vmatpush2.bf16.xpose.msra.mxu0 0
      %2422 = vmatprep.subr.bf16.mxu0 0
      %2423 = vmatpush2.bf16.xpose.msra.mxu0 0
      %2424 = vmatprep.subr.bf16.mxu0 0
      %2425 = vmatpush2.bf16.xpose.msra.mxu0 0
      %2426 = vmatprep.subr.bf16.mxu0 0
      %2427 = vmatpush2.bf16.xpose.msra.mxu0 0
      %2428 = vmatprep.mubr.bf16.mxu0 0
      %2429 = vmatmul.mubr.bf16.gmra.mxu0 %v2391
      %v2430 = vpop.f32.mrf.mxu0
      %v2431 = vadd.f32 0.0, %v2430
      %v2432 = vpop.f32.mrf.mxu0
      %v2433 = vpop.f32.mrf.mxu0
      %v2434 = vpop.f32.mrf.mxu0
      %2435 = vdwg.mxu0
      %v2436 = vmul.f32 %v2431, 0.35355338
      %v2437 = vadd.f32 %v2436, %v897
      %v2438 = vsel %vm589, %v2437, -inf
      %2439 = vmax.xlane.f32.xlu0 %v2438
      %v2440 = vpop.xlane.xlu0 %2439
      %v2441 = vsub.f32 %v2437, %v2440
      %v2442 = vmul.f32 %v2441, 1.442695
      %v2443 = vpow.pop %v2442
      %v2444 = vsel %vm589, %v2443, 0.0
      %2445 = vadd.xlane.f32.xlu0 %v2444
      %v2446 = vpop.xlane.xlu0 %2445
      %v2447 = vrcp.pop %v2446
      %v2448 = vmul.f32 %v2443, %v2447
      %v2449 = vpack.c.bf16 %v2448, %v2448
      %v2451 = vsel %vm589, %v2449, 0
      %v2454 = vsel %vm593, %v2389, 0
      %2456 = vmatprep.subr.bf16.mxu0 0
      %2457 = vmatpush1.bf16.msra.mxu0 0
      %2458 = vmatprep.subr.bf16.mxu0 0
      %2459 = vmatpush1.bf16.msra.mxu0 0
      %2460 = vmatprep.subr.bf16.mxu0 0
      %2461 = vmatpush1.bf16.msra.mxu0 0
      %2462 = vmatprep.subr.bf16.mxu0 0
      %2463 = vmatpush1.bf16.msra.mxu0 0
      %2464 = vmatprep.subr.bf16.mxu0 0
      %2465 = vmatpush1.bf16.msra.mxu0 0
      %2466 = vmatprep.subr.bf16.mxu0 0
      %2467 = vmatpush1.bf16.msra.mxu0 0
      %2468 = vmatprep.subr.bf16.mxu0 0
      %2469 = vmatpush1.bf16.msra.mxu0 0
      %2470 = vmatprep.subr.bf16.mxu0 0
      %2471 = vmatpush1.bf16.msra.mxu0 %v2454
      %2472 = vmatprep.subr.bf16.mxu0 0
      %2473 = vmatpush2.bf16.msra.mxu0 0
      %2474 = vmatprep.subr.bf16.mxu0 0
      %2475 = vmatpush2.bf16.msra.mxu0 0
      %2476 = vmatprep.subr.bf16.mxu0 0
      %2477 = vmatpush2.bf16.msra.mxu0 0
      %2478 = vmatprep.subr.bf16.mxu0 0
      %2479 = vmatpush2.bf16.msra.mxu0 0
      %2480 = vmatprep.subr.bf16.mxu0 0
      %2481 = vmatpush2.bf16.msra.mxu0 0
      %2482 = vmatprep.subr.bf16.mxu0 0
      %2483 = vmatpush2.bf16.msra.mxu0 0
      %2484 = vmatprep.subr.bf16.mxu0 0
      %2485 = vmatpush2.bf16.msra.mxu0 0
      %2486 = vmatprep.subr.bf16.mxu0 0
      %2487 = vmatpush2.bf16.msra.mxu0 0
      %2488 = vmatprep.mubr.bf16.mxu0 0
      %2489 = vmatmul.mubr.bf16.gmra.mxu0 %v2451
      %v2490 = vpop.f32.mrf.mxu0
      %v2491 = vadd.f32 0.0, %v2490
      %v2492 = vpop.f32.mrf.mxu0
      %v2493 = vpop.f32.mrf.mxu0
      %v2494 = vpop.f32.mrf.mxu0
      %2495 = vdwg.mxu0
      %s2496 = scalar_lea.vmem %s8, 16
      %v2497 = vld [vmem:[%s2496] sm:$0xf]
      %v2498 = vpack.c.bf16 %v2491, %v2491
      %s2499 = scalar_lea.vmem %s5, 80
      %v2500 = vld [vmem:[%s2499] sm:$0xf]
      %v2501 = vld [vmem:[%s2499 + $0x4] sm:$0xf]
      %v2502 = vld [vmem:[%s2499 + $0x8] sm:$0xf]
      %v2503 = vld [vmem:[%s2499 + $0xc] sm:$0xf]
      %v2508 = vunpack.c.l.b16 %v2500
      %v2509 = vunpack.c.l.b16 %v2501
      %v2510 = vunpack.c.l.b16 %v2502
      %v2511 = vunpack.c.l.b16 %v2503
      %v2512 = vpack.c.b16 %v2509, %v2508
      %v2513 = vpack.c.b16 %v2511, %v2510
      %2516 = vmatprep.subr.bf16.mxu0 0
      %2517 = vmatpush1.bf16.msra.mxu0 0
      %2518 = vmatprep.subr.bf16.mxu0 0
      %2519 = vmatpush1.bf16.msra.mxu0 0
      %2520 = vmatprep.subr.bf16.mxu0 0
      %2521 = vmatpush1.bf16.msra.mxu0 0
      %2522 = vmatprep.subr.bf16.mxu0 0
      %2523 = vmatpush1.bf16.msra.mxu0 0
      %2524 = vmatprep.subr.bf16.mxu0 0
      %2525 = vmatpush1.bf16.msra.mxu0 0
      %2526 = vmatprep.subr.bf16.mxu0 0
      %2527 = vmatpush1.bf16.msra.mxu0 0
      %2528 = vmatprep.subr.bf16.mxu0 0
      %2529 = vmatpush1.bf16.msra.mxu0 %v2513
      %2530 = vmatprep.subr.bf16.mxu0 0
      %2531 = vmatpush1.bf16.msra.mxu0 %v2512
      %2532 = vmatprep.subr.bf16.mxu0 0
      %2533 = vmatpush2.bf16.msra.mxu0 0
      %2534 = vmatprep.subr.bf16.mxu0 0
      %2535 = vmatpush2.bf16.msra.mxu0 0
      %2536 = vmatprep.subr.bf16.mxu0 0
      %2537 = vmatpush2.bf16.msra.mxu0 0
      %2538 = vmatprep.subr.bf16.mxu0 0
      %2539 = vmatpush2.bf16.msra.mxu0 0
      %2540 = vmatprep.subr.bf16.mxu0 0
      %2541 = vmatpush2.bf16.msra.mxu0 0
      %2542 = vmatprep.subr.bf16.mxu0 0
      %2543 = vmatpush2.bf16.msra.mxu0 0
      %2544 = vmatprep.subr.bf16.mxu0 0
      %2545 = vmatpush2.bf16.msra.mxu0 0
      %2546 = vmatprep.subr.bf16.mxu0 0
      %2547 = vmatpush2.bf16.msra.mxu0 0
      %2548 = vmatprep.mubr.bf16.mxu0 0
      %2549 = vmatmul.mubr.bf16.gmra.mxu0 %v2231
      %v2550 = vpop.f32.mrf.mxu0
      %v2551 = vadd.f32 0.0, %v2550
      %v2552 = vpop.f32.mrf.mxu0
      %v2553 = vpop.f32.mrf.mxu0
      %v2554 = vpop.f32.mrf.mxu0
      %2555 = vdwg.mxu0
      %v2556 = vpack.c.bf16 %v2551, %v2551
      %s2557 = scalar_lea.vmem %s6, 80
      %v2558 = vld [vmem:[%s2557] sm:$0xf]
      %v2559 = vld [vmem:[%s2557 + $0x4] sm:$0xf]
      %v2560 = vld [vmem:[%s2557 + $0x8] sm:$0xf]
      %v2561 = vld [vmem:[%s2557 + $0xc] sm:$0xf]
      %v2566 = vunpack.c.l.b16 %v2558
      %v2567 = vunpack.c.l.b16 %v2559
      %v2568 = vunpack.c.l.b16 %v2560
      %v2569 = vunpack.c.l.b16 %v2561
      %v2570 = vpack.c.b16 %v2567, %v2566
      %v2571 = vpack.c.b16 %v2569, %v2568
      %2574 = vmatprep.subr.bf16.mxu0 0
      %2575 = vmatpush1.bf16.msra.mxu0 0
      %2576 = vmatprep.subr.bf16.mxu0 0
      %2577 = vmatpush1.bf16.msra.mxu0 0
      %2578 = vmatprep.subr.bf16.mxu0 0
      %2579 = vmatpush1.bf16.msra.mxu0 0
      %2580 = vmatprep.subr.bf16.mxu0 0
      %2581 = vmatpush1.bf16.msra.mxu0 0
      %2582 = vmatprep.subr.bf16.mxu0 0
      %2583 = vmatpush1.bf16.msra.mxu0 0
      %2584 = vmatprep.subr.bf16.mxu0 0
      %2585 = vmatpush1.bf16.msra.mxu0 0
      %2586 = vmatprep.subr.bf16.mxu0 0
      %2587 = vmatpush1.bf16.msra.mxu0 %v2571
      %2588 = vmatprep.subr.bf16.mxu0 0
      %2589 = vmatpush1.bf16.msra.mxu0 %v2570
      %2590 = vmatprep.subr.bf16.mxu0 0
      %2591 = vmatpush2.bf16.msra.mxu0 0
      %2592 = vmatprep.subr.bf16.mxu0 0
      %2593 = vmatpush2.bf16.msra.mxu0 0
      %2594 = vmatprep.subr.bf16.mxu0 0
      %2595 = vmatpush2.bf16.msra.mxu0 0
      %2596 = vmatprep.subr.bf16.mxu0 0
      %2597 = vmatpush2.bf16.msra.mxu0 0
      %2598 = vmatprep.subr.bf16.mxu0 0
      %2599 = vmatpush2.bf16.msra.mxu0 0
      %2600 = vmatprep.subr.bf16.mxu0 0
      %2601 = vmatpush2.bf16.msra.mxu0 0
      %2602 = vmatprep.subr.bf16.mxu0 0
      %2603 = vmatpush2.bf16.msra.mxu0 0
      %2604 = vmatprep.subr.bf16.mxu0 0
      %2605 = vmatpush2.bf16.msra.mxu0 0
      %2606 = vmatprep.mubr.bf16.mxu0 0
      %2607 = vmatmul.mubr.bf16.gmra.mxu0 %v2231
      %v2608 = vpop.f32.mrf.mxu0
      %v2609 = vadd.f32 0.0, %v2608
      %v2610 = vpop.f32.mrf.mxu0
      %v2611 = vpop.f32.mrf.mxu0
      %v2612 = vpop.f32.mrf.mxu0
      %2613 = vdwg.mxu0
      %v2614 = vpack.c.bf16 %v2609, %v2609
      %s2615 = scalar_lea.vmem %s7, 80
      %v2616 = vld [vmem:[%s2615] sm:$0xf]
      %v2617 = vld [vmem:[%s2615 + $0x4] sm:$0xf]
      %v2618 = vld [vmem:[%s2615 + $0x8] sm:$0xf]
      %v2619 = vld [vmem:[%s2615 + $0xc] sm:$0xf]
      %v2624 = vunpack.c.l.b16 %v2616
      %v2625 = vunpack.c.l.b16 %v2617
      %v2626 = vunpack.c.l.b16 %v2618
      %v2627 = vunpack.c.l.b16 %v2619
      %v2628 = vpack.c.b16 %v2625, %v2624
      %v2629 = vpack.c.b16 %v2627, %v2626
      %2632 = vmatprep.subr.bf16.mxu0 0
      %2633 = vmatpush1.bf16.msra.mxu0 0
      %2634 = vmatprep.subr.bf16.mxu0 0
      %2635 = vmatpush1.bf16.msra.mxu0 0
      %2636 = vmatprep.subr.bf16.mxu0 0
      %2637 = vmatpush1.bf16.msra.mxu0 0
      %2638 = vmatprep.subr.bf16.mxu0 0
      %2639 = vmatpush1.bf16.msra.mxu0 0
      %2640 = vmatprep.subr.bf16.mxu0 0
      %2641 = vmatpush1.bf16.msra.mxu0 0
      %2642 = vmatprep.subr.bf16.mxu0 0
      %2643 = vmatpush1.bf16.msra.mxu0 0
      %2644 = vmatprep.subr.bf16.mxu0 0
      %2645 = vmatpush1.bf16.msra.mxu0 %v2629
      %2646 = vmatprep.subr.bf16.mxu0 0
      %2647 = vmatpush1.bf16.msra.mxu0 %v2628
      %2648 = vmatprep.subr.bf16.mxu0 0
      %2649 = vmatpush2.bf16.msra.mxu0 0
      %2650 = vmatprep.subr.bf16.mxu0 0
      %2651 = vmatpush2.bf16.msra.mxu0 0
      %2652 = vmatprep.subr.bf16.mxu0 0
      %2653 = vmatpush2.bf16.msra.mxu0 0
      %2654 = vmatprep.subr.bf16.mxu0 0
      %2655 = vmatpush2.bf16.msra.mxu0 0
      %2656 = vmatprep.subr.bf16.mxu0 0
      %2657 = vmatpush2.bf16.msra.mxu0 0
      %2658 = vmatprep.subr.bf16.mxu0 0
      %2659 = vmatpush2.bf16.msra.mxu0 0
      %2660 = vmatprep.subr.bf16.mxu0 0
      %2661 = vmatpush2.bf16.msra.mxu0 0
      %2662 = vmatprep.subr.bf16.mxu0 0
      %2663 = vmatpush2.bf16.msra.mxu0 0
      %2664 = vmatprep.mubr.bf16.mxu0 0
      %2665 = vmatmul.mubr.bf16.gmra.mxu0 %v2231
      %v2666 = vpop.f32.mrf.mxu0
      %v2667 = vadd.f32 0.0, %v2666
      %v2668 = vpop.f32.mrf.mxu0
      %v2669 = vpop.f32.mrf.mxu0
      %v2670 = vpop.f32.mrf.mxu0
      %2671 = vdwg.mxu0
      %v2672 = vpack.c.bf16 %v2667, %v2667
      %v2674 = vsel %vm589, %v2556, 0
      %v2677 = vsel %vm589, %v2614, 0
      %2679 = vmatprep.subr.bf16.mxu0 0
      %2680 = vmatpush1.bf16.xpose.msra.mxu0 0
      %2681 = vmatprep.subr.bf16.mxu0 0
      %2682 = vmatpush1.bf16.xpose.msra.mxu0 0
      %2683 = vmatprep.subr.bf16.mxu0 0
      %2684 = vmatpush1.bf16.xpose.msra.mxu0 0
      %2685 = vmatprep.subr.bf16.mxu0 0
      %2686 = vmatpush1.bf16.xpose.msra.mxu0 0
      %2687 = vmatprep.subr.bf16.mxu0 0
      %2688 = vmatpush1.bf16.xpose.msra.mxu0 0
      %2689 = vmatprep.subr.bf16.mxu0 0
      %2690 = vmatpush1.bf16.xpose.msra.mxu0 0
      %2691 = vmatprep.subr.bf16.mxu0 0
      %2692 = vmatpush1.bf16.xpose.msra.mxu0 0
      %2693 = vmatprep.subr.bf16.mxu0 0
      %2694 = vmatpush1.bf16.xpose.msra.mxu0 %v2677
      %2695 = vmatprep.subr.bf16.mxu0 0
      %2696 = vmatpush2.bf16.xpose.msra.mxu0 0
      %2697 = vmatprep.subr.bf16.mxu0 0
      %2698 = vmatpush2.bf16.xpose.msra.mxu0 0
      %2699 = vmatprep.subr.bf16.mxu0 0
      %2700 = vmatpush2.bf16.xpose.msra.mxu0 0
      %2701 = vmatprep.subr.bf16.mxu0 0
      %2702 = vmatpush2.bf16.xpose.msra.mxu0 0
      %2703 = vmatprep.subr.bf16.mxu0 0
      %2704 = vmatpush2.bf16.xpose.msra.mxu0 0
      %2705 = vmatprep.subr.bf16.mxu0 0
      %2706 = vmatpush2.bf16.xpose.msra.mxu0 0
      %2707 = vmatprep.subr.bf16.mxu0 0
      %2708 = vmatpush2.bf16.xpose.msra.mxu0 0
      %2709 = vmatprep.subr.bf16.mxu0 0
      %2710 = vmatpush2.bf16.xpose.msra.mxu0 0
      %2711 = vmatprep.mubr.bf16.mxu0 0
      %2712 = vmatmul.mubr.bf16.gmra.mxu0 %v2674
      %v2713 = vpop.f32.mrf.mxu0
      %v2714 = vadd.f32 0.0, %v2713
      %v2715 = vpop.f32.mrf.mxu0
      %v2716 = vpop.f32.mrf.mxu0
      %v2717 = vpop.f32.mrf.mxu0
      %2718 = vdwg.mxu0
      %v2719 = vmul.f32 %v2714, 0.35355338
      %v2720 = vadd.f32 %v2719, %v897
      %v2721 = vsel %vm589, %v2720, -inf
      %2722 = vmax.xlane.f32.xlu0 %v2721
      %v2723 = vpop.xlane.xlu0 %2722
      %v2724 = vsub.f32 %v2720, %v2723
      %v2725 = vmul.f32 %v2724, 1.442695
      %v2726 = vpow.pop %v2725
      %v2727 = vsel %vm589, %v2726, 0.0
      %2728 = vadd.xlane.f32.xlu0 %v2727
      %v2729 = vpop.xlane.xlu0 %2728
      %v2730 = vrcp.pop %v2729
      %v2731 = vmul.f32 %v2726, %v2730
      %v2732 = vpack.c.bf16 %v2731, %v2731
      %v2734 = vsel %vm589, %v2732, 0
      %v2737 = vsel %vm593, %v2672, 0
      %2739 = vmatprep.subr.bf16.mxu0 0
      %2740 = vmatpush1.bf16.msra.mxu0 0
      %2741 = vmatprep.subr.bf16.mxu0 0
      %2742 = vmatpush1.bf16.msra.mxu0 0
      %2743 = vmatprep.subr.bf16.mxu0 0
      %2744 = vmatpush1.bf16.msra.mxu0 0
      %2745 = vmatprep.subr.bf16.mxu0 0
      %2746 = vmatpush1.bf16.msra.mxu0 0
      %2747 = vmatprep.subr.bf16.mxu0 0
      %2748 = vmatpush1.bf16.msra.mxu0 0
      %2749 = vmatprep.subr.bf16.mxu0 0
      %2750 = vmatpush1.bf16.msra.mxu0 0
      %2751 = vmatprep.subr.bf16.mxu0 0
      %2752 = vmatpush1.bf16.msra.mxu0 0
      %2753 = vmatprep.subr.bf16.mxu0 0
      %2754 = vmatpush1.bf16.msra.mxu0 %v2737
      %2755 = vmatprep.subr.bf16.mxu0 0
      %2756 = vmatpush2.bf16.msra.mxu0 0
      %2757 = vmatprep.subr.bf16.mxu0 0
      %2758 = vmatpush2.bf16.msra.mxu0 0
      %2759 = vmatprep.subr.bf16.mxu0 0
      %2760 = vmatpush2.bf16.msra.mxu0 0
      %2761 = vmatprep.subr.bf16.mxu0 0
      %2762 = vmatpush2.bf16.msra.mxu0 0
      %2763 = vmatprep.subr.bf16.mxu0 0
      %2764 = vmatpush2.bf16.msra.mxu0 0
      %2765 = vmatprep.subr.bf16.mxu0 0
      %2766 = vmatpush2.bf16.msra.mxu0 0
      %2767 = vmatprep.subr.bf16.mxu0 0
      %2768 = vmatpush2.bf16.msra.mxu0 0
      %2769 = vmatprep.subr.bf16.mxu0 0
      %2770 = vmatpush2.bf16.msra.mxu0 0
      %2771 = vmatprep.mubr.bf16.mxu0 0
      %2772 = vmatmul.mubr.bf16.gmra.mxu0 %v2734
      %v2773 = vpop.f32.mrf.mxu0
      %v2774 = vadd.f32 0.0, %v2773
      %v2775 = vpop.f32.mrf.mxu0
      %v2776 = vpop.f32.mrf.mxu0
      %v2777 = vpop.f32.mrf.mxu0
      %2778 = vdwg.mxu0
      %s2779 = scalar_lea.vmem %s8, 20
      %v2780 = vld [vmem:[%s2779] sm:$0xf]
      %v2781 = vpack.c.bf16 %v2774, %v2774
      %v2783 = vsel %vm589, %v2781, 0
      %v2786 = vsel %vm593, %v2780, 0
      %2788 = vmatprep.subr.bf16.mxu0 0
      %2789 = vmatpush1.bf16.msra.mxu0 0
      %2790 = vmatprep.subr.bf16.mxu0 0
      %2791 = vmatpush1.bf16.msra.mxu0 0
      %2792 = vmatprep.subr.bf16.mxu0 0
      %2793 = vmatpush1.bf16.msra.mxu0 0
      %2794 = vmatprep.subr.bf16.mxu0 0
      %2795 = vmatpush1.bf16.msra.mxu0 0
      %2796 = vmatprep.subr.bf16.mxu0 0
      %2797 = vmatpush1.bf16.msra.mxu0 0
      %2798 = vmatprep.subr.bf16.mxu0 0
      %2799 = vmatpush1.bf16.msra.mxu0 0
      %2800 = vmatprep.subr.bf16.mxu0 0
      %2801 = vmatpush1.bf16.msra.mxu0 0
      %2802 = vmatprep.subr.bf16.mxu0 0
      %2803 = vmatpush1.bf16.msra.mxu0 %v2786
      %2804 = vmatprep.subr.bf16.mxu0 0
      %2805 = vmatpush2.bf16.msra.mxu0 0
      %2806 = vmatprep.subr.bf16.mxu0 0
      %2807 = vmatpush2.bf16.msra.mxu0 0
      %2808 = vmatprep.subr.bf16.mxu0 0
      %2809 = vmatpush2.bf16.msra.mxu0 0
      %2810 = vmatprep.subr.bf16.mxu0 0
      %2811 = vmatpush2.bf16.msra.mxu0 0
      %2812 = vmatprep.subr.bf16.mxu0 0
      %2813 = vmatpush2.bf16.msra.mxu0 0
      %2814 = vmatprep.subr.bf16.mxu0 0
      %2815 = vmatpush2.bf16.msra.mxu0 0
      %2816 = vmatprep.subr.bf16.mxu0 0
      %2817 = vmatpush2.bf16.msra.mxu0 0
      %2818 = vmatprep.subr.bf16.mxu0 0
      %2819 = vmatpush2.bf16.msra.mxu0 0
      %2820 = vmatprep.mubr.bf16.mxu0 0
      %2821 = vmatmul.mubr.bf16.gmra.mxu0 %v2783
      %v2822 = vpop.f32.mrf.mxu0
      %v2823 = vadd.f32 0.0, %v2822
      %v2824 = vpop.f32.mrf.mxu0
      %v2825 = vpop.f32.mrf.mxu0
      %v2826 = vpop.f32.mrf.mxu0
      %2827 = vdwg.mxu0
      %v2829 = vsel %vm589, %v2498, 0
      %v2832 = vsel %vm593, %v2497, 0
      %2834 = vmatprep.subr.bf16.mxu0 0
      %2835 = vmatpush1.bf16.msra.mxu0 0
      %2836 = vmatprep.subr.bf16.mxu0 0
      %2837 = vmatpush1.bf16.msra.mxu0 0
      %2838 = vmatprep.subr.bf16.mxu0 0
      %2839 = vmatpush1.bf16.msra.mxu0 0
      %2840 = vmatprep.subr.bf16.mxu0 0
      %2841 = vmatpush1.bf16.msra.mxu0 0
      %2842 = vmatprep.subr.bf16.mxu0 0
      %2843 = vmatpush1.bf16.msra.mxu0 0
      %2844 = vmatprep.subr.bf16.mxu0 0
      %2845 = vmatpush1.bf16.msra.mxu0 0
      %2846 = vmatprep.subr.bf16.mxu0 0
      %2847 = vmatpush1.bf16.msra.mxu0 0
      %2848 = vmatprep.subr.bf16.mxu0 0
      %2849 = vmatpush1.bf16.msra.mxu0 %v2832
      %2850 = vmatprep.subr.bf16.mxu0 0
      %2851 = vmatpush2.bf16.msra.mxu0 0
      %2852 = vmatprep.subr.bf16.mxu0 0
      %2853 = vmatpush2.bf16.msra.mxu0 0
      %2854 = vmatprep.subr.bf16.mxu0 0
      %2855 = vmatpush2.bf16.msra.mxu0 0
      %2856 = vmatprep.subr.bf16.mxu0 0
      %2857 = vmatpush2.bf16.msra.mxu0 0
      %2858 = vmatprep.subr.bf16.mxu0 0
      %2859 = vmatpush2.bf16.msra.mxu0 0
      %2860 = vmatprep.subr.bf16.mxu0 0
      %2861 = vmatpush2.bf16.msra.mxu0 0
      %2862 = vmatprep.subr.bf16.mxu0 0
      %2863 = vmatpush2.bf16.msra.mxu0 0
      %2864 = vmatprep.subr.bf16.mxu0 0
      %2865 = vmatpush2.bf16.msra.mxu0 0
      %2866 = vmatprep.mubr.bf16.mxu0 0
      %2867 = vmatmul.mubr.bf16.gmra.mxu0 %v2829
      %v2868 = vpop.f32.mrf.mxu0
      %v2869 = vadd.f32 %v2823, %v2868
      %v2870 = vpop.f32.mrf.mxu0
      %v2871 = vpop.f32.mrf.mxu0
      %v2872 = vpop.f32.mrf.mxu0
      %2873 = vdwg.mxu0
      %s2874 = scalar_lea.vmem %s5, 96
      %v2875 = vld [vmem:[%s2874] sm:$0xf]
      %v2876 = vld [vmem:[%s2874 + $0x4] sm:$0xf]
      %v2877 = vld [vmem:[%s2874 + $0x8] sm:$0xf]
      %v2878 = vld [vmem:[%s2874 + $0xc] sm:$0xf]
      %v2883 = vunpack.c.l.b16 %v2875
      %v2884 = vunpack.c.l.b16 %v2876
      %v2885 = vunpack.c.l.b16 %v2877
      %v2886 = vunpack.c.l.b16 %v2878
      %v2887 = vpack.c.b16 %v2884, %v2883
      %v2888 = vpack.c.b16 %v2886, %v2885
      %2891 = vmatprep.subr.bf16.mxu0 0
      %2892 = vmatpush1.bf16.msra.mxu0 0
      %2893 = vmatprep.subr.bf16.mxu0 0
      %2894 = vmatpush1.bf16.msra.mxu0 0
      %2895 = vmatprep.subr.bf16.mxu0 0
      %2896 = vmatpush1.bf16.msra.mxu0 0
      %2897 = vmatprep.subr.bf16.mxu0 0
      %2898 = vmatpush1.bf16.msra.mxu0 0
      %2899 = vmatprep.subr.bf16.mxu0 0
      %2900 = vmatpush1.bf16.msra.mxu0 0
      %2901 = vmatprep.subr.bf16.mxu0 0
      %2902 = vmatpush1.bf16.msra.mxu0 0
      %2903 = vmatprep.subr.bf16.mxu0 0
      %2904 = vmatpush1.bf16.msra.mxu0 %v2888
      %2905 = vmatprep.subr.bf16.mxu0 0
      %2906 = vmatpush1.bf16.msra.mxu0 %v2887
      %2907 = vmatprep.subr.bf16.mxu0 0
      %2908 = vmatpush2.bf16.msra.mxu0 0
      %2909 = vmatprep.subr.bf16.mxu0 0
      %2910 = vmatpush2.bf16.msra.mxu0 0
      %2911 = vmatprep.subr.bf16.mxu0 0
      %2912 = vmatpush2.bf16.msra.mxu0 0
      %2913 = vmatprep.subr.bf16.mxu0 0
      %2914 = vmatpush2.bf16.msra.mxu0 0
      %2915 = vmatprep.subr.bf16.mxu0 0
      %2916 = vmatpush2.bf16.msra.mxu0 0
      %2917 = vmatprep.subr.bf16.mxu0 0
      %2918 = vmatpush2.bf16.msra.mxu0 0
      %2919 = vmatprep.subr.bf16.mxu0 0
      %2920 = vmatpush2.bf16.msra.mxu0 0
      %2921 = vmatprep.subr.bf16.mxu0 0
      %2922 = vmatpush2.bf16.msra.mxu0 0
      %2923 = vmatprep.mubr.bf16.mxu0 0
      %2924 = vmatmul.mubr.bf16.gmra.mxu0 %v2231
      %v2925 = vpop.f32.mrf.mxu0
      %v2926 = vadd.f32 0.0, %v2925
      %v2927 = vpop.f32.mrf.mxu0
      %v2928 = vpop.f32.mrf.mxu0
      %v2929 = vpop.f32.mrf.mxu0
      %2930 = vdwg.mxu0
      %v2931 = vpack.c.bf16 %v2926, %v2926
      %s2932 = scalar_lea.vmem %s6, 96
      %v2933 = vld [vmem:[%s2932] sm:$0xf]
      %v2934 = vld [vmem:[%s2932 + $0x4] sm:$0xf]
      %v2935 = vld [vmem:[%s2932 + $0x8] sm:$0xf]
      %v2936 = vld [vmem:[%s2932 + $0xc] sm:$0xf]
      %v2941 = vunpack.c.l.b16 %v2933
      %v2942 = vunpack.c.l.b16 %v2934
      %v2943 = vunpack.c.l.b16 %v2935
      %v2944 = vunpack.c.l.b16 %v2936
      %v2945 = vpack.c.b16 %v2942, %v2941
      %v2946 = vpack.c.b16 %v2944, %v2943
      %2949 = vmatprep.subr.bf16.mxu0 0
      %2950 = vmatpush1.bf16.msra.mxu0 0
      %2951 = vmatprep.subr.bf16.mxu0 0
      %2952 = vmatpush1.bf16.msra.mxu0 0
      %2953 = vmatprep.subr.bf16.mxu0 0
      %2954 = vmatpush1.bf16.msra.mxu0 0
      %2955 = vmatprep.subr.bf16.mxu0 0
      %2956 = vmatpush1.bf16.msra.mxu0 0
      %2957 = vmatprep.subr.bf16.mxu0 0
      %2958 = vmatpush1.bf16.msra.mxu0 0
      %2959 = vmatprep.subr.bf16.mxu0 0
      %2960 = vmatpush1.bf16.msra.mxu0 0
      %2961 = vmatprep.subr.bf16.mxu0 0
      %2962 = vmatpush1.bf16.msra.mxu0 %v2946
      %2963 = vmatprep.subr.bf16.mxu0 0
      %2964 = vmatpush1.bf16.msra.mxu0 %v2945
      %2965 = vmatprep.subr.bf16.mxu0 0
      %2966 = vmatpush2.bf16.msra.mxu0 0
      %2967 = vmatprep.subr.bf16.mxu0 0
      %2968 = vmatpush2.bf16.msra.mxu0 0
      %2969 = vmatprep.subr.bf16.mxu0 0
      %2970 = vmatpush2.bf16.msra.mxu0 0
      %2971 = vmatprep.subr.bf16.mxu0 0
      %2972 = vmatpush2.bf16.msra.mxu0 0
      %2973 = vmatprep.subr.bf16.mxu0 0
      %2974 = vmatpush2.bf16.msra.mxu0 0
      %2975 = vmatprep.subr.bf16.mxu0 0
      %2976 = vmatpush2.bf16.msra.mxu0 0
      %2977 = vmatprep.subr.bf16.mxu0 0
      %2978 = vmatpush2.bf16.msra.mxu0 0
      %2979 = vmatprep.subr.bf16.mxu0 0
      %2980 = vmatpush2.bf16.msra.mxu0 0
      %2981 = vmatprep.mubr.bf16.mxu0 0
      %2982 = vmatmul.mubr.bf16.gmra.mxu0 %v2231
      %v2983 = vpop.f32.mrf.mxu0
      %v2984 = vadd.f32 0.0, %v2983
      %v2985 = vpop.f32.mrf.mxu0
      %v2986 = vpop.f32.mrf.mxu0
      %v2987 = vpop.f32.mrf.mxu0
      %2988 = vdwg.mxu0
      %v2989 = vpack.c.bf16 %v2984, %v2984
      %s2990 = scalar_lea.vmem %s7, 96
      %v2991 = vld [vmem:[%s2990] sm:$0xf]
      %v2992 = vld [vmem:[%s2990 + $0x4] sm:$0xf]
      %v2993 = vld [vmem:[%s2990 + $0x8] sm:$0xf]
      %v2994 = vld [vmem:[%s2990 + $0xc] sm:$0xf]
      %v2999 = vunpack.c.l.b16 %v2991
      %v3000 = vunpack.c.l.b16 %v2992
      %v3001 = vunpack.c.l.b16 %v2993
      %v3002 = vunpack.c.l.b16 %v2994
      %v3003 = vpack.c.b16 %v3000, %v2999
      %v3004 = vpack.c.b16 %v3002, %v3001
      %3007 = vmatprep.subr.bf16.mxu0 0
      %3008 = vmatpush1.bf16.msra.mxu0 0
      %3009 = vmatprep.subr.bf16.mxu0 0
      %3010 = vmatpush1.bf16.msra.mxu0 0
      %3011 = vmatprep.subr.bf16.mxu0 0
      %3012 = vmatpush1.bf16.msra.mxu0 0
      %3013 = vmatprep.subr.bf16.mxu0 0
      %3014 = vmatpush1.bf16.msra.mxu0 0
      %3015 = vmatprep.subr.bf16.mxu0 0
      %3016 = vmatpush1.bf16.msra.mxu0 0
      %3017 = vmatprep.subr.bf16.mxu0 0
      %3018 = vmatpush1.bf16.msra.mxu0 0
      %3019 = vmatprep.subr.bf16.mxu0 0
      %3020 = vmatpush1.bf16.msra.mxu0 %v3004
      %3021 = vmatprep.subr.bf16.mxu0 0
      %3022 = vmatpush1.bf16.msra.mxu0 %v3003
      %3023 = vmatprep.subr.bf16.mxu0 0
      %3024 = vmatpush2.bf16.msra.mxu0 0
      %3025 = vmatprep.subr.bf16.mxu0 0
      %3026 = vmatpush2.bf16.msra.mxu0 0
      %3027 = vmatprep.subr.bf16.mxu0 0
      %3028 = vmatpush2.bf16.msra.mxu0 0
      %3029 = vmatprep.subr.bf16.mxu0 0
      %3030 = vmatpush2.bf16.msra.mxu0 0
      %3031 = vmatprep.subr.bf16.mxu0 0
      %3032 = vmatpush2.bf16.msra.mxu0 0
      %3033 = vmatprep.subr.bf16.mxu0 0
      %3034 = vmatpush2.bf16.msra.mxu0 0
      %3035 = vmatprep.subr.bf16.mxu0 0
      %3036 = vmatpush2.bf16.msra.mxu0 0
      %3037 = vmatprep.subr.bf16.mxu0 0
      %3038 = vmatpush2.bf16.msra.mxu0 0
      %3039 = vmatprep.mubr.bf16.mxu0 0
      %3040 = vmatmul.mubr.bf16.gmra.mxu0 %v2231
      %v3041 = vpop.f32.mrf.mxu0
      %v3042 = vadd.f32 0.0, %v3041
      %v3043 = vpop.f32.mrf.mxu0
      %v3044 = vpop.f32.mrf.mxu0
      %v3045 = vpop.f32.mrf.mxu0
      %3046 = vdwg.mxu0
      %v3047 = vpack.c.bf16 %v3042, %v3042
      %v3049 = vsel %vm589, %v2931, 0
      %v3052 = vsel %vm589, %v2989, 0
      %3054 = vmatprep.subr.bf16.mxu0 0
      %3055 = vmatpush1.bf16.xpose.msra.mxu0 0
      %3056 = vmatprep.subr.bf16.mxu0 0
      %3057 = vmatpush1.bf16.xpose.msra.mxu0 0
      %3058 = vmatprep.subr.bf16.mxu0 0
      %3059 = vmatpush1.bf16.xpose.msra.mxu0 0
      %3060 = vmatprep.subr.bf16.mxu0 0
      %3061 = vmatpush1.bf16.xpose.msra.mxu0 0
      %3062 = vmatprep.subr.bf16.mxu0 0
      %3063 = vmatpush1.bf16.xpose.msra.mxu0 0
      %3064 = vmatprep.subr.bf16.mxu0 0
      %3065 = vmatpush1.bf16.xpose.msra.mxu0 0
      %3066 = vmatprep.subr.bf16.mxu0 0
      %3067 = vmatpush1.bf16.xpose.msra.mxu0 0
      %3068 = vmatprep.subr.bf16.mxu0 0
      %3069 = vmatpush1.bf16.xpose.msra.mxu0 %v3052
      %3070 = vmatprep.subr.bf16.mxu0 0
      %3071 = vmatpush2.bf16.xpose.msra.mxu0 0
      %3072 = vmatprep.subr.bf16.mxu0 0
      %3073 = vmatpush2.bf16.xpose.msra.mxu0 0
      %3074 = vmatprep.subr.bf16.mxu0 0
      %3075 = vmatpush2.bf16.xpose.msra.mxu0 0
      %3076 = vmatprep.subr.bf16.mxu0 0
      %3077 = vmatpush2.bf16.xpose.msra.mxu0 0
      %3078 = vmatprep.subr.bf16.mxu0 0
      %3079 = vmatpush2.bf16.xpose.msra.mxu0 0
      %3080 = vmatprep.subr.bf16.mxu0 0
      %3081 = vmatpush2.bf16.xpose.msra.mxu0 0
      %3082 = vmatprep.subr.bf16.mxu0 0
      %3083 = vmatpush2.bf16.xpose.msra.mxu0 0
      %3084 = vmatprep.subr.bf16.mxu0 0
      %3085 = vmatpush2.bf16.xpose.msra.mxu0 0
      %3086 = vmatprep.mubr.bf16.mxu0 0
      %3087 = vmatmul.mubr.bf16.gmra.mxu0 %v3049
      %v3088 = vpop.f32.mrf.mxu0
      %v3089 = vadd.f32 0.0, %v3088
      %v3090 = vpop.f32.mrf.mxu0
      %v3091 = vpop.f32.mrf.mxu0
      %v3092 = vpop.f32.mrf.mxu0
      %3093 = vdwg.mxu0
      %v3094 = vmul.f32 %v3089, 0.35355338
      %v3095 = vadd.f32 %v3094, %v897
      %v3096 = vsel %vm589, %v3095, -inf
      %3097 = vmax.xlane.f32.xlu0 %v3096
      %v3098 = vpop.xlane.xlu0 %3097
      %v3099 = vsub.f32 %v3095, %v3098
      %v3100 = vmul.f32 %v3099, 1.442695
      %v3101 = vpow.pop %v3100
      %v3102 = vsel %vm589, %v3101, 0.0
      %3103 = vadd.xlane.f32.xlu0 %v3102
      %v3104 = vpop.xlane.xlu0 %3103
      %v3105 = vrcp.pop %v3104
      %v3106 = vmul.f32 %v3101, %v3105
      %v3107 = vpack.c.bf16 %v3106, %v3106
      %v3109 = vsel %vm589, %v3107, 0
      %v3112 = vsel %vm593, %v3047, 0
      %3114 = vmatprep.subr.bf16.mxu0 0
      %3115 = vmatpush1.bf16.msra.mxu0 0
      %3116 = vmatprep.subr.bf16.mxu0 0
      %3117 = vmatpush1.bf16.msra.mxu0 0
      %3118 = vmatprep.subr.bf16.mxu0 0
      %3119 = vmatpush1.bf16.msra.mxu0 0
      %3120 = vmatprep.subr.bf16.mxu0 0
      %3121 = vmatpush1.bf16.msra.mxu0 0
      %3122 = vmatprep.subr.bf16.mxu0 0
      %3123 = vmatpush1.bf16.msra.mxu0 0
      %3124 = vmatprep.subr.bf16.mxu0 0
      %3125 = vmatpush1.bf16.msra.mxu0 0
      %3126 = vmatprep.subr.bf16.mxu0 0
      %3127 = vmatpush1.bf16.msra.mxu0 0
      %3128 = vmatprep.subr.bf16.mxu0 0
      %3129 = vmatpush1.bf16.msra.mxu0 %v3112
      %3130 = vmatprep.subr.bf16.mxu0 0
      %3131 = vmatpush2.bf16.msra.mxu0 0
      %3132 = vmatprep.subr.bf16.mxu0 0
      %3133 = vmatpush2.bf16.msra.mxu0 0
      %3134 = vmatprep.subr.bf16.mxu0 0
      %3135 = vmatpush2.bf16.msra.mxu0 0
      %3136 = vmatprep.subr.bf16.mxu0 0
      %3137 = vmatpush2.bf16.msra.mxu0 0
      %3138 = vmatprep.subr.bf16.mxu0 0
      %3139 = vmatpush2.bf16.msra.mxu0 0
      %3140 = vmatprep.subr.bf16.mxu0 0
      %3141 = vmatpush2.bf16.msra.mxu0 0
      %3142 = vmatprep.subr.bf16.mxu0 0
      %3143 = vmatpush2.bf16.msra.mxu0 0
      %3144 = vmatprep.subr.bf16.mxu0 0
      %3145 = vmatpush2.bf16.msra.mxu0 0
      %3146 = vmatprep.mubr.bf16.mxu0 0
      %3147 = vmatmul.mubr.bf16.gmra.mxu0 %v3109
      %v3148 = vpop.f32.mrf.mxu0
      %v3149 = vadd.f32 0.0, %v3148
      %v3150 = vpop.f32.mrf.mxu0
      %v3151 = vpop.f32.mrf.mxu0
      %v3152 = vpop.f32.mrf.mxu0
      %3153 = vdwg.mxu0
      %s3154 = scalar_lea.vmem %s8, 24
      %v3155 = vld [vmem:[%s3154] sm:$0xf]
      %v3156 = vpack.c.bf16 %v3149, %v3149
      %v3158 = vsel %vm589, %v3156, 0
      %v3161 = vsel %vm593, %v3155, 0
      %3163 = vmatprep.subr.bf16.mxu0 0
      %3164 = vmatpush1.bf16.msra.mxu0 0
      %3165 = vmatprep.subr.bf16.mxu0 0
      %3166 = vmatpush1.bf16.msra.mxu0 0
      %3167 = vmatprep.subr.bf16.mxu0 0
      %3168 = vmatpush1.bf16.msra.mxu0 0
      %3169 = vmatprep.subr.bf16.mxu0 0
      %3170 = vmatpush1.bf16.msra.mxu0 0
      %3171 = vmatprep.subr.bf16.mxu0 0
      %3172 = vmatpush1.bf16.msra.mxu0 0
      %3173 = vmatprep.subr.bf16.mxu0 0
      %3174 = vmatpush1.bf16.msra.mxu0 0
      %3175 = vmatprep.subr.bf16.mxu0 0
      %3176 = vmatpush1.bf16.msra.mxu0 0
      %3177 = vmatprep.subr.bf16.mxu0 0
      %3178 = vmatpush1.bf16.msra.mxu0 %v3161
      %3179 = vmatprep.subr.bf16.mxu0 0
      %3180 = vmatpush2.bf16.msra.mxu0 0
      %3181 = vmatprep.subr.bf16.mxu0 0
      %3182 = vmatpush2.bf16.msra.mxu0 0
      %3183 = vmatprep.subr.bf16.mxu0 0
      %3184 = vmatpush2.bf16.msra.mxu0 0
      %3185 = vmatprep.subr.bf16.mxu0 0
      %3186 = vmatpush2.bf16.msra.mxu0 0
      %3187 = vmatprep.subr.bf16.mxu0 0
      %3188 = vmatpush2.bf16.msra.mxu0 0
      %3189 = vmatprep.subr.bf16.mxu0 0
      %3190 = vmatpush2.bf16.msra.mxu0 0
      %3191 = vmatprep.subr.bf16.mxu0 0
      %3192 = vmatpush2.bf16.msra.mxu0 0
      %3193 = vmatprep.subr.bf16.mxu0 0
      %3194 = vmatpush2.bf16.msra.mxu0 0
      %3195 = vmatprep.mubr.bf16.mxu0 0
      %3196 = vmatmul.mubr.bf16.gmra.mxu0 %v3158
      %v3197 = vpop.f32.mrf.mxu0
      %v3198 = vadd.f32 0.0, %v3197
      %v3199 = vpop.f32.mrf.mxu0
      %v3200 = vpop.f32.mrf.mxu0
      %v3201 = vpop.f32.mrf.mxu0
      %3202 = vdwg.mxu0
      %v3203 = vadd.f32 %v2869, %v3198
      %s3204 = scalar_lea.vmem %s5, 112
      %v3205 = vld [vmem:[%s3204] sm:$0xf]
      %v3206 = vld [vmem:[%s3204 + $0x4] sm:$0xf]
      %v3207 = vld [vmem:[%s3204 + $0x8] sm:$0xf]
      %v3208 = vld [vmem:[%s3204 + $0xc] sm:$0xf]
      %v3213 = vunpack.c.l.b16 %v3205
      %v3214 = vunpack.c.l.b16 %v3206
      %v3215 = vunpack.c.l.b16 %v3207
      %v3216 = vunpack.c.l.b16 %v3208
      %v3217 = vpack.c.b16 %v3214, %v3213
      %v3218 = vpack.c.b16 %v3216, %v3215
      %3221 = vmatprep.subr.bf16.mxu0 0
      %3222 = vmatpush1.bf16.msra.mxu0 0
      %3223 = vmatprep.subr.bf16.mxu0 0
      %3224 = vmatpush1.bf16.msra.mxu0 0
      %3225 = vmatprep.subr.bf16.mxu0 0
      %3226 = vmatpush1.bf16.msra.mxu0 0
      %3227 = vmatprep.subr.bf16.mxu0 0
      %3228 = vmatpush1.bf16.msra.mxu0 0
      %3229 = vmatprep.subr.bf16.mxu0 0
      %3230 = vmatpush1.bf16.msra.mxu0 0
      %3231 = vmatprep.subr.bf16.mxu0 0
      %3232 = vmatpush1.bf16.msra.mxu0 0
      %3233 = vmatprep.subr.bf16.mxu0 0
      %3234 = vmatpush1.bf16.msra.mxu0 %v3218
      %3235 = vmatprep.subr.bf16.mxu0 0
      %3236 = vmatpush1.bf16.msra.mxu0 %v3217
      %3237 = vmatprep.subr.bf16.mxu0 0
      %3238 = vmatpush2.bf16.msra.mxu0 0
      %3239 = vmatprep.subr.bf16.mxu0 0
      %3240 = vmatpush2.bf16.msra.mxu0 0
      %3241 = vmatprep.subr.bf16.mxu0 0
      %3242 = vmatpush2.bf16.msra.mxu0 0
      %3243 = vmatprep.subr.bf16.mxu0 0
      %3244 = vmatpush2.bf16.msra.mxu0 0
      %3245 = vmatprep.subr.bf16.mxu0 0
      %3246 = vmatpush2.bf16.msra.mxu0 0
      %3247 = vmatprep.subr.bf16.mxu0 0
      %3248 = vmatpush2.bf16.msra.mxu0 0
      %3249 = vmatprep.subr.bf16.mxu0 0
      %3250 = vmatpush2.bf16.msra.mxu0 0
      %3251 = vmatprep.subr.bf16.mxu0 0
      %3252 = vmatpush2.bf16.msra.mxu0 0
      %3253 = vmatprep.mubr.bf16.mxu0 0
      %3254 = vmatmul.mubr.bf16.gmra.mxu0 %v2231
      %v3255 = vpop.f32.mrf.mxu0
      %v3256 = vadd.f32 0.0, %v3255
      %v3257 = vpop.f32.mrf.mxu0
      %v3258 = vpop.f32.mrf.mxu0
      %v3259 = vpop.f32.mrf.mxu0
      %3260 = vdwg.mxu0
      %v3261 = vpack.c.bf16 %v3256, %v3256
      %s3262 = scalar_lea.vmem %s6, 112
      %v3263 = vld [vmem:[%s3262] sm:$0xf]
      %v3264 = vld [vmem:[%s3262 + $0x4] sm:$0xf]
      %v3265 = vld [vmem:[%s3262 + $0x8] sm:$0xf]
      %v3266 = vld [vmem:[%s3262 + $0xc] sm:$0xf]
      %v3271 = vunpack.c.l.b16 %v3263
      %v3272 = vunpack.c.l.b16 %v3264
      %v3273 = vunpack.c.l.b16 %v3265
      %v3274 = vunpack.c.l.b16 %v3266
      %v3275 = vpack.c.b16 %v3272, %v3271
      %v3276 = vpack.c.b16 %v3274, %v3273
      %3279 = vmatprep.subr.bf16.mxu0 0
      %3280 = vmatpush1.bf16.msra.mxu0 0
      %3281 = vmatprep.subr.bf16.mxu0 0
      %3282 = vmatpush1.bf16.msra.mxu0 0
      %3283 = vmatprep.subr.bf16.mxu0 0
      %3284 = vmatpush1.bf16.msra.mxu0 0
      %3285 = vmatprep.subr.bf16.mxu0 0
      %3286 = vmatpush1.bf16.msra.mxu0 0
      %3287 = vmatprep.subr.bf16.mxu0 0
      %3288 = vmatpush1.bf16.msra.mxu0 0
      %3289 = vmatprep.subr.bf16.mxu0 0
      %3290 = vmatpush1.bf16.msra.mxu0 0
      %3291 = vmatprep.subr.bf16.mxu0 0
      %3292 = vmatpush1.bf16.msra.mxu0 %v3276
      %3293 = vmatprep.subr.bf16.mxu0 0
      %3294 = vmatpush1.bf16.msra.mxu0 %v3275
      %3295 = vmatprep.subr.bf16.mxu0 0
      %3296 = vmatpush2.bf16.msra.mxu0 0
      %3297 = vmatprep.subr.bf16.mxu0 0
      %3298 = vmatpush2.bf16.msra.mxu0 0
      %3299 = vmatprep.subr.bf16.mxu0 0
      %3300 = vmatpush2.bf16.msra.mxu0 0
      %3301 = vmatprep.subr.bf16.mxu0 0
      %3302 = vmatpush2.bf16.msra.mxu0 0
      %3303 = vmatprep.subr.bf16.mxu0 0
      %3304 = vmatpush2.bf16.msra.mxu0 0
      %3305 = vmatprep.subr.bf16.mxu0 0
      %3306 = vmatpush2.bf16.msra.mxu0 0
      %3307 = vmatprep.subr.bf16.mxu0 0
      %3308 = vmatpush2.bf16.msra.mxu0 0
      %3309 = vmatprep.subr.bf16.mxu0 0
      %3310 = vmatpush2.bf16.msra.mxu0 0
      %3311 = vmatprep.mubr.bf16.mxu0 0
      %3312 = vmatmul.mubr.bf16.gmra.mxu0 %v2231
      %v3313 = vpop.f32.mrf.mxu0
      %v3314 = vadd.f32 0.0, %v3313
      %v3315 = vpop.f32.mrf.mxu0
      %v3316 = vpop.f32.mrf.mxu0
      %v3317 = vpop.f32.mrf.mxu0
      %3318 = vdwg.mxu0
      %v3319 = vpack.c.bf16 %v3314, %v3314
      %s3320 = scalar_lea.vmem %s7, 112
      %v3321 = vld [vmem:[%s3320] sm:$0xf]
      %v3322 = vld [vmem:[%s3320 + $0x4] sm:$0xf]
      %v3323 = vld [vmem:[%s3320 + $0x8] sm:$0xf]
      %v3324 = vld [vmem:[%s3320 + $0xc] sm:$0xf]
      %v3329 = vunpack.c.l.b16 %v3321
      %v3330 = vunpack.c.l.b16 %v3322
      %v3331 = vunpack.c.l.b16 %v3323
      %v3332 = vunpack.c.l.b16 %v3324
      %v3333 = vpack.c.b16 %v3330, %v3329
      %v3334 = vpack.c.b16 %v3332, %v3331
      %3337 = vmatprep.subr.bf16.mxu0 0
      %3338 = vmatpush1.bf16.msra.mxu0 0
      %3339 = vmatprep.subr.bf16.mxu0 0
      %3340 = vmatpush1.bf16.msra.mxu0 0
      %3341 = vmatprep.subr.bf16.mxu0 0
      %3342 = vmatpush1.bf16.msra.mxu0 0
      %3343 = vmatprep.subr.bf16.mxu0 0
      %3344 = vmatpush1.bf16.msra.mxu0 0
      %3345 = vmatprep.subr.bf16.mxu0 0
      %3346 = vmatpush1.bf16.msra.mxu0 0
      %3347 = vmatprep.subr.bf16.mxu0 0
      %3348 = vmatpush1.bf16.msra.mxu0 0
      %3349 = vmatprep.subr.bf16.mxu0 0
      %3350 = vmatpush1.bf16.msra.mxu0 %v3334
      %3351 = vmatprep.subr.bf16.mxu0 0
      %3352 = vmatpush1.bf16.msra.mxu0 %v3333
      %3353 = vmatprep.subr.bf16.mxu0 0
      %3354 = vmatpush2.bf16.msra.mxu0 0
      %3355 = vmatprep.subr.bf16.mxu0 0
      %3356 = vmatpush2.bf16.msra.mxu0 0
      %3357 = vmatprep.subr.bf16.mxu0 0
      %3358 = vmatpush2.bf16.msra.mxu0 0
      %3359 = vmatprep.subr.bf16.mxu0 0
      %3360 = vmatpush2.bf16.msra.mxu0 0
      %3361 = vmatprep.subr.bf16.mxu0 0
      %3362 = vmatpush2.bf16.msra.mxu0 0
      %3363 = vmatprep.subr.bf16.mxu0 0
      %3364 = vmatpush2.bf16.msra.mxu0 0
      %3365 = vmatprep.subr.bf16.mxu0 0
      %3366 = vmatpush2.bf16.msra.mxu0 0
      %3367 = vmatprep.subr.bf16.mxu0 0
      %3368 = vmatpush2.bf16.msra.mxu0 0
      %3369 = vmatprep.mubr.bf16.mxu0 0
      %3370 = vmatmul.mubr.bf16.gmra.mxu0 %v2231
      %v3371 = vpop.f32.mrf.mxu0
      %v3372 = vadd.f32 0.0, %v3371
      %v3373 = vpop.f32.mrf.mxu0
      %v3374 = vpop.f32.mrf.mxu0
      %v3375 = vpop.f32.mrf.mxu0
      %3376 = vdwg.mxu0
      %v3377 = vpack.c.bf16 %v3372, %v3372
      %v3379 = vsel %vm589, %v3261, 0
      %v3382 = vsel %vm589, %v3319, 0
      %3384 = vmatprep.subr.bf16.mxu0 0
      %3385 = vmatpush1.bf16.xpose.msra.mxu0 0
      %3386 = vmatprep.subr.bf16.mxu0 0
      %3387 = vmatpush1.bf16.xpose.msra.mxu0 0
      %3388 = vmatprep.subr.bf16.mxu0 0
      %3389 = vmatpush1.bf16.xpose.msra.mxu0 0
      %3390 = vmatprep.subr.bf16.mxu0 0
      %3391 = vmatpush1.bf16.xpose.msra.mxu0 0
      %3392 = vmatprep.subr.bf16.mxu0 0
      %3393 = vmatpush1.bf16.xpose.msra.mxu0 0
      %3394 = vmatprep.subr.bf16.mxu0 0
      %3395 = vmatpush1.bf16.xpose.msra.mxu0 0
      %3396 = vmatprep.subr.bf16.mxu0 0
      %3397 = vmatpush1.bf16.xpose.msra.mxu0 0
      %3398 = vmatprep.subr.bf16.mxu0 0
      %3399 = vmatpush1.bf16.xpose.msra.mxu0 %v3382
      %3400 = vmatprep.subr.bf16.mxu0 0
      %3401 = vmatpush2.bf16.xpose.msra.mxu0 0
      %3402 = vmatprep.subr.bf16.mxu0 0
      %3403 = vmatpush2.bf16.xpose.msra.mxu0 0
      %3404 = vmatprep.subr.bf16.mxu0 0
      %3405 = vmatpush2.bf16.xpose.msra.mxu0 0
      %3406 = vmatprep.subr.bf16.mxu0 0
      %3407 = vmatpush2.bf16.xpose.msra.mxu0 0
      %3408 = vmatprep.subr.bf16.mxu0 0
      %3409 = vmatpush2.bf16.xpose.msra.mxu0 0
      %3410 = vmatprep.subr.bf16.mxu0 0
      %3411 = vmatpush2.bf16.xpose.msra.mxu0 0
      %3412 = vmatprep.subr.bf16.mxu0 0
      %3413 = vmatpush2.bf16.xpose.msra.mxu0 0
      %3414 = vmatprep.subr.bf16.mxu0 0
      %3415 = vmatpush2.bf16.xpose.msra.mxu0 0
      %3416 = vmatprep.mubr.bf16.mxu0 0
      %3417 = vmatmul.mubr.bf16.gmra.mxu0 %v3379
      %v3418 = vpop.f32.mrf.mxu0
      %v3419 = vadd.f32 0.0, %v3418
      %v3420 = vpop.f32.mrf.mxu0
      %v3421 = vpop.f32.mrf.mxu0
      %v3422 = vpop.f32.mrf.mxu0
      %3423 = vdwg.mxu0
      %v3424 = vmul.f32 %v3419, 0.35355338
      %v3425 = vadd.f32 %v3424, %v897
      %v3426 = vsel %vm589, %v3425, -inf
      %3427 = vmax.xlane.f32.xlu0 %v3426
      %v3428 = vpop.xlane.xlu0 %3427
      %v3429 = vsub.f32 %v3425, %v3428
      %v3430 = vmul.f32 %v3429, 1.442695
      %v3431 = vpow.pop %v3430
      %v3432 = vsel %vm589, %v3431, 0.0
      %3433 = vadd.xlane.f32.xlu0 %v3432
      %v3434 = vpop.xlane.xlu0 %3433
      %v3435 = vrcp.pop %v3434
      %v3436 = vmul.f32 %v3431, %v3435
      %v3437 = vpack.c.bf16 %v3436, %v3436
      %v3439 = vsel %vm589, %v3437, 0
      %v3442 = vsel %vm593, %v3377, 0
      %3444 = vmatprep.subr.bf16.mxu0 0
      %3445 = vmatpush1.bf16.msra.mxu0 0
      %3446 = vmatprep.subr.bf16.mxu0 0
      %3447 = vmatpush1.bf16.msra.mxu0 0
      %3448 = vmatprep.subr.bf16.mxu0 0
      %3449 = vmatpush1.bf16.msra.mxu0 0
      %3450 = vmatprep.subr.bf16.mxu0 0
      %3451 = vmatpush1.bf16.msra.mxu0 0
      %3452 = vmatprep.subr.bf16.mxu0 0
      %3453 = vmatpush1.bf16.msra.mxu0 0
      %3454 = vmatprep.subr.bf16.mxu0 0
      %3455 = vmatpush1.bf16.msra.mxu0 0
      %3456 = vmatprep.subr.bf16.mxu0 0
      %3457 = vmatpush1.bf16.msra.mxu0 0
      %3458 = vmatprep.subr.bf16.mxu0 0
      %3459 = vmatpush1.bf16.msra.mxu0 %v3442
      %3460 = vmatprep.subr.bf16.mxu0 0
      %3461 = vmatpush2.bf16.msra.mxu0 0
      %3462 = vmatprep.subr.bf16.mxu0 0
      %3463 = vmatpush2.bf16.msra.mxu0 0
      %3464 = vmatprep.subr.bf16.mxu0 0
      %3465 = vmatpush2.bf16.msra.mxu0 0
      %3466 = vmatprep.subr.bf16.mxu0 0
      %3467 = vmatpush2.bf16.msra.mxu0 0
      %3468 = vmatprep.subr.bf16.mxu0 0
      %3469 = vmatpush2.bf16.msra.mxu0 0
      %3470 = vmatprep.subr.bf16.mxu0 0
      %3471 = vmatpush2.bf16.msra.mxu0 0
      %3472 = vmatprep.subr.bf16.mxu0 0
      %3473 = vmatpush2.bf16.msra.mxu0 0
      %3474 = vmatprep.subr.bf16.mxu0 0
      %3475 = vmatpush2.bf16.msra.mxu0 0
      %3476 = vmatprep.mubr.bf16.mxu0 0
      %3477 = vmatmul.mubr.bf16.gmra.mxu0 %v3439
      %v3478 = vpop.f32.mrf.mxu0
      %v3479 = vadd.f32 0.0, %v3478
      %v3480 = vpop.f32.mrf.mxu0
      %v3481 = vpop.f32.mrf.mxu0
      %v3482 = vpop.f32.mrf.mxu0
      %3483 = vdwg.mxu0
      %s3484 = scalar_lea.vmem %s8, 28
      %v3485 = vld [vmem:[%s3484] sm:$0xf]
      %v3486 = vpack.c.bf16 %v3479, %v3479
      %v3488 = vsel %vm589, %v3486, 0
      %v3491 = vsel %vm593, %v3485, 0
      %3493 = vmatprep.subr.bf16.mxu0 0
      %3494 = vmatpush1.bf16.msra.mxu0 0
      %3495 = vmatprep.subr.bf16.mxu0 0
      %3496 = vmatpush1.bf16.msra.mxu0 0
      %3497 = vmatprep.subr.bf16.mxu0 0
      %3498 = vmatpush1.bf16.msra.mxu0 0
      %3499 = vmatprep.subr.bf16.mxu0 0
      %3500 = vmatpush1.bf16.msra.mxu0 0
      %3501 = vmatprep.subr.bf16.mxu0 0
      %3502 = vmatpush1.bf16.msra.mxu0 0
      %3503 = vmatprep.subr.bf16.mxu0 0
      %3504 = vmatpush1.bf16.msra.mxu0 0
      %3505 = vmatprep.subr.bf16.mxu0 0
      %3506 = vmatpush1.bf16.msra.mxu0 0
      %3507 = vmatprep.subr.bf16.mxu0 0
      %3508 = vmatpush1.bf16.msra.mxu0 %v3491
      %3509 = vmatprep.subr.bf16.mxu0 0
      %3510 = vmatpush2.bf16.msra.mxu0 0
      %3511 = vmatprep.subr.bf16.mxu0 0
      %3512 = vmatpush2.bf16.msra.mxu0 0
      %3513 = vmatprep.subr.bf16.mxu0 0
      %3514 = vmatpush2.bf16.msra.mxu0 0
      %3515 = vmatprep.subr.bf16.mxu0 0
      %3516 = vmatpush2.bf16.msra.mxu0 0
      %3517 = vmatprep.subr.bf16.mxu0 0
      %3518 = vmatpush2.bf16.msra.mxu0 0
      %3519 = vmatprep.subr.bf16.mxu0 0
      %3520 = vmatpush2.bf16.msra.mxu0 0
      %3521 = vmatprep.subr.bf16.mxu0 0
      %3522 = vmatpush2.bf16.msra.mxu0 0
      %3523 = vmatprep.subr.bf16.mxu0 0
      %3524 = vmatpush2.bf16.msra.mxu0 0
      %3525 = vmatprep.mubr.bf16.mxu0 0
      %3526 = vmatmul.mubr.bf16.gmra.mxu0 %v3488
      %v3527 = vpop.f32.mrf.mxu0
      %v3528 = vadd.f32 0.0, %v3527
      %v3529 = vpop.f32.mrf.mxu0
      %v3530 = vpop.f32.mrf.mxu0
      %v3531 = vpop.f32.mrf.mxu0
      %3532 = vdwg.mxu0
      %v3533 = vadd.f32 %v3203, %v3528
      %v3534 = vadd.f32 %v2194, %v3533
      %s3535 = scalar_lea.vmem %s9, 1
      %v3536 = vld [vmem:[%s3535] sm:$0x1]
      %v3537 = vmul.f32 %v3534, %v3534
      %v3538 = vsel %vm639, %v3537, 0.0
      %3539 = vadd.xlane.f32.xlu0 %v3538
      %v3540 = vpop.xlane.xlu0 %3539
      %v3541 = vmul.f32 %v3540, %v643
      %v3542 = vadd.f32 %v3541, 1e-06
      %v3543 = vrsqrt.pop %v3542
      %v3544 = vmul.f32 %v3534, %v3543
      %v3546 = vlaneseq
      %v3547 = vshrl.u32 %v3546, 7
      %v3548 = vsub.s32 0, %v3547
      %v3549 = vrot.slane %v3536, %v3548
      %v3551 = vmul.f32 %v3544, %v3549
      %s3552 = scalar_lea.vmem %s10, 32
      %v3553 = vld [vmem:[%s3552] sm:$0xff]
      %v3554 = vld [vmem:[%s3552 + $0x8] sm:$0xff]
      %v3555 = vld [vmem:[%s3552 + $0x10] sm:$0xff]
      %v3556 = vld [vmem:[%s3552 + $0x18] sm:$0xff]
      %v3557 = vpack.c.bf16 %v3551, %v3551
      %v3562 = vunpack.c.l.b16 %v3553
      %v3563 = vunpack.c.h.b16 %v3553
      %v3564 = vunpack.c.l.b16 %v3554
      %v3565 = vunpack.c.h.b16 %v3554
      %v3566 = vunpack.c.l.b16 %v3555
      %v3567 = vunpack.c.h.b16 %v3555
      %v3568 = vunpack.c.l.b16 %v3556
      %v3569 = vunpack.c.h.b16 %v3556
      %v3570 = vpack.c.b16 %v3564, %v3562
      %v3571 = vpack.c.b16 %v3565, %v3563
      %v3572 = vpack.c.b16 %v3568, %v3566
      %v3573 = vpack.c.b16 %v3569, %v3567
      %v3579 = vsel %vm639, %v3557, 0
      %3581 = vmatprep.subr.bf16.mxu0 0
      %3582 = vmatpush1.bf16.msra.mxu0 0
      %3583 = vmatprep.subr.bf16.mxu0 0
      %3584 = vmatpush1.bf16.msra.mxu0 0
      %3585 = vmatprep.subr.bf16.mxu0 0
      %3586 = vmatpush1.bf16.msra.mxu0 0
      %3587 = vmatprep.subr.bf16.mxu0 0
      %3588 = vmatpush1.bf16.msra.mxu0 0
      %3589 = vmatprep.subr.bf16.mxu0 0
      %3590 = vmatpush1.bf16.msra.mxu0 0
      %3591 = vmatprep.subr.bf16.mxu0 0
      %3592 = vmatpush1.bf16.msra.mxu0 0
      %3593 = vmatprep.subr.bf16.mxu0 %v3573
      %3594 = vmatpush1.bf16.msra.mxu0 %v3572
      %3595 = vmatprep.subr.bf16.mxu0 %v3571
      %3596 = vmatpush1.bf16.msra.mxu0 %v3570
      %3597 = vmatprep.subr.bf16.mxu0 0
      %3598 = vmatpush2.bf16.msra.mxu0 0
      %3599 = vmatprep.subr.bf16.mxu0 0
      %3600 = vmatpush2.bf16.msra.mxu0 0
      %3601 = vmatprep.subr.bf16.mxu0 0
      %3602 = vmatpush2.bf16.msra.mxu0 0
      %3603 = vmatprep.subr.bf16.mxu0 0
      %3604 = vmatpush2.bf16.msra.mxu0 0
      %3605 = vmatprep.subr.bf16.mxu0 0
      %3606 = vmatpush2.bf16.msra.mxu0 0
      %3607 = vmatprep.subr.bf16.mxu0 0
      %3608 = vmatpush2.bf16.msra.mxu0 0
      %3609 = vmatprep.subr.bf16.mxu0 0
      %3610 = vmatpush2.bf16.msra.mxu0 0
      %3611 = vmatprep.subr.bf16.mxu0 0
      %3612 = vmatpush2.bf16.msra.mxu0 0
      %3613 = vmatprep.mubr.bf16.mxu0 0
      %3614 = vmatmul.mubr.bf16.gmra.mxu0 %v3579
      %v3615 = vpop.f32.mrf.mxu0
      %v3616 = vadd.f32 0.0, %v3615
      %v3617 = vpop.f32.mrf.mxu0
      %v3618 = vadd.f32 0.0, %v3617
      %v3619 = vpop.f32.mrf.mxu0
      %v3620 = vpop.f32.mrf.mxu0
      %3621 = vdwg.mxu0
      %v3622 = vxor.u32 %v3618, 2147483648
      %v3623 = vmul.f32 %v3622, 1.442695
      %v3624 = vpow.pop %v3623
      %v3625 = vadd.f32 %v3624, 1.0
      %v3626 = vrcp.pop %v3625
      %v3627 = vmul.f32 1.0, %v3626
      %v3628 = vmul.f32 %v3618, %v3627
      %v3629 = vmul.f32 %v3616, %v3628
      %s3630 = scalar_lea.vmem %s11, 64
      %v3631 = vld [vmem:[%s3630] sm:$0xf]
      %v3632 = vld [vmem:[%s3630 + $0x4] sm:$0xf]
      %v3633 = vld [vmem:[%s3630 + $0x8] sm:$0xf]
      %v3634 = vld [vmem:[%s3630 + $0xc] sm:$0xf]
      %v3635 = vld [vmem:[%s3630 + $0x10] sm:$0xf]
      %v3636 = vld [vmem:[%s3630 + $0x14] sm:$0xf]
      %v3637 = vld [vmem:[%s3630 + $0x18] sm:$0xf]
      %v3638 = vld [vmem:[%s3630 + $0x1c] sm:$0xf]
      %v3639 = vld [vmem:[%s3630 + $0x20] sm:$0xf]
      %v3640 = vld [vmem:[%s3630 + $0x24] sm:$0xf]
      %v3641 = vld [vmem:[%s3630 + $0x28] sm:$0xf]
      %v3642 = vld [vmem:[%s3630 + $0x2c] sm:$0xf]
      %v3643 = vld [vmem:[%s3630 + $0x30] sm:$0xf]
      %v3644 = vld [vmem:[%s3630 + $0x34] sm:$0xf]
      %v3645 = vld [vmem:[%s3630 + $0x38] sm:$0xf]
      %v3646 = vld [vmem:[%s3630 + $0x3c] sm:$0xf]
      %v3647 = vpack.c.bf16 %v3629, %v3629
      %v3664 = vunpack.c.l.b16 %v3631
      %v3665 = vunpack.c.l.b16 %v3632
      %v3666 = vunpack.c.l.b16 %v3633
      %v3667 = vunpack.c.l.b16 %v3634
      %v3668 = vunpack.c.l.b16 %v3635
      %v3669 = vunpack.c.l.b16 %v3636
      %v3670 = vunpack.c.l.b16 %v3637
      %v3671 = vunpack.c.l.b16 %v3638
      %v3672 = vunpack.c.l.b16 %v3639
      %v3673 = vunpack.c.l.b16 %v3640
      %v3674 = vunpack.c.l.b16 %v3641
      %v3675 = vunpack.c.l.b16 %v3642
      %v3676 = vunpack.c.l.b16 %v3643
      %v3677 = vunpack.c.l.b16 %v3644
      %v3678 = vunpack.c.l.b16 %v3645
      %v3679 = vunpack.c.l.b16 %v3646
      %v3680 = vpack.c.b16 %v3665, %v3664
      %v3681 = vpack.c.b16 %v3667, %v3666
      %v3682 = vpack.c.b16 %v3669, %v3668
      %v3683 = vpack.c.b16 %v3671, %v3670
      %v3684 = vpack.c.b16 %v3673, %v3672
      %v3685 = vpack.c.b16 %v3675, %v3674
      %v3686 = vpack.c.b16 %v3677, %v3676
      %v3687 = vpack.c.b16 %v3679, %v3678
      %3696 = vmatprep.subr.bf16.mxu0 0
      %3697 = vmatpush1.bf16.msra.mxu0 %v3687
      %3698 = vmatprep.subr.bf16.mxu0 0
      %3699 = vmatpush1.bf16.msra.mxu0 %v3686
      %3700 = vmatprep.subr.bf16.mxu0 0
      %3701 = vmatpush1.bf16.msra.mxu0 %v3685
      %3702 = vmatprep.subr.bf16.mxu0 0
      %3703 = vmatpush1.bf16.msra.mxu0 %v3684
      %3704 = vmatprep.subr.bf16.mxu0 0
      %3705 = vmatpush1.bf16.msra.mxu0 %v3683
      %3706 = vmatprep.subr.bf16.mxu0 0
      %3707 = vmatpush1.bf16.msra.mxu0 %v3682
      %3708 = vmatprep.subr.bf16.mxu0 0
      %3709 = vmatpush1.bf16.msra.mxu0 %v3681
      %3710 = vmatprep.subr.bf16.mxu0 0
      %3711 = vmatpush1.bf16.msra.mxu0 %v3680
      %3712 = vmatprep.subr.bf16.mxu0 0
      %3713 = vmatpush2.bf16.msra.mxu0 0
      %3714 = vmatprep.subr.bf16.mxu0 0
      %3715 = vmatpush2.bf16.msra.mxu0 0
      %3716 = vmatprep.subr.bf16.mxu0 0
      %3717 = vmatpush2.bf16.msra.mxu0 0
      %3718 = vmatprep.subr.bf16.mxu0 0
      %3719 = vmatpush2.bf16.msra.mxu0 0
      %3720 = vmatprep.subr.bf16.mxu0 0
      %3721 = vmatpush2.bf16.msra.mxu0 0
      %3722 = vmatprep.subr.bf16.mxu0 0
      %3723 = vmatpush2.bf16.msra.mxu0 0
      %3724 = vmatprep.subr.bf16.mxu0 0
      %3725 = vmatpush2.bf16.msra.mxu0 0
      %3726 = vmatprep.subr.bf16.mxu0 0
      %3727 = vmatpush2.bf16.msra.mxu0 0
      %3728 = vmatprep.mubr.bf16.mxu0 0
      %3729 = vmatmul.mubr.bf16.gmra.mxu0 %v3647
      %v3730 = vpop.f32.mrf.mxu0
      %v3731 = vadd.f32 0.0, %v3730
      %v3732 = vpop.f32.mrf.mxu0
      %v3733 = vpop.f32.mrf.mxu0
      %v3734 = vpop.f32.mrf.mxu0
      %3735 = vdwg.mxu0
      %v3736 = vadd.f32 %v3534, %v3731
      %v3737 = vpack.c.bf16 %v3736, %v3736
      %v3739 = vsel %vm589, 1065369472, 0
      %v3742 = vsel %vm593, %v3737, 0
      %3744 = vmatprep.subr.bf16.mxu0 0
      %3745 = vmatpush1.bf16.msra.mxu0 0
      %3746 = vmatprep.subr.bf16.mxu0 0
      %3747 = vmatpush1.bf16.msra.mxu0 0
      %3748 = vmatprep.subr.bf16.mxu0 0
      %3749 = vmatpush1.bf16.msra.mxu0 0
      %3750 = vmatprep.subr.bf16.mxu0 0
      %3751 = vmatpush1.bf16.msra.mxu0 0
      %3752 = vmatprep.subr.bf16.mxu0 0
      %3753 = vmatpush1.bf16.msra.mxu0 0
      %3754 = vmatprep.subr.bf16.mxu0 0
      %3755 = vmatpush1.bf16.msra.mxu0 0
      %3756 = vmatprep.subr.bf16.mxu0 0
      %3757 = vmatpush1.bf16.msra.mxu0 0
      %3758 = vmatprep.subr.bf16.mxu0 0
      %3759 = vmatpush1.bf16.msra.mxu0 %v3742
      %3760 = vmatprep.subr.bf16.mxu0 0
      %3761 = vmatpush2.bf16.msra.mxu0 0
      %3762 = vmatprep.subr.bf16.mxu0 0
      %3763 = vmatpush2.bf16.msra.mxu0 0
      %3764 = vmatprep.subr.bf16.mxu0 0
      %3765 = vmatpush2.bf16.msra.mxu0 0
      %3766 = vmatprep.subr.bf16.mxu0 0
      %3767 = vmatpush2.bf16.msra.mxu0 0
      %3768 = vmatprep.subr.bf16.mxu0 0
      %3769 = vmatpush2.bf16.msra.mxu0 0
      %3770 = vmatprep.subr.bf16.mxu0 0
      %3771 = vmatpush2.bf16.msra.mxu0 0
      %3772 = vmatprep.subr.bf16.mxu0 0
      %3773 = vmatpush2.bf16.msra.mxu0 0
      %3774 = vmatprep.subr.bf16.mxu0 0
      %3775 = vmatpush2.bf16.msra.mxu0 0
      %3776 = vmatprep.mubr.bf16.mxu0 0
      %3777 = vmatmul.mubr.bf16.gmra.mxu0 %v3739
      %v3778 = vpop.f32.mrf.mxu0
      %v3779 = vadd.f32 0.0, %v3778
      %v3780 = vpop.f32.mrf.mxu0
      %v3781 = vpop.f32.mrf.mxu0
      %v3782 = vpop.f32.mrf.mxu0
      %3783 = vdwg.mxu0
      %v3784 = vld [vmem:[%s12] sm:$0x1]
      %v3785 = vmul.f32 %v3779, %v3779
      %vm3786 = vcmask 253952
      %v3787 = vsel %vm3786, %v3785, 0.0
      %3788 = vadd.xlane.f32.xlu0 %v3787
      %v3789 = vpop.xlane.xlu0 %3788
      %v3790 = vmul.f32 %v3789, %v643
      %v3791 = vadd.f32 %v3790, 1e-06
      %v3792 = vrsqrt.pop %v3791
      %v3793 = vmul.f32 %v3779, %v3792
      %v3794 = vmul.f32 %v3793, %v3784
      %v3795 = vld [vmem:[%s13] sm:$0xf]
      %v3796 = vld [vmem:[%s13 + $0x4] sm:$0xf]
      %v3797 = vld [vmem:[%s13 + $0x8] sm:$0xf]
      %v3798 = vld [vmem:[%s13 + $0xc] sm:$0xf]
      %v3799 = vpack.c.bf16 %v3794, %v3794
      %v3804 = vunpack.c.l.b16 %v3795
      %v3805 = vunpack.c.l.b16 %v3796
      %v3806 = vunpack.c.l.b16 %v3797
      %v3807 = vunpack.c.l.b16 %v3798
      %v3808 = vpack.c.b16 %v3805, %v3804
      %v3809 = vpack.c.b16 %v3807, %v3806
      %v3813 = vsel %vm639, %v3799, 0
      %3815 = vmatprep.subr.bf16.mxu0 0
      %3816 = vmatpush1.bf16.msra.mxu0 0
      %3817 = vmatprep.subr.bf16.mxu0 0
      %3818 = vmatpush1.bf16.msra.mxu0 0
      %3819 = vmatprep.subr.bf16.mxu0 0
      %3820 = vmatpush1.bf16.msra.mxu0 0
      %3821 = vmatprep.subr.bf16.mxu0 0
      %3822 = vmatpush1.bf16.msra.mxu0 0
      %3823 = vmatprep.subr.bf16.mxu0 0
      %3824 = vmatpush1.bf16.msra.mxu0 0
      %3825 = vmatprep.subr.bf16.mxu0 0
      %3826 = vmatpush1.bf16.msra.mxu0 0
      %3827 = vmatprep.subr.bf16.mxu0 0
      %3828 = vmatpush1.bf16.msra.mxu0 %v3809
      %3829 = vmatprep.subr.bf16.mxu0 0
      %3830 = vmatpush1.bf16.msra.mxu0 %v3808
      %3831 = vmatprep.subr.bf16.mxu0 0
      %3832 = vmatpush2.bf16.msra.mxu0 0
      %3833 = vmatprep.subr.bf16.mxu0 0
      %3834 = vmatpush2.bf16.msra.mxu0 0
      %3835 = vmatprep.subr.bf16.mxu0 0
      %3836 = vmatpush2.bf16.msra.mxu0 0
      %3837 = vmatprep.subr.bf16.mxu0 0
      %3838 = vmatpush2.bf16.msra.mxu0 0
      %3839 = vmatprep.subr.bf16.mxu0 0
      %3840 = vmatpush2.bf16.msra.mxu0 0
      %3841 = vmatprep.subr.bf16.mxu0 0
      %3842 = vmatpush2.bf16.msra.mxu0 0
      %3843 = vmatprep.subr.bf16.mxu0 0
      %3844 = vmatpush2.bf16.msra.mxu0 0
      %3845 = vmatprep.subr.bf16.mxu0 0
      %3846 = vmatpush2.bf16.msra.mxu0 0
      %3847 = vmatprep.mubr.bf16.mxu0 0
      %3848 = vmatmul.mubr.bf16.gmra.mxu0 %v3813
      %v3849 = vpop.f32.mrf.mxu0
      %v3850 = vadd.f32 0.0, %v3849
      %v3851 = vpop.f32.mrf.mxu0
      %v3852 = vpop.f32.mrf.mxu0
      %v3853 = vpop.f32.mrf.mxu0
      %3854 = vdwg.mxu0
      %v3855 = vxor.u32 %v3850, 2147483648
      %v3856 = vmul.f32 %v3855, 1.442695
      %v3857 = vpow.pop %v3856
      %v3858 = vadd.f32 %v3857, 1.0
      %v3859 = vrcp.pop %v3858
      %v3860 = vmul.f32 1.0, %v3859
      %v3861 = vmul.f32 %v3850, %v3860
      %3863 = vrot.lane.b32.xlu0 %v3861, 120
      %v3864 = vpop.permute.xlu0 %3863
      %v3866 = vmul.f32 %v3850, %v3864
      %v3867 = vld [vmem:[%s14] sm:$0xf]
      %v3868 = vpack.c.bf16 %v3866, %v3866
      %v3870 = vsel %vm589, %v3868, 0
      %v3873 = vsel %vm593, %v3867, 0
      %3875 = vmatprep.subr.bf16.mxu0 0
      %3876 = vmatpush1.bf16.msra.mxu0 0
      %3877 = vmatprep.subr.bf16.mxu0 0
      %3878 = vmatpush1.bf16.msra.mxu0 0
      %3879 = vmatprep.subr.bf16.mxu0 0
      %3880 = vmatpush1.bf16.msra.mxu0 0
      %3881 = vmatprep.subr.bf16.mxu0 0
      %3882 = vmatpush1.bf16.msra.mxu0 0
      %3883 = vmatprep.subr.bf16.mxu0 0
      %3884 = vmatpush1.bf16.msra.mxu0 0
      %3885 = vmatprep.subr.bf16.mxu0 0
      %3886 = vmatpush1.bf16.msra.mxu0 0
      %3887 = vmatprep.subr.bf16.mxu0 0
      %3888 = vmatpush1.bf16.msra.mxu0 0
      %3889 = vmatprep.subr.bf16.mxu0 0
      %3890 = vmatpush1.bf16.msra.mxu0 %v3873
      %3891 = vmatprep.subr.bf16.mxu0 0
      %3892 = vmatpush2.bf16.msra.mxu0 0
      %3893 = vmatprep.subr.bf16.mxu0 0
      %3894 = vmatpush2.bf16.msra.mxu0 0
      %3895 = vmatprep.subr.bf16.mxu0 0
      %3896 = vmatpush2.bf16.msra.mxu0 0
      %3897 = vmatprep.subr.bf16.mxu0 0
      %3898 = vmatpush2.bf16.msra.mxu0 0
      %3899 = vmatprep.subr.bf16.mxu0 0
      %3900 = vmatpush2.bf16.msra.mxu0 0
      %3901 = vmatprep.subr.bf16.mxu0 0
      %3902 = vmatpush2.bf16.msra.mxu0 0
      %3903 = vmatprep.subr.bf16.mxu0 0
      %3904 = vmatpush2.bf16.msra.mxu0 0
      %3905 = vmatprep.subr.bf16.mxu0 0
      %3906 = vmatpush2.bf16.msra.mxu0 0
      %3907 = vmatprep.mubr.bf16.mxu0 0
      %3908 = vmatmul.mubr.bf16.gmra.mxu0 %v3870
      %v3909 = vpop.f32.mrf.mxu0
      %v3910 = vadd.f32 0.0, %v3909
      %v3911 = vpop.f32.mrf.mxu0
      %v3912 = vpop.f32.mrf.mxu0
      %v3913 = vpop.f32.mrf.mxu0
      %3914 = vdwg.mxu0
      %v3915 = vld [vmem:[%s15] sm:$0x1]
      %v3916 = vmul.f32 %v3910, %v3910
      %vm3917 = vcmask 57344
      %v3918 = vsel %vm3917, %v3916, 0.0
      %3919 = vadd.xlane.f32.xlu0 %v3918
      %v3920 = vpop.xlane.xlu0 %3919
      %v3921 = vrcp.pop 8.0
      %v3922 = vmul.f32 %v3920, %v3921
      %v3923 = vadd.f32 %v3922, 1e-06
      %v3924 = vrsqrt.pop %v3923
      %v3925 = vmul.f32 %v3910, %v3924
      %v3926 = vmul.f32 %v3925, %v3915
      %v3927 = vld [vmem:[%s16] sm:$0xf]
      %v3928 = vpack.c.bf16 %v3926, %v3926
      %v3930 = vsel %vm589, %v3928, 0
      %v3933 = vsel %vm593, %v3927, 0
      %3935 = vmatprep.subr.bf16.mxu0 0
      %3936 = vmatpush1.bf16.msra.mxu0 0
      %3937 = vmatprep.subr.bf16.mxu0 0
      %3938 = vmatpush1.bf16.msra.mxu0 0
      %3939 = vmatprep.subr.bf16.mxu0 0
      %3940 = vmatpush1.bf16.msra.mxu0 0
      %3941 = vmatprep.subr.bf16.mxu0 0
      %3942 = vmatpush1.bf16.msra.mxu0 0
      %3943 = vmatprep.subr.bf16.mxu0 0
      %3944 = vmatpush1.bf16.msra.mxu0 0
      %3945 = vmatprep.subr.bf16.mxu0 0
      %3946 = vmatpush1.bf16.msra.mxu0 0
      %3947 = vmatprep.subr.bf16.mxu0 0
      %3948 = vmatpush1.bf16.msra.mxu0 0
      %3949 = vmatprep.subr.bf16.mxu0 0
      %3950 = vmatpush1.bf16.msra.mxu0 %v3933
      %3951 = vmatprep.subr.bf16.mxu0 0
      %3952 = vmatpush2.bf16.msra.mxu0 0
      %3953 = vmatprep.subr.bf16.mxu0 0
      %3954 = vmatpush2.bf16.msra.mxu0 0
      %3955 = vmatprep.subr.bf16.mxu0 0
      %3956 = vmatpush2.bf16.msra.mxu0 0
      %3957 = vmatprep.subr.bf16.mxu0 0
      %3958 = vmatpush2.bf16.msra.mxu0 0
      %3959 = vmatprep.subr.bf16.mxu0 0
      %3960 = vmatpush2.bf16.msra.mxu0 0
      %3961 = vmatprep.subr.bf16.mxu0 0
      %3962 = vmatpush2.bf16.msra.mxu0 0
      %3963 = vmatprep.subr.bf16.mxu0 0
      %3964 = vmatpush2.bf16.msra.mxu0 0
      %3965 = vmatprep.subr.bf16.mxu0 0
      %3966 = vmatpush2.bf16.msra.mxu0 0
      %3967 = vmatprep.mubr.bf16.mxu0 0
      %3968 = vmatmul.mubr.bf16.gmra.mxu0 %v3930
      %v3969 = vpop.f32.mrf.mxu0
      %v3970 = vadd.f32 0.0, %v3969
      %v3971 = vpop.f32.mrf.mxu0
      %v3972 = vpop.f32.mrf.mxu0
      %v3973 = vpop.f32.mrf.mxu0
      %3974 = vdwg.mxu0
      %v3975 = vxor.u32 %v3970, 2147483648
      %v3976 = vmul.f32 %v3975, 1.442695
      %v3977 = vpow.pop %v3976
      %v3978 = vadd.f32 %v3977, 1.0
      %v3979 = vrcp.pop %v3978
      %v3980 = vmul.f32 1.0, %v3979
      %v3981 = vmul.f32 %v3970, %v3980
      %3983 = vrot.lane.b32.xlu0 %v3981, 126
      %v3984 = vpop.permute.xlu0 %3983
      %v3986 = vmul.f32 %v3970, %v3984
      %v3987 = vld [vmem:[%s17] sm:$0x1]
      %v3988 = vpack.c.bf16 %v3986, %v3986
      %vm3989 = vcmask 15360
      %v3991 = vsel %vm3989, %v3988, 0
      %vm3993 = vcmask 1040384
      %v3995 = vsel %vm3993, %v3987, 0
      %3997 = vmatprep.subr.bf16.mxu0 0
      %3998 = vmatpush1.bf16.msra.mxu0 0
      %3999 = vmatprep.subr.bf16.mxu0 0
      %4000 = vmatpush1.bf16.msra.mxu0 0
      %4001 = vmatprep.subr.bf16.mxu0 0
      %4002 = vmatpush1.bf16.msra.mxu0 0
      %4003 = vmatprep.subr.bf16.mxu0 0
      %4004 = vmatpush1.bf16.msra.mxu0 0
      %4005 = vmatprep.subr.bf16.mxu0 0
      %4006 = vmatpush1.bf16.msra.mxu0 0
      %4007 = vmatprep.subr.bf16.mxu0 0
      %4008 = vmatpush1.bf16.msra.mxu0 0
      %4009 = vmatprep.subr.bf16.mxu0 0
      %4010 = vmatpush1.bf16.msra.mxu0 0
      %4011 = vmatprep.subr.bf16.mxu0 0
      %4012 = vmatpush1.bf16.msra.mxu0 %v3995
      %4013 = vmatprep.subr.bf16.mxu0 0
      %4014 = vmatpush2.bf16.msra.mxu0 0
      %4015 = vmatprep.subr.bf16.mxu0 0
      %4016 = vmatpush2.bf16.msra.mxu0 0
      %4017 = vmatprep.subr.bf16.mxu0 0
      %4018 = vmatpush2.bf16.msra.mxu0 0
      %4019 = vmatprep.subr.bf16.mxu0 0
      %4020 = vmatpush2.bf16.msra.mxu0 0
      %4021 = vmatprep.subr.bf16.mxu0 0
      %4022 = vmatpush2.bf16.msra.mxu0 0
      %4023 = vmatprep.subr.bf16.mxu0 0
      %4024 = vmatpush2.bf16.msra.mxu0 0
      %4025 = vmatprep.subr.bf16.mxu0 0
      %4026 = vmatpush2.bf16.msra.mxu0 0
      %4027 = vmatprep.subr.bf16.mxu0 0
      %4028 = vmatpush2.bf16.msra.mxu0 0
      %4029 = vmatprep.mubr.bf16.mxu0 0
      %4030 = vmatmul.mubr.bf16.gmra.mxu0 %v3991
      %v4031 = vpop.f32.mrf.mxu0
      %v4032 = vadd.f32 0.0, %v4031
      %v4033 = vpop.f32.mrf.mxu0
      %v4034 = vpop.f32.mrf.mxu0
      %v4035 = vpop.f32.mrf.mxu0
      %4036 = vdwg.mxu0
      %vm4037 = vcmask 8192
      %4038 = vst.msk [vmem:[%s582] sm:$0x1] %vm4037, %v4032
      %p4039 = scmp.lt.s32.totalorder %s29, 1
      %s4040 = scalar_select %p4039, %s29, 1
      %s4041 = scalar_lea.vmem %s18, %s4040
      // Predicated region
      $region93: #{classifier_forward.1} parent=91 // pred_check
        %p4042 = pneg %p435
      $region94: #{classifier_forward.1} parent=91 // pred_check_branch
        %4044 = sbr.rel (%p4042) target = $region96
      $region95: #{classifier_forward.1} parent=91 // pred_region
        _
      $region96: #{classifier_forward.1} parent=91 // pred_fallthru
        _
    $region92: #{classifier_forward.1} parent=5 // pred_fallthru
      _
    %p4045 = scmp.le.s32.totalorder 2, %s24
    // Predicated region
    $region97: #{classifier_forward.1} parent=5 // pred_check
      %p4046 = pneg %p4045
    $region98: #{classifier_forward.1} parent=5 // pred_check_branch
      %4048 = sbr.rel (%p4046) target = $region100
    $region99: #{classifier_forward.1} parent=5 // pred_region
      %s4049 = ssub.s32 %s24, 2
      // Predicated region
      $region101: #{classifier_forward.1} parent=99 // pred_check
        %p4050 = pneg %p441
      $region102: #{classifier_forward.1} parent=99 // pred_check_branch
        %4052 = sbr.rel (%p4050) target = $region104
      $region103: #{classifier_forward.1} parent=99 // pred_region
        %p4053 = scmp.lt.s32.totalorder %s30, 1
        %s4054 = scalar_select %p4053, %s30, 1
        %s4055 = scalar_lea.vmem %s18, %s4054
      $region104: #{classifier_forward.1} parent=99 // pred_fallthru
        _
    $region100: #{classifier_forward.1} parent=5 // pred_fallthru
      _
  $region6: #{classifier_forward.1} parent=0 // loop_footer
    %s28 = sadd.s32 1, %s24
  $region7: #{classifier_forward.1} parent=0 // loop_footer_branch
    %23 = sbr.rel target = $region3
  $region8: #{classifier_forward.1} parent=0 // loop_exit
    _

</llo_original>
